<compile_context>
chip_gen: v7x
topology: tpu7x:2x2x1
jax: 0.10.0
libtpu: 0.0.40
codegen_flags: <defaults>
</compile_context>

<pallas_src>
import functools

import jax
import jax.numpy as jnp
from jax import lax
from jax.experimental import pallas as pl
from jax.experimental.pallas import tpu as pltpu


# ----------------------------------------------------------------------------
# Tap tables for ConvTranspose2d(k=4, s=2, p=1): out[t] += x[i] * W[k] where
# t = 2*i + k - 1.
#
# First deconv, output parity t = 2a + ph  ->  (k, i - a):
_TAPS1 = (((1, 0), (3, -1)),          # ph = 0
          ((0, 1), (2, 0)))           # ph = 1
# Composition of the two stride-2 deconvs: final row t = 4a + u pulls from the
# first-deconv parity plane p at row a + db with second-deconv kernel row k2:
#   (p, db, k2)
_TAPS2 = (((0, 0, 1), (1, -1, 3)),    # u = 0
          ((0, 0, 2), (1, 0, 0)),     # u = 1
          ((0, 0, 3), (1, 0, 1)),     # u = 2
          ((1, 0, 2), (0, 1, 0)))     # u = 3
# Row/col shifts of plane parity p needed by the second deconv.
_SHIFTS2 = ((0, 1), (-1, 0))


def _tap_idx(dh, dw):
    return 3 * (dh + 1) + (dw + 1)


# ----------------------------------------------------------------------------
# Fused decoder kernel (one batch image per grid step)
# ----------------------------------------------------------------------------
def _decoder_kernel(x_ref, m_ref, w1_ref, b1_ref, w3s_ref, w1s_ref,
                    wt1_ref, bt1_ref, wt2_ref, bt2_ref, o_ref,
                    *, H, W, num_res_layers):
    HW = H * W
    f32 = jnp.float32
    bf16 = jnp.bfloat16
    C2 = wt1_ref.shape[0] // 4

    masks = m_ref[...]                                    # (9, HW) f32 {0,1}

    def shift_mask(xf, dh, dw):
        """xf (C, HW) f32 -> x[., h+dh, w+dw] with zero padding (f32)."""
        off = dh * W + dw
        r = pltpu.roll(xf, (-off) % HW, 1) if off != 0 else xf
        t = _tap_idx(dh, dw)
        return r * masks[t:t + 1]                          # (1, HW) edge mask

    def patch3x3(xf):
        """(C, HW) f32 -> (9*C, HW) bf16 patch; taps in (dh, dw) row-major."""
        return jnp.concatenate(
            [shift_mask(xf, dh, dw).astype(bf16)
             for dh in (-1, 0, 1) for dw in (-1, 0, 1)], axis=0)

    def mm(wgt, pat):
        # bf16 operands (MXU-native), f32 accumulation.
        return jnp.dot(wgt, pat, preferred_element_type=f32)

    # ---- conv_1: 3x3, stride 1, pad 1, bias (attention=False -> no ReLU) ----
    x = x_ref[...].astype(f32)                             # (Cin_p, HW)
    a = mm(w1_ref[...], patch3x3(x)) + b1_ref[...]         # (Chid, HW) f32

    # ---- residual stack: x = x + Conv1x1(ReLU(Conv3x3(ReLU(x)))) ------------
    for l in range(num_res_layers):
        h = jnp.maximum(mm(w3s_ref[l], patch3x3(jnp.maximum(a, 0.0))), 0.0)
        a = a + mm(w1s_ref[l], h.astype(bf16))
    a = jnp.maximum(a, 0.0)                                # stack-final ReLU

    # ---- conv_trans_1 fused: all 4 parity planes in ONE dot, bias + ReLU ----
    planes = jnp.maximum(mm(wt1_ref[...], patch3x3(a)) + bt1_ref[...], 0.0)

    # ---- conv_trans_2 fused: all 16 output parities in ONE dot --------------
    pieces = []
    for p in range(2):
        for q in range(2):
            pf = planes[(p * 2 + q) * C2:(p * 2 + q + 1) * C2]   # (C2, HW)
            for db in _SHIFTS2[p]:
                for dq in _SHIFTS2[q]:
                    pieces.append(shift_mask(pf, db, dq).astype(bf16))
    patch2 = jnp.concatenate(pieces, axis=0)               # (16*C2, HW) bf16
    out = mm(wt2_ref[...], patch2) + bt2_ref[...]          # (16*Cout, HW) f32
    o_ref[...] = out.astype(o_ref.dtype)                   # lane-dense store


# ----------------------------------------------------------------------------
# Host-side weight packing (layout plumbing only; jit-traceable)
# ----------------------------------------------------------------------------
def _pack_conv3x3(w_pt, cin_p):
    """Conv2d weight (Cout, Cin, 3, 3) -> (Cout, 9*cin_p); col = tap*cin_p + ci."""
    cout, cin = w_pt.shape[0], w_pt.shape[1]
    w = jnp.zeros((cout, cin_p, 3, 3), jnp.float32).at[:, :cin].set(w_pt)
    return jnp.transpose(w, (0, 2, 3, 1)).reshape(cout, 9 * cin_p)


def _pack_ct1(w_pt):
    """ConvTranspose2d weight (Chid, C2, 4, 4) -> fused (4*C2, 9*Chid)."""
    chid, c2 = w_pt.shape[0], w_pt.shape[1]
    wb = jnp.zeros((4 * c2, 9 * chid), jnp.float32)
    for ph in range(2):
        for pw in range(2):
            r0 = (ph * 2 + pw) * c2
            for (kr, dh) in _TAPS1[ph]:
                for (kc, dw) in _TAPS1[pw]:
                    c0 = _tap_idx(dh, dw) * chid
                    wb = wb.at[r0:r0 + c2, c0:c0 + chid].set(
                        jnp.transpose(w_pt[:, :, kr, kc]))
    return wb


def _pack_ct2(w_pt):
    """ConvTranspose2d weight (C2, Cout, 4, 4) -> fused (16*Cout, 16*C2)."""
    c2, cout = w_pt.shape[0], w_pt.shape[1]
    wb = jnp.zeros((16 * cout, 16 * c2), jnp.float32)
    for u in range(4):
        for v in range(4):
            r0 = (u * 4 + v) * cout
            for (p, db, kr) in _TAPS2[u]:
                for (q, dq, kc) in _TAPS2[v]:
                    piece = (((p * 2 + q) * 2 + _SHIFTS2[p].index(db)) * 2
                             + _SHIFTS2[q].index(dq))
                    c0 = piece * c2
                    wb = wb.at[r0:r0 + cout, c0:c0 + c2].set(
                        jnp.transpose(w_pt[:, :, kr, kc]))
    return wb


def _make_masks(H, W):
    """(9, H*W) f32 {0,1} validity masks for the 3x3 shift taps."""
    hh = jnp.arange(H)[:, None]
    ww = jnp.arange(W)[None, :]
    rows = []
    for dh in (-1, 0, 1):
        for dw in (-1, 0, 1):
            m = ((hh + dh >= 0) & (hh + dh < H) &
                 (ww + dw >= 0) & (ww + dw < W))
            rows.append(m.astype(jnp.float32).reshape(H * W))
    return jnp.stack(rows)


# ----------------------------------------------------------------------------
# Public wrapper: NCHW in, NCHW out (PyTorch convention)
# ----------------------------------------------------------------------------
def decoder_forward(x_nchw, params):
    B, Cin, H, W = x_nchw.shape
    HW = H * W
    Chid = params["conv1_w"].shape[0]
    C2 = params["ct1_w"].shape[1]
    Cout = params["ct2_w"].shape[1]
    L = len(params["res_layers"])
    Cin_p = max(16, -(-Cin // 16) * 16)     # keep bf16 sublane concat aligned
    bf16, f32 = jnp.bfloat16, jnp.float32

    # Activations travel channels-on-sublanes / pixels-on-lanes: (C, H*W).
    x = x_nchw.reshape(B, Cin, HW).astype(f32)
    if Cin_p > Cin:
        x = jnp.pad(x, ((0, 0), (0, Cin_p - Cin), (0, 0)))

    masks = _make_masks(H, W)                                   # (9, HW)

    w1c = _pack_conv3x3(params["conv1_w"], Cin_p).astype(bf16)  # (Chid, 9*Cin_p)
    b1 = params["conv1_b"].reshape(Chid, 1).astype(f32)
    if L:
        Cres = params["res_layers"][0][0].shape[0]
        w3s = jnp.stack([_pack_conv3x3(w3, Chid)
                         for (w3, _) in params["res_layers"]]).astype(bf16)
        w1s = jnp.stack([w1x[:, :, 0, 0]
                         for (_, w1x) in params["res_layers"]]).astype(bf16)
    else:
        Cres = 8
        w3s = jnp.zeros((1, Cres, 9 * Chid), bf16)
        w1s = jnp.zeros((1, Chid, Cres), bf16)
    Lb = w3s.shape[0]
    wt1 = _pack_ct1(params["ct1_w"]).astype(bf16)               # (4*C2, 9*Chid)
    bt1 = jnp.tile(params["ct1_b"], 4).reshape(4 * C2, 1).astype(f32)
    wt2 = _pack_ct2(params["ct2_w"]).astype(bf16)               # (16*Cout, 16*C2)
    bt2 = jnp.tile(params["ct2_b"], 16).reshape(16 * Cout, 1).astype(f32)

    kernel = functools.partial(_decoder_kernel, H=H, W=W, num_res_layers=L)
    out = pl.pallas_call(
        kernel,
        out_shape=jax.ShapeDtypeStruct((B, 16 * Cout, HW), jnp.float32),
        grid=(B,),
        in_specs=[
            pl.BlockSpec((None, Cin_p, HW), lambda b: (b, 0, 0)),
            pl.BlockSpec((9, HW), lambda b: (0, 0)),
            pl.BlockSpec((Chid, 9 * Cin_p), lambda b: (0, 0)),
            pl.BlockSpec((Chid, 1), lambda b: (0, 0)),
            pl.BlockSpec((Lb, Cres, 9 * Chid), lambda b: (0, 0, 0)),
            pl.BlockSpec((Lb, Chid, Cres), lambda b: (0, 0, 0)),
            pl.BlockSpec((4 * C2, 9 * Chid), lambda b: (0, 0)),
            pl.BlockSpec((4 * C2, 1), lambda b: (0, 0)),
            pl.BlockSpec((16 * Cout, 16 * C2), lambda b: (0, 0)),
            pl.BlockSpec((16 * Cout, 1), lambda b: (0, 0)),
        ],
        out_specs=pl.BlockSpec((None, 16 * Cout, HW), lambda b: (b, 0, 0)),
        compiler_params=pltpu.CompilerParams(
            dimension_semantics=("parallel",),
            vmem_limit_bytes=32 * 1024 * 1024),
    )(x, masks, w1c, b1, w3s, w1s, wt1, bt1, wt2, bt2)

    # Un-parity the tiny final output on host and return NCHW.
    # out[b, (u*4+v)*Cout + c, a*W + e] == y[b, c, 4a+u, 4e+v]
    y = out.reshape(B, 4, 4, Cout, H, W)
    y = jnp.transpose(y, (0, 3, 4, 1, 5, 2))                    # (B,C,H,4,W,4)
    return y.reshape(B, Cout, 4 * H, 4 * W)


# ----------------------------------------------------------------------------
# Pure-JAX reference (for correctness check)
# ----------------------------------------------------------------------------
def _ref_conv3x3(x, w_pt, b):
    y = lax.conv_general_dilated(
        x, jnp.transpose(w_pt, (2, 3, 1, 0)), (1, 1), [(1, 1), (1, 1)],
        dimension_numbers=("NHWC", "HWIO", "NHWC"),
        precision=lax.Precision.HIGHEST)
    return y if b is None else y + b


def _ref_deconv4x4(x, w_pt, b):
    k = jnp.transpose(w_pt[:, :, ::-1, ::-1], (2, 3, 0, 1))     # HWIO
    y = lax.conv_general_dilated(
        x, k, (1, 1), [(2, 2), (2, 2)], lhs_dilation=(2, 2),
        dimension_numbers=("NHWC", "HWIO", "NHWC"),
        precision=lax.Precision.HIGHEST)
    return y + b


def ref_decoder(x_nchw, params):
    x = jnp.transpose(x_nchw, (0, 2, 3, 1)).astype(jnp.float32)
    x = _ref_conv3x3(x, params["conv1_w"], params["conv1_b"])
    for (w3, w1) in params["res_layers"]:
        h = jax.nn.relu(_ref_conv3x3(jax.nn.relu(x), w3, None))
        x = x + jnp.einsum("bhwc,dc->bhwd", h, w1[:, :, 0, 0],
                           precision=lax.Precision.HIGHEST)
    x = jax.nn.relu(x)
    x = jax.nn.relu(_ref_deconv4x4(x, params["ct1_w"], params["ct1_b"]))
    x = _ref_deconv4x4(x, params["ct2_w"], params["ct2_b"])
    return jnp.transpose(x, (0, 3, 1, 2))


# ----------------------------------------------------------------------------
# Deterministic synthetic parameters (PyTorch weight shapes)
# ----------------------------------------------------------------------------
def init_params(key, in_channels, out_channels, hidden_dim,
                num_residual_layers, residual_hidden_dim):
    keys = jax.random.split(key, 6 + 2 * num_residual_layers)
    p = {}
    p["conv1_w"] = 0.1 * jax.random.normal(
        keys[0], (hidden_dim, in_channels, 3, 3), jnp.float32)
    p["conv1_b"] = 0.1 * jax.random.normal(keys[1], (hidden_dim,), jnp.float32)
    res = []
    for i in range(num_residual_layers):
        w3 = 0.1 * jax.random.normal(
            keys[2 + 2 * i], (residual_hidden_dim, hidden_dim, 3, 3), jnp.float32)
        w1 = 0.1 * jax.random.normal(
            keys[3 + 2 * i], (hidden_dim, residual_hidden_dim, 1, 1), jnp.float32)
        res.append((w3, w1))
    p["res_layers"] = res
    k0 = 2 + 2 * num_residual_layers
    p["ct1_w"] = 0.1 * jax.random.normal(
        keys[k0], (hidden_dim, hidden_dim // 2, 4, 4), jnp.float32)
    p["ct1_b"] = 0.1 * jax.random.normal(keys[k0 + 1], (hidden_dim // 2,),
                                         jnp.float32)
    p["ct2_w"] = 0.1 * jax.random.normal(
        keys[k0 + 2], (hidden_dim // 2, out_channels, 4, 4), jnp.float32)
    p["ct2_b"] = 0.1 * jax.random.normal(keys[k0 + 3], (out_channels,),
                                         jnp.float32)
    return p


if __name__ == "__main__":
    B, in_channels, H, W = 2, 4, 16, 16
    hidden_dim, num_residual_layers, residual_hidden_dim = 32, 2, 16
    out_channels = 3

    key = jax.random.PRNGKey(0)
    kx, kp = jax.random.split(key)
    x = jax.random.normal(kx, (B, in_channels, H, W), jnp.float32)   # NCHW
    params = init_params(kp, in_channels, out_channels, hidden_dim,
                         num_residual_layers, residual_hidden_dim)

    fwd = jax.jit(decoder_forward)
    y = jax.block_until_ready(fwd(x, params))
    assert y.shape == (B, out_channels, 4 * H, 4 * W), y.shape

    y_ref = jax.block_until_ready(ref_decoder(x, params))
    rel_err = jnp.max(jnp.abs(y - y_ref)) / (jnp.max(jnp.abs(y_ref)) + 1e-6)
    assert rel_err < 2e-2, f"mismatch vs reference, rel_err={rel_err}"

    print("KERNEL_OK")
</pallas_src>

<mosaic_0001>
module attributes {stable_mosaic.version = 11 : i64} {
  func.func @_decoder_kernel(%arg0: i32, %arg1: memref<1x16x256xf32, #tpu.memory_space<vmem>>, %arg2: memref<9x256xf32, #tpu.memory_space<vmem>>, %arg3: memref<32x144xbf16, #tpu.memory_space<vmem>>, %arg4: memref<32x1xf32, #tpu.memory_space<vmem>>, %arg5: memref<2x16x288xbf16, #tpu.memory_space<vmem>>, %arg6: memref<2x32x16xbf16, #tpu.memory_space<vmem>>, %arg7: memref<64x288xbf16, #tpu.memory_space<vmem>>, %arg8: memref<64x1xf32, #tpu.memory_space<vmem>>, %arg9: memref<48x256xbf16, #tpu.memory_space<vmem>>, %arg10: memref<48x1xf32, #tpu.memory_space<vmem>>, %arg11: memref<1x48x256xf32, #tpu.memory_space<vmem>>) attributes {dimension_semantics = [#tpu.dimension_semantics<parallel>], iteration_bounds = array<i64: 2>, scalar_prefetch = 0 : i64, scratch_operands = 0 : i64, tpu.core_type = #tpu.core_type<tc>, window_params = [{transform_indices = @transform_0, window_bounds = array<i64: 1, 16, 256>}, {pipeline_mode = #tpu.pipeline_mode<synchronous>, transform_indices = @transform_1, window_bounds = array<i64: 9, 256>}, {pipeline_mode = #tpu.pipeline_mode<synchronous>, transform_indices = @transform_2, window_bounds = array<i64: 32, 144>}, {pipeline_mode = #tpu.pipeline_mode<synchronous>, transform_indices = @transform_3, window_bounds = array<i64: 32, 1>}, {pipeline_mode = #tpu.pipeline_mode<synchronous>, transform_indices = @transform_4, window_bounds = array<i64: 2, 16, 288>}, {pipeline_mode = #tpu.pipeline_mode<synchronous>, transform_indices = @transform_5, window_bounds = array<i64: 2, 32, 16>}, {pipeline_mode = #tpu.pipeline_mode<synchronous>, transform_indices = @transform_6, window_bounds = array<i64: 64, 288>}, {pipeline_mode = #tpu.pipeline_mode<synchronous>, transform_indices = @transform_7, window_bounds = array<i64: 64, 1>}, {pipeline_mode = #tpu.pipeline_mode<synchronous>, transform_indices = @transform_8, window_bounds = array<i64: 48, 256>}, {pipeline_mode = #tpu.pipeline_mode<synchronous>, transform_indices = @transform_9, window_bounds = array<i64: 48, 1>}, {transform_indices = @transform_10, window_bounds = array<i64: 1, 48, 256>}]} {
    %c0 = arith.constant 0 : index
    %c0_0 = arith.constant 0 : index
    %0 = vector.load %arg2[%c0, %c0_0] : memref<9x256xf32, #tpu.memory_space<vmem>>, vector<9x256xf32>
    %c0_1 = arith.constant 0 : index
    %c0_2 = arith.constant 0 : index
    %c0_3 = arith.constant 0 : index
    %1 = vector.load %arg1[%c0_1, %c0_2, %c0_3] : memref<1x16x256xf32, #tpu.memory_space<vmem>>, vector<1x16x256xf32>
    %2 = vector.shape_cast %1 : vector<1x16x256xf32> to vector<16x256xf32>
    %c0_4 = arith.constant 0 : index
    %c0_5 = arith.constant 0 : index
    %3 = vector.load %arg3[%c0_4, %c0_5] : memref<32x144xbf16, #tpu.memory_space<vmem>>, vector<32x144xbf16>
    %c17_i32 = arith.constant 17 : i32
    %4 = tpu.dynamic_rotate %2 by %c17_i32 dim 1 : vector<16x256xf32>, i32 -> vector<16x256xf32>
    %5 = vector.extract_strided_slice %0 {offsets = [0, 0], sizes = [1, 256], strides = [1, 1]} : vector<9x256xf32> to vector<1x256xf32>
    %6 = vector.broadcast %5 : vector<1x256xf32> to vector<16x256xf32>
    %7 = arith.mulf %4, %6 : vector<16x256xf32>
    %8 = arith.truncf %7 : vector<16x256xf32> to vector<16x256xbf16>
    %c16_i32 = arith.constant 16 : i32
    %9 = tpu.dynamic_rotate %2 by %c16_i32 dim 1 : vector<16x256xf32>, i32 -> vector<16x256xf32>
    %10 = vector.extract_strided_slice %0 {offsets = [1, 0], sizes = [1, 256], strides = [1, 1]} : vector<9x256xf32> to vector<1x256xf32>
    %11 = vector.broadcast %10 : vector<1x256xf32> to vector<16x256xf32>
    %12 = arith.mulf %9, %11 : vector<16x256xf32>
    %13 = arith.truncf %12 : vector<16x256xf32> to vector<16x256xbf16>
    %c15_i32 = arith.constant 15 : i32
    %14 = tpu.dynamic_rotate %2 by %c15_i32 dim 1 : vector<16x256xf32>, i32 -> vector<16x256xf32>
    %15 = vector.extract_strided_slice %0 {offsets = [2, 0], sizes = [1, 256], strides = [1, 1]} : vector<9x256xf32> to vector<1x256xf32>
    %16 = vector.broadcast %15 : vector<1x256xf32> to vector<16x256xf32>
    %17 = arith.mulf %14, %16 : vector<16x256xf32>
    %18 = arith.truncf %17 : vector<16x256xf32> to vector<16x256xbf16>
    %c1_i32 = arith.constant 1 : i32
    %19 = tpu.dynamic_rotate %2 by %c1_i32 dim 1 : vector<16x256xf32>, i32 -> vector<16x256xf32>
    %20 = vector.extract_strided_slice %0 {offsets = [3, 0], sizes = [1, 256], strides = [1, 1]} : vector<9x256xf32> to vector<1x256xf32>
    %21 = vector.broadcast %20 : vector<1x256xf32> to vector<16x256xf32>
    %22 = arith.mulf %19, %21 : vector<16x256xf32>
    %23 = arith.truncf %22 : vector<16x256xf32> to vector<16x256xbf16>
    %24 = vector.extract_strided_slice %0 {offsets = [4, 0], sizes = [1, 256], strides = [1, 1]} : vector<9x256xf32> to vector<1x256xf32>
    %25 = vector.broadcast %24 : vector<1x256xf32> to vector<16x256xf32>
    %26 = arith.mulf %2, %25 : vector<16x256xf32>
    %27 = arith.truncf %26 : vector<16x256xf32> to vector<16x256xbf16>
    %c255_i32 = arith.constant 255 : i32
    %28 = tpu.dynamic_rotate %2 by %c255_i32 dim 1 : vector<16x256xf32>, i32 -> vector<16x256xf32>
    %29 = vector.extract_strided_slice %0 {offsets = [5, 0], sizes = [1, 256], strides = [1, 1]} : vector<9x256xf32> to vector<1x256xf32>
    %30 = vector.broadcast %29 : vector<1x256xf32> to vector<16x256xf32>
    %31 = arith.mulf %28, %30 : vector<16x256xf32>
    %32 = arith.truncf %31 : vector<16x256xf32> to vector<16x256xbf16>
    %c241_i32 = arith.constant 241 : i32
    %33 = tpu.dynamic_rotate %2 by %c241_i32 dim 1 : vector<16x256xf32>, i32 -> vector<16x256xf32>
    %34 = vector.extract_strided_slice %0 {offsets = [6, 0], sizes = [1, 256], strides = [1, 1]} : vector<9x256xf32> to vector<1x256xf32>
    %35 = vector.broadcast %34 : vector<1x256xf32> to vector<16x256xf32>
    %36 = arith.mulf %33, %35 : vector<16x256xf32>
    %37 = arith.truncf %36 : vector<16x256xf32> to vector<16x256xbf16>
    %c240_i32 = arith.constant 240 : i32
    %38 = tpu.dynamic_rotate %2 by %c240_i32 dim 1 : vector<16x256xf32>, i32 -> vector<16x256xf32>
    %39 = vector.extract_strided_slice %0 {offsets = [7, 0], sizes = [1, 256], strides = [1, 1]} : vector<9x256xf32> to vector<1x256xf32>
    %40 = vector.broadcast %39 : vector<1x256xf32> to vector<16x256xf32>
    %41 = arith.mulf %38, %40 : vector<16x256xf32>
    %42 = arith.truncf %41 : vector<16x256xf32> to vector<16x256xbf16>
    %c239_i32 = arith.constant 239 : i32
    %43 = tpu.dynamic_rotate %2 by %c239_i32 dim 1 : vector<16x256xf32>, i32 -> vector<16x256xf32>
    %44 = vector.extract_strided_slice %0 {offsets = [8, 0], sizes = [1, 256], strides = [1, 1]} : vector<9x256xf32> to vector<1x256xf32>
    %45 = vector.broadcast %44 : vector<1x256xf32> to vector<16x256xf32>
    %46 = arith.mulf %43, %45 : vector<16x256xf32>
    %47 = arith.truncf %46 : vector<16x256xf32> to vector<16x256xbf16>
    %48 = tpu.concatenate %8, %13, %18, %23, %27, %32, %37, %42, %47 in 0 : vector<16x256xbf16>, vector<16x256xbf16>, vector<16x256xbf16>, vector<16x256xbf16>, vector<16x256xbf16>, vector<16x256xbf16>, vector<16x256xbf16>, vector<16x256xbf16>, vector<16x256xbf16> -> vector<144x256xbf16>
    %cst = arith.constant dense<0.000000e+00> : vector<32x256xf32>
    %49 = tpu.matmul %3, %48, %cst {dimension_numbers = #tpu.dot_dimension_numbers<[1], [0], [0], [1], [0, 0, 1, 1], [], []>} : vector<32x144xbf16>, vector<144x256xbf16>, vector<32x256xf32> -> vector<32x256xf32>
    %c0_6 = arith.constant 0 : index
    %c0_7 = arith.constant 0 : index
    %50 = vector.load %arg4[%c0_6, %c0_7] : memref<32x1xf32, #tpu.memory_space<vmem>>, vector<32x1xf32>
    %51 = vector.broadcast %50 : vector<32x1xf32> to vector<32x256xf32>
    %52 = arith.addf %49, %51 : vector<32x256xf32>
    %c0_8 = arith.constant 0 : index
    %c0_9 = arith.constant 0 : index
    %c0_10 = arith.constant 0 : index
    %53 = vector.load %arg5[%c0_8, %c0_9, %c0_10] : memref<2x16x288xbf16, #tpu.memory_space<vmem>>, vector<1x16x288xbf16>
    %54 = vector.shape_cast %53 : vector<1x16x288xbf16> to vector<16x288xbf16>
    %cst_11 = arith.constant 0.000000e+00 : f32
    %55 = vector.broadcast %cst_11 : f32 to vector<32x256xf32>
    %56 = arith.maximumf %52, %55 : vector<32x256xf32>
    %c17_i32_12 = arith.constant 17 : i32
    %57 = tpu.dynamic_rotate %56 by %c17_i32_12 dim 1 : vector<32x256xf32>, i32 -> vector<32x256xf32>
    %58 = vector.extract_strided_slice %0 {offsets = [0, 0], sizes = [1, 256], strides = [1, 1]} : vector<9x256xf32> to vector<1x256xf32>
    %59 = vector.broadcast %58 : vector<1x256xf32> to vector<32x256xf32>
    %60 = arith.mulf %57, %59 : vector<32x256xf32>
    %61 = arith.truncf %60 : vector<32x256xf32> to vector<32x256xbf16>
    %c16_i32_13 = arith.constant 16 : i32
    %62 = tpu.dynamic_rotate %56 by %c16_i32_13 dim 1 : vector<32x256xf32>, i32 -> vector<32x256xf32>
    %63 = vector.extract_strided_slice %0 {offsets = [1, 0], sizes = [1, 256], strides = [1, 1]} : vector<9x256xf32> to vector<1x256xf32>
    %64 = vector.broadcast %63 : vector<1x256xf32> to vector<32x256xf32>
    %65 = arith.mulf %62, %64 : vector<32x256xf32>
    %66 = arith.truncf %65 : vector<32x256xf32> to vector<32x256xbf16>
    %c15_i32_14 = arith.constant 15 : i32
    %67 = tpu.dynamic_rotate %56 by %c15_i32_14 dim 1 : vector<32x256xf32>, i32 -> vector<32x256xf32>
    %68 = vector.extract_strided_slice %0 {offsets = [2, 0], sizes = [1, 256], strides = [1, 1]} : vector<9x256xf32> to vector<1x256xf32>
    %69 = vector.broadcast %68 : vector<1x256xf32> to vector<32x256xf32>
    %70 = arith.mulf %67, %69 : vector<32x256xf32>
    %71 = arith.truncf %70 : vector<32x256xf32> to vector<32x256xbf16>
    %c1_i32_15 = arith.constant 1 : i32
    %72 = tpu.dynamic_rotate %56 by %c1_i32_15 dim 1 : vector<32x256xf32>, i32 -> vector<32x256xf32>
    %73 = vector.extract_strided_slice %0 {offsets = [3, 0], sizes = [1, 256], strides = [1, 1]} : vector<9x256xf32> to vector<1x256xf32>
    %74 = vector.broadcast %73 : vector<1x256xf32> to vector<32x256xf32>
    %75 = arith.mulf %72, %74 : vector<32x256xf32>
    %76 = arith.truncf %75 : vector<32x256xf32> to vector<32x256xbf16>
    %77 = vector.extract_strided_slice %0 {offsets = [4, 0], sizes = [1, 256], strides = [1, 1]} : vector<9x256xf32> to vector<1x256xf32>
    %78 = vector.broadcast %77 : vector<1x256xf32> to vector<32x256xf32>
    %79 = arith.mulf %56, %78 : vector<32x256xf32>
    %80 = arith.truncf %79 : vector<32x256xf32> to vector<32x256xbf16>
    %c255_i32_16 = arith.constant 255 : i32
    %81 = tpu.dynamic_rotate %56 by %c255_i32_16 dim 1 : vector<32x256xf32>, i32 -> vector<32x256xf32>
    %82 = vector.extract_strided_slice %0 {offsets = [5, 0], sizes = [1, 256], strides = [1, 1]} : vector<9x256xf32> to vector<1x256xf32>
    %83 = vector.broadcast %82 : vector<1x256xf32> to vector<32x256xf32>
    %84 = arith.mulf %81, %83 : vector<32x256xf32>
    %85 = arith.truncf %84 : vector<32x256xf32> to vector<32x256xbf16>
    %c241_i32_17 = arith.constant 241 : i32
    %86 = tpu.dynamic_rotate %56 by %c241_i32_17 dim 1 : vector<32x256xf32>, i32 -> vector<32x256xf32>
    %87 = vector.extract_strided_slice %0 {offsets = [6, 0], sizes = [1, 256], strides = [1, 1]} : vector<9x256xf32> to vector<1x256xf32>
    %88 = vector.broadcast %87 : vector<1x256xf32> to vector<32x256xf32>
    %89 = arith.mulf %86, %88 : vector<32x256xf32>
    %90 = arith.truncf %89 : vector<32x256xf32> to vector<32x256xbf16>
    %c240_i32_18 = arith.constant 240 : i32
    %91 = tpu.dynamic_rotate %56 by %c240_i32_18 dim 1 : vector<32x256xf32>, i32 -> vector<32x256xf32>
    %92 = vector.extract_strided_slice %0 {offsets = [7, 0], sizes = [1, 256], strides = [1, 1]} : vector<9x256xf32> to vector<1x256xf32>
    %93 = vector.broadcast %92 : vector<1x256xf32> to vector<32x256xf32>
    %94 = arith.mulf %91, %93 : vector<32x256xf32>
    %95 = arith.truncf %94 : vector<32x256xf32> to vector<32x256xbf16>
    %c239_i32_19 = arith.constant 239 : i32
    %96 = tpu.dynamic_rotate %56 by %c239_i32_19 dim 1 : vector<32x256xf32>, i32 -> vector<32x256xf32>
    %97 = vector.extract_strided_slice %0 {offsets = [8, 0], sizes = [1, 256], strides = [1, 1]} : vector<9x256xf32> to vector<1x256xf32>
    %98 = vector.broadcast %97 : vector<1x256xf32> to vector<32x256xf32>
    %99 = arith.mulf %96, %98 : vector<32x256xf32>
    %100 = arith.truncf %99 : vector<32x256xf32> to vector<32x256xbf16>
    %101 = tpu.concatenate %61, %66, %71, %76, %80, %85, %90, %95, %100 in 0 : vector<32x256xbf16>, vector<32x256xbf16>, vector<32x256xbf16>, vector<32x256xbf16>, vector<32x256xbf16>, vector<32x256xbf16>, vector<32x256xbf16>, vector<32x256xbf16>, vector<32x256xbf16> -> vector<288x256xbf16>
    %cst_20 = arith.constant dense<0.000000e+00> : vector<16x256xf32>
    %102 = tpu.matmul %54, %101, %cst_20 {dimension_numbers = #tpu.dot_dimension_numbers<[1], [0], [0], [1], [0, 0, 1, 1], [], []>} : vector<16x288xbf16>, vector<288x256xbf16>, vector<16x256xf32> -> vector<16x256xf32>
    %cst_21 = arith.constant 0.000000e+00 : f32
    %103 = vector.broadcast %cst_21 : f32 to vector<16x256xf32>
    %104 = arith.maximumf %102, %103 : vector<16x256xf32>
    %c0_22 = arith.constant 0 : index
    %c0_23 = arith.constant 0 : index
    %c0_24 = arith.constant 0 : index
    %105 = vector.load %arg6[%c0_22, %c0_23, %c0_24] : memref<2x32x16xbf16, #tpu.memory_space<vmem>>, vector<1x32x16xbf16>
    %106 = vector.shape_cast %105 : vector<1x32x16xbf16> to vector<32x16xbf16>
    %107 = arith.truncf %104 : vector<16x256xf32> to vector<16x256xbf16>
    %cst_25 = arith.constant dense<0.000000e+00> : vector<32x256xf32>
    %108 = tpu.matmul %106, %107, %cst_25 {dimension_numbers = #tpu.dot_dimension_numbers<[1], [0], [0], [1], [0, 0, 1, 1], [], []>} : vector<32x16xbf16>, vector<16x256xbf16>, vector<32x256xf32> -> vector<32x256xf32>
    %109 = arith.addf %52, %108 : vector<32x256xf32>
    %c1 = arith.constant 1 : index
    %c0_26 = arith.constant 0 : index
    %c0_27 = arith.constant 0 : index
    %110 = vector.load %arg5[%c1, %c0_26, %c0_27] : memref<2x16x288xbf16, #tpu.memory_space<vmem>>, vector<1x16x288xbf16>
    %111 = vector.shape_cast %110 : vector<1x16x288xbf16> to vector<16x288xbf16>
    %cst_28 = arith.constant 0.000000e+00 : f32
    %112 = vector.broadcast %cst_28 : f32 to vector<32x256xf32>
    %113 = arith.maximumf %109, %112 : vector<32x256xf32>
    %c17_i32_29 = arith.constant 17 : i32
    %114 = tpu.dynamic_rotate %113 by %c17_i32_29 dim 1 : vector<32x256xf32>, i32 -> vector<32x256xf32>
    %115 = vector.extract_strided_slice %0 {offsets = [0, 0], sizes = [1, 256], strides = [1, 1]} : vector<9x256xf32> to vector<1x256xf32>
    %116 = vector.broadcast %115 : vector<1x256xf32> to vector<32x256xf32>
    %117 = arith.mulf %114, %116 : vector<32x256xf32>
    %118 = arith.truncf %117 : vector<32x256xf32> to vector<32x256xbf16>
    %c16_i32_30 = arith.constant 16 : i32
    %119 = tpu.dynamic_rotate %113 by %c16_i32_30 dim 1 : vector<32x256xf32>, i32 -> vector<32x256xf32>
    %120 = vector.extract_strided_slice %0 {offsets = [1, 0], sizes = [1, 256], strides = [1, 1]} : vector<9x256xf32> to vector<1x256xf32>
    %121 = vector.broadcast %120 : vector<1x256xf32> to vector<32x256xf32>
    %122 = arith.mulf %119, %121 : vector<32x256xf32>
    %123 = arith.truncf %122 : vector<32x256xf32> to vector<32x256xbf16>
    %c15_i32_31 = arith.constant 15 : i32
    %124 = tpu.dynamic_rotate %113 by %c15_i32_31 dim 1 : vector<32x256xf32>, i32 -> vector<32x256xf32>
    %125 = vector.extract_strided_slice %0 {offsets = [2, 0], sizes = [1, 256], strides = [1, 1]} : vector<9x256xf32> to vector<1x256xf32>
    %126 = vector.broadcast %125 : vector<1x256xf32> to vector<32x256xf32>
    %127 = arith.mulf %124, %126 : vector<32x256xf32>
    %128 = arith.truncf %127 : vector<32x256xf32> to vector<32x256xbf16>
    %c1_i32_32 = arith.constant 1 : i32
    %129 = tpu.dynamic_rotate %113 by %c1_i32_32 dim 1 : vector<32x256xf32>, i32 -> vector<32x256xf32>
    %130 = vector.extract_strided_slice %0 {offsets = [3, 0], sizes = [1, 256], strides = [1, 1]} : vector<9x256xf32> to vector<1x256xf32>
    %131 = vector.broadcast %130 : vector<1x256xf32> to vector<32x256xf32>
    %132 = arith.mulf %129, %131 : vector<32x256xf32>
    %133 = arith.truncf %132 : vector<32x256xf32> to vector<32x256xbf16>
    %134 = vector.extract_strided_slice %0 {offsets = [4, 0], sizes = [1, 256], strides = [1, 1]} : vector<9x256xf32> to vector<1x256xf32>
    %135 = vector.broadcast %134 : vector<1x256xf32> to vector<32x256xf32>
    %136 = arith.mulf %113, %135 : vector<32x256xf32>
    %137 = arith.truncf %136 : vector<32x256xf32> to vector<32x256xbf16>
    %c255_i32_33 = arith.constant 255 : i32
    %138 = tpu.dynamic_rotate %113 by %c255_i32_33 dim 1 : vector<32x256xf32>, i32 -> vector<32x256xf32>
    %139 = vector.extract_strided_slice %0 {offsets = [5, 0], sizes = [1, 256], strides = [1, 1]} : vector<9x256xf32> to vector<1x256xf32>
    %140 = vector.broadcast %139 : vector<1x256xf32> to vector<32x256xf32>
    %141 = arith.mulf %138, %140 : vector<32x256xf32>
    %142 = arith.truncf %141 : vector<32x256xf32> to vector<32x256xbf16>
    %c241_i32_34 = arith.constant 241 : i32
    %143 = tpu.dynamic_rotate %113 by %c241_i32_34 dim 1 : vector<32x256xf32>, i32 -> vector<32x256xf32>
    %144 = vector.extract_strided_slice %0 {offsets = [6, 0], sizes = [1, 256], strides = [1, 1]} : vector<9x256xf32> to vector<1x256xf32>
    %145 = vector.broadcast %144 : vector<1x256xf32> to vector<32x256xf32>
    %146 = arith.mulf %143, %145 : vector<32x256xf32>
    %147 = arith.truncf %146 : vector<32x256xf32> to vector<32x256xbf16>
    %c240_i32_35 = arith.constant 240 : i32
    %148 = tpu.dynamic_rotate %113 by %c240_i32_35 dim 1 : vector<32x256xf32>, i32 -> vector<32x256xf32>
    %149 = vector.extract_strided_slice %0 {offsets = [7, 0], sizes = [1, 256], strides = [1, 1]} : vector<9x256xf32> to vector<1x256xf32>
    %150 = vector.broadcast %149 : vector<1x256xf32> to vector<32x256xf32>
    %151 = arith.mulf %148, %150 : vector<32x256xf32>
    %152 = arith.truncf %151 : vector<32x256xf32> to vector<32x256xbf16>
    %c239_i32_36 = arith.constant 239 : i32
    %153 = tpu.dynamic_rotate %113 by %c239_i32_36 dim 1 : vector<32x256xf32>, i32 -> vector<32x256xf32>
    %154 = vector.extract_strided_slice %0 {offsets = [8, 0], sizes = [1, 256], strides = [1, 1]} : vector<9x256xf32> to vector<1x256xf32>
    %155 = vector.broadcast %154 : vector<1x256xf32> to vector<32x256xf32>
    %156 = arith.mulf %153, %155 : vector<32x256xf32>
    %157 = arith.truncf %156 : vector<32x256xf32> to vector<32x256xbf16>
    %158 = tpu.concatenate %118, %123, %128, %133, %137, %142, %147, %152, %157 in 0 : vector<32x256xbf16>, vector<32x256xbf16>, vector<32x256xbf16>, vector<32x256xbf16>, vector<32x256xbf16>, vector<32x256xbf16>, vector<32x256xbf16>, vector<32x256xbf16>, vector<32x256xbf16> -> vector<288x256xbf16>
    %cst_37 = arith.constant dense<0.000000e+00> : vector<16x256xf32>
    %159 = tpu.matmul %111, %158, %cst_37 {dimension_numbers = #tpu.dot_dimension_numbers<[1], [0], [0], [1], [0, 0, 1, 1], [], []>} : vector<16x288xbf16>, vector<288x256xbf16>, vector<16x256xf32> -> vector<16x256xf32>
    %cst_38 = arith.constant 0.000000e+00 : f32
    %160 = vector.broadcast %cst_38 : f32 to vector<16x256xf32>
    %161 = arith.maximumf %159, %160 : vector<16x256xf32>
    %c1_39 = arith.constant 1 : index
    %c0_40 = arith.constant 0 : index
    %c0_41 = arith.constant 0 : index
    %162 = vector.load %arg6[%c1_39, %c0_40, %c0_41] : memref<2x32x16xbf16, #tpu.memory_space<vmem>>, vector<1x32x16xbf16>
    %163 = vector.shape_cast %162 : vector<1x32x16xbf16> to vector<32x16xbf16>
    %164 = arith.truncf %161 : vector<16x256xf32> to vector<16x256xbf16>
    %cst_42 = arith.constant dense<0.000000e+00> : vector<32x256xf32>
    %165 = tpu.matmul %163, %164, %cst_42 {dimension_numbers = #tpu.dot_dimension_numbers<[1], [0], [0], [1], [0, 0, 1, 1], [], []>} : vector<32x16xbf16>, vector<16x256xbf16>, vector<32x256xf32> -> vector<32x256xf32>
    %166 = arith.addf %109, %165 : vector<32x256xf32>
    %cst_43 = arith.constant 0.000000e+00 : f32
    %167 = vector.broadcast %cst_43 : f32 to vector<32x256xf32>
    %168 = arith.maximumf %166, %167 : vector<32x256xf32>
    %c0_44 = arith.constant 0 : index
    %c0_45 = arith.constant 0 : index
    %169 = vector.load %arg7[%c0_44, %c0_45] : memref<64x288xbf16, #tpu.memory_space<vmem>>, vector<64x288xbf16>
    %c17_i32_46 = arith.constant 17 : i32
    %170 = tpu.dynamic_rotate %168 by %c17_i32_46 dim 1 : vector<32x256xf32>, i32 -> vector<32x256xf32>
    %171 = vector.extract_strided_slice %0 {offsets = [0, 0], sizes = [1, 256], strides = [1, 1]} : vector<9x256xf32> to vector<1x256xf32>
    %172 = vector.broadcast %171 : vector<1x256xf32> to vector<32x256xf32>
    %173 = arith.mulf %170, %172 : vector<32x256xf32>
    %174 = arith.truncf %173 : vector<32x256xf32> to vector<32x256xbf16>
    %c16_i32_47 = arith.constant 16 : i32
    %175 = tpu.dynamic_rotate %168 by %c16_i32_47 dim 1 : vector<32x256xf32>, i32 -> vector<32x256xf32>
    %176 = vector.extract_strided_slice %0 {offsets = [1, 0], sizes = [1, 256], strides = [1, 1]} : vector<9x256xf32> to vector<1x256xf32>
    %177 = vector.broadcast %176 : vector<1x256xf32> to vector<32x256xf32>
    %178 = arith.mulf %175, %177 : vector<32x256xf32>
    %179 = arith.truncf %178 : vector<32x256xf32> to vector<32x256xbf16>
    %c15_i32_48 = arith.constant 15 : i32
    %180 = tpu.dynamic_rotate %168 by %c15_i32_48 dim 1 : vector<32x256xf32>, i32 -> vector<32x256xf32>
    %181 = vector.extract_strided_slice %0 {offsets = [2, 0], sizes = [1, 256], strides = [1, 1]} : vector<9x256xf32> to vector<1x256xf32>
    %182 = vector.broadcast %181 : vector<1x256xf32> to vector<32x256xf32>
    %183 = arith.mulf %180, %182 : vector<32x256xf32>
    %184 = arith.truncf %183 : vector<32x256xf32> to vector<32x256xbf16>
    %c1_i32_49 = arith.constant 1 : i32
    %185 = tpu.dynamic_rotate %168 by %c1_i32_49 dim 1 : vector<32x256xf32>, i32 -> vector<32x256xf32>
    %186 = vector.extract_strided_slice %0 {offsets = [3, 0], sizes = [1, 256], strides = [1, 1]} : vector<9x256xf32> to vector<1x256xf32>
    %187 = vector.broadcast %186 : vector<1x256xf32> to vector<32x256xf32>
    %188 = arith.mulf %185, %187 : vector<32x256xf32>
    %189 = arith.truncf %188 : vector<32x256xf32> to vector<32x256xbf16>
    %190 = vector.extract_strided_slice %0 {offsets = [4, 0], sizes = [1, 256], strides = [1, 1]} : vector<9x256xf32> to vector<1x256xf32>
    %191 = vector.broadcast %190 : vector<1x256xf32> to vector<32x256xf32>
    %192 = arith.mulf %168, %191 : vector<32x256xf32>
    %193 = arith.truncf %192 : vector<32x256xf32> to vector<32x256xbf16>
    %c255_i32_50 = arith.constant 255 : i32
    %194 = tpu.dynamic_rotate %168 by %c255_i32_50 dim 1 : vector<32x256xf32>, i32 -> vector<32x256xf32>
    %195 = vector.extract_strided_slice %0 {offsets = [5, 0], sizes = [1, 256], strides = [1, 1]} : vector<9x256xf32> to vector<1x256xf32>
    %196 = vector.broadcast %195 : vector<1x256xf32> to vector<32x256xf32>
    %197 = arith.mulf %194, %196 : vector<32x256xf32>
    %198 = arith.truncf %197 : vector<32x256xf32> to vector<32x256xbf16>
    %c241_i32_51 = arith.constant 241 : i32
    %199 = tpu.dynamic_rotate %168 by %c241_i32_51 dim 1 : vector<32x256xf32>, i32 -> vector<32x256xf32>
    %200 = vector.extract_strided_slice %0 {offsets = [6, 0], sizes = [1, 256], strides = [1, 1]} : vector<9x256xf32> to vector<1x256xf32>
    %201 = vector.broadcast %200 : vector<1x256xf32> to vector<32x256xf32>
    %202 = arith.mulf %199, %201 : vector<32x256xf32>
    %203 = arith.truncf %202 : vector<32x256xf32> to vector<32x256xbf16>
    %c240_i32_52 = arith.constant 240 : i32
    %204 = tpu.dynamic_rotate %168 by %c240_i32_52 dim 1 : vector<32x256xf32>, i32 -> vector<32x256xf32>
    %205 = vector.extract_strided_slice %0 {offsets = [7, 0], sizes = [1, 256], strides = [1, 1]} : vector<9x256xf32> to vector<1x256xf32>
    %206 = vector.broadcast %205 : vector<1x256xf32> to vector<32x256xf32>
    %207 = arith.mulf %204, %206 : vector<32x256xf32>
    %208 = arith.truncf %207 : vector<32x256xf32> to vector<32x256xbf16>
    %c239_i32_53 = arith.constant 239 : i32
    %209 = tpu.dynamic_rotate %168 by %c239_i32_53 dim 1 : vector<32x256xf32>, i32 -> vector<32x256xf32>
    %210 = vector.extract_strided_slice %0 {offsets = [8, 0], sizes = [1, 256], strides = [1, 1]} : vector<9x256xf32> to vector<1x256xf32>
    %211 = vector.broadcast %210 : vector<1x256xf32> to vector<32x256xf32>
    %212 = arith.mulf %209, %211 : vector<32x256xf32>
    %213 = arith.truncf %212 : vector<32x256xf32> to vector<32x256xbf16>
    %214 = tpu.concatenate %174, %179, %184, %189, %193, %198, %203, %208, %213 in 0 : vector<32x256xbf16>, vector<32x256xbf16>, vector<32x256xbf16>, vector<32x256xbf16>, vector<32x256xbf16>, vector<32x256xbf16>, vector<32x256xbf16>, vector<32x256xbf16>, vector<32x256xbf16> -> vector<288x256xbf16>
    %cst_54 = arith.constant dense<0.000000e+00> : vector<64x256xf32>
    %215 = tpu.matmul %169, %214, %cst_54 {dimension_numbers = #tpu.dot_dimension_numbers<[1], [0], [0], [1], [0, 0, 1, 1], [], []>} : vector<64x288xbf16>, vector<288x256xbf16>, vector<64x256xf32> -> vector<64x256xf32>
    %c0_55 = arith.constant 0 : index
    %c0_56 = arith.constant 0 : index
    %216 = vector.load %arg8[%c0_55, %c0_56] : memref<64x1xf32, #tpu.memory_space<vmem>>, vector<64x1xf32>
    %217 = vector.broadcast %216 : vector<64x1xf32> to vector<64x256xf32>
    %218 = arith.addf %215, %217 : vector<64x256xf32>
    %cst_57 = arith.constant 0.000000e+00 : f32
    %219 = vector.broadcast %cst_57 : f32 to vector<64x256xf32>
    %220 = arith.maximumf %218, %219 : vector<64x256xf32>
    %221 = vector.extract_strided_slice %220 {offsets = [0, 0], sizes = [16, 256], strides = [1, 1]} : vector<64x256xf32> to vector<16x256xf32>
    %222 = vector.extract_strided_slice %0 {offsets = [4, 0], sizes = [1, 256], strides = [1, 1]} : vector<9x256xf32> to vector<1x256xf32>
    %223 = vector.broadcast %222 : vector<1x256xf32> to vector<16x256xf32>
    %224 = arith.mulf %221, %223 : vector<16x256xf32>
    %225 = arith.truncf %224 : vector<16x256xf32> to vector<16x256xbf16>
    %c255_i32_58 = arith.constant 255 : i32
    %226 = tpu.dynamic_rotate %221 by %c255_i32_58 dim 1 : vector<16x256xf32>, i32 -> vector<16x256xf32>
    %227 = vector.extract_strided_slice %0 {offsets = [5, 0], sizes = [1, 256], strides = [1, 1]} : vector<9x256xf32> to vector<1x256xf32>
    %228 = vector.broadcast %227 : vector<1x256xf32> to vector<16x256xf32>
    %229 = arith.mulf %226, %228 : vector<16x256xf32>
    %230 = arith.truncf %229 : vector<16x256xf32> to vector<16x256xbf16>
    %c240_i32_59 = arith.constant 240 : i32
    %231 = tpu.dynamic_rotate %221 by %c240_i32_59 dim 1 : vector<16x256xf32>, i32 -> vector<16x256xf32>
    %232 = vector.extract_strided_slice %0 {offsets = [7, 0], sizes = [1, 256], strides = [1, 1]} : vector<9x256xf32> to vector<1x256xf32>
    %233 = vector.broadcast %232 : vector<1x256xf32> to vector<16x256xf32>
    %234 = arith.mulf %231, %233 : vector<16x256xf32>
    %235 = arith.truncf %234 : vector<16x256xf32> to vector<16x256xbf16>
    %c239_i32_60 = arith.constant 239 : i32
    %236 = tpu.dynamic_rotate %221 by %c239_i32_60 dim 1 : vector<16x256xf32>, i32 -> vector<16x256xf32>
    %237 = vector.extract_strided_slice %0 {offsets = [8, 0], sizes = [1, 256], strides = [1, 1]} : vector<9x256xf32> to vector<1x256xf32>
    %238 = vector.broadcast %237 : vector<1x256xf32> to vector<16x256xf32>
    %239 = arith.mulf %236, %238 : vector<16x256xf32>
    %240 = arith.truncf %239 : vector<16x256xf32> to vector<16x256xbf16>
    %241 = vector.extract_strided_slice %220 {offsets = [16, 0], sizes = [16, 256], strides = [1, 1]} : vector<64x256xf32> to vector<16x256xf32>
    %c1_i32_61 = arith.constant 1 : i32
    %242 = tpu.dynamic_rotate %241 by %c1_i32_61 dim 1 : vector<16x256xf32>, i32 -> vector<16x256xf32>
    %243 = vector.extract_strided_slice %0 {offsets = [3, 0], sizes = [1, 256], strides = [1, 1]} : vector<9x256xf32> to vector<1x256xf32>
    %244 = vector.broadcast %243 : vector<1x256xf32> to vector<16x256xf32>
    %245 = arith.mulf %242, %244 : vector<16x256xf32>
    %246 = arith.truncf %245 : vector<16x256xf32> to vector<16x256xbf16>
    %247 = vector.extract_strided_slice %0 {offsets = [4, 0], sizes = [1, 256], strides = [1, 1]} : vector<9x256xf32> to vector<1x256xf32>
    %248 = vector.broadcast %247 : vector<1x256xf32> to vector<16x256xf32>
    %249 = arith.mulf %241, %248 : vector<16x256xf32>
    %250 = arith.truncf %249 : vector<16x256xf32> to vector<16x256xbf16>
    %c241_i32_62 = arith.constant 241 : i32
    %251 = tpu.dynamic_rotate %241 by %c241_i32_62 dim 1 : vector<16x256xf32>, i32 -> vector<16x256xf32>
    %252 = vector.extract_strided_slice %0 {offsets = [6, 0], sizes = [1, 256], strides = [1, 1]} : vector<9x256xf32> to vector<1x256xf32>
    %253 = vector.broadcast %252 : vector<1x256xf32> to vector<16x256xf32>
    %254 = arith.mulf %251, %253 : vector<16x256xf32>
    %255 = arith.truncf %254 : vector<16x256xf32> to vector<16x256xbf16>
    %c240_i32_63 = arith.constant 240 : i32
    %256 = tpu.dynamic_rotate %241 by %c240_i32_63 dim 1 : vector<16x256xf32>, i32 -> vector<16x256xf32>
    %257 = vector.extract_strided_slice %0 {offsets = [7, 0], sizes = [1, 256], strides = [1, 1]} : vector<9x256xf32> to vector<1x256xf32>
    %258 = vector.broadcast %257 : vector<1x256xf32> to vector<16x256xf32>
    %259 = arith.mulf %256, %258 : vector<16x256xf32>
    %260 = arith.truncf %259 : vector<16x256xf32> to vector<16x256xbf16>
    %261 = vector.extract_strided_slice %220 {offsets = [32, 0], sizes = [16, 256], strides = [1, 1]} : vector<64x256xf32> to vector<16x256xf32>
    %c16_i32_64 = arith.constant 16 : i32
    %262 = tpu.dynamic_rotate %261 by %c16_i32_64 dim 1 : vector<16x256xf32>, i32 -> vector<16x256xf32>
    %263 = vector.extract_strided_slice %0 {offsets = [1, 0], sizes = [1, 256], strides = [1, 1]} : vector<9x256xf32> to vector<1x256xf32>
    %264 = vector.broadcast %263 : vector<1x256xf32> to vector<16x256xf32>
    %265 = arith.mulf %262, %264 : vector<16x256xf32>
    %266 = arith.truncf %265 : vector<16x256xf32> to vector<16x256xbf16>
    %c15_i32_65 = arith.constant 15 : i32
    %267 = tpu.dynamic_rotate %261 by %c15_i32_65 dim 1 : vector<16x256xf32>, i32 -> vector<16x256xf32>
    %268 = vector.extract_strided_slice %0 {offsets = [2, 0], sizes = [1, 256], strides = [1, 1]} : vector<9x256xf32> to vector<1x256xf32>
    %269 = vector.broadcast %268 : vector<1x256xf32> to vector<16x256xf32>
    %270 = arith.mulf %267, %269 : vector<16x256xf32>
    %271 = arith.truncf %270 : vector<16x256xf32> to vector<16x256xbf16>
    %272 = vector.extract_strided_slice %0 {offsets = [4, 0], sizes = [1, 256], strides = [1, 1]} : vector<9x256xf32> to vector<1x256xf32>
    %273 = vector.broadcast %272 : vector<1x256xf32> to vector<16x256xf32>
    %274 = arith.mulf %261, %273 : vector<16x256xf32>
    %275 = arith.truncf %274 : vector<16x256xf32> to vector<16x256xbf16>
    %c255_i32_66 = arith.constant 255 : i32
    %276 = tpu.dynamic_rotate %261 by %c255_i32_66 dim 1 : vector<16x256xf32>, i32 -> vector<16x256xf32>
    %277 = vector.extract_strided_slice %0 {offsets = [5, 0], sizes = [1, 256], strides = [1, 1]} : vector<9x256xf32> to vector<1x256xf32>
    %278 = vector.broadcast %277 : vector<1x256xf32> to vector<16x256xf32>
    %279 = arith.mulf %276, %278 : vector<16x256xf32>
    %280 = arith.truncf %279 : vector<16x256xf32> to vector<16x256xbf16>
    %281 = vector.extract_strided_slice %220 {offsets = [48, 0], sizes = [16, 256], strides = [1, 1]} : vector<64x256xf32> to vector<16x256xf32>
    %c17_i32_67 = arith.constant 17 : i32
    %282 = tpu.dynamic_rotate %281 by %c17_i32_67 dim 1 : vector<16x256xf32>, i32 -> vector<16x256xf32>
    %283 = vector.extract_strided_slice %0 {offsets = [0, 0], sizes = [1, 256], strides = [1, 1]} : vector<9x256xf32> to vector<1x256xf32>
    %284 = vector.broadcast %283 : vector<1x256xf32> to vector<16x256xf32>
    %285 = arith.mulf %282, %284 : vector<16x256xf32>
    %286 = arith.truncf %285 : vector<16x256xf32> to vector<16x256xbf16>
    %c16_i32_68 = arith.constant 16 : i32
    %287 = tpu.dynamic_rotate %281 by %c16_i32_68 dim 1 : vector<16x256xf32>, i32 -> vector<16x256xf32>
    %288 = vector.extract_strided_slice %0 {offsets = [1, 0], sizes = [1, 256], strides = [1, 1]} : vector<9x256xf32> to vector<1x256xf32>
    %289 = vector.broadcast %288 : vector<1x256xf32> to vector<16x256xf32>
    %290 = arith.mulf %287, %289 : vector<16x256xf32>
    %291 = arith.truncf %290 : vector<16x256xf32> to vector<16x256xbf16>
    %c1_i32_69 = arith.constant 1 : i32
    %292 = tpu.dynamic_rotate %281 by %c1_i32_69 dim 1 : vector<16x256xf32>, i32 -> vector<16x256xf32>
    %293 = vector.extract_strided_slice %0 {offsets = [3, 0], sizes = [1, 256], strides = [1, 1]} : vector<9x256xf32> to vector<1x256xf32>
    %294 = vector.broadcast %293 : vector<1x256xf32> to vector<16x256xf32>
    %295 = arith.mulf %292, %294 : vector<16x256xf32>
    %296 = arith.truncf %295 : vector<16x256xf32> to vector<16x256xbf16>
    %297 = vector.extract_strided_slice %0 {offsets = [4, 0], sizes = [1, 256], strides = [1, 1]} : vector<9x256xf32> to vector<1x256xf32>
    %298 = vector.broadcast %297 : vector<1x256xf32> to vector<16x256xf32>
    %299 = arith.mulf %281, %298 : vector<16x256xf32>
    %300 = arith.truncf %299 : vector<16x256xf32> to vector<16x256xbf16>
    %301 = tpu.concatenate %225, %230, %235, %240, %246, %250, %255, %260, %266, %271, %275, %280, %286, %291, %296, %300 in 0 : vector<16x256xbf16>, vector<16x256xbf16>, vector<16x256xbf16>, vector<16x256xbf16>, vector<16x256xbf16>, vector<16x256xbf16>, vector<16x256xbf16>, vector<16x256xbf16>, vector<16x256xbf16>, vector<16x256xbf16>, vector<16x256xbf16>, vector<16x256xbf16>, vector<16x256xbf16>, vector<16x256xbf16>, vector<16x256xbf16>, vector<16x256xbf16> -> vector<256x256xbf16>
    %c0_70 = arith.constant 0 : index
    %c0_71 = arith.constant 0 : index
    %302 = vector.load %arg9[%c0_70, %c0_71] : memref<48x256xbf16, #tpu.memory_space<vmem>>, vector<48x256xbf16>
    %cst_72 = arith.constant dense<0.000000e+00> : vector<48x256xf32>
    %303 = tpu.matmul %302, %301, %cst_72 {dimension_numbers = #tpu.dot_dimension_numbers<[1], [0], [0], [1], [0, 0, 1, 1], [], []>} : vector<48x256xbf16>, vector<256x256xbf16>, vector<48x256xf32> -> vector<48x256xf32>
    %c0_73 = arith.constant 0 : index
    %c0_74 = arith.constant 0 : index
    %304 = vector.load %arg10[%c0_73, %c0_74] : memref<48x1xf32, #tpu.memory_space<vmem>>, vector<48x1xf32>
    %305 = vector.broadcast %304 : vector<48x1xf32> to vector<48x256xf32>
    %306 = arith.addf %303, %305 : vector<48x256xf32>
    %c0_75 = arith.constant 0 : index
    %c0_76 = arith.constant 0 : index
    %c0_77 = arith.constant 0 : index
    %307 = vector.load %arg11[%c0_75, %c0_76, %c0_77] : memref<1x48x256xf32, #tpu.memory_space<vmem>>, vector<1x48x256xf32>
    %308 = vector.shape_cast %307 : vector<1x48x256xf32> to vector<48x256xf32>
    %309 = vector.shape_cast %306 : vector<48x256xf32> to vector<1x48x256xf32>
    tpu.vector_store %arg11[%c0_75, %c0_76, %c0_77], %309 {strides = array<i32>} : memref<1x48x256xf32, #tpu.memory_space<vmem>>, vector<1x48x256xf32>,
    return
  }
  func.func @transform_0(%arg0: i32) -> (i32, i32, i32) {
    %c0_i32 = arith.constant 0 : i32
    %c0_i32_0 = arith.constant 0 : i32
    %c0_i32_1 = arith.constant 0 : i32
    return %arg0, %c0_i32, %c0_i32_0 : i32, i32, i32
  }
  func.func @transform_1(%arg0: i32) -> (i32, i32) {
    %c0_i32 = arith.constant 0 : i32
    %c0_i32_0 = arith.constant 0 : i32
    %c0_i32_1 = arith.constant 0 : i32
    return %c0_i32, %c0_i32_0 : i32, i32
  }
  func.func @transform_2(%arg0: i32) -> (i32, i32) {
    %c0_i32 = arith.constant 0 : i32
    %c0_i32_0 = arith.constant 0 : i32
    %c0_i32_1 = arith.constant 0 : i32
    return %c0_i32, %c0_i32_0 : i32, i32
  }
  func.func @transform_3(%arg0: i32) -> (i32, i32) {
    %c0_i32 = arith.constant 0 : i32
    %c0_i32_0 = arith.constant 0 : i32
    %c0_i32_1 = arith.constant 0 : i32
    return %c0_i32, %c0_i32_0 : i32, i32
  }
  func.func @transform_4(%arg0: i32) -> (i32, i32, i32) {
    %c0_i32 = arith.constant 0 : i32
    %c0_i32_0 = arith.constant 0 : i32
    %c0_i32_1 = arith.constant 0 : i32
    %c0_i32_2 = arith.constant 0 : i32
    return %c0_i32, %c0_i32_0, %c0_i32_1 : i32, i32, i32
  }
  func.func @transform_5(%arg0: i32) -> (i32, i32, i32) {
    %c0_i32 = arith.constant 0 : i32
    %c0_i32_0 = arith.constant 0 : i32
    %c0_i32_1 = arith.constant 0 : i32
    %c0_i32_2 = arith.constant 0 : i32
    return %c0_i32, %c0_i32_0, %c0_i32_1 : i32, i32, i32
  }
  func.func @transform_6(%arg0: i32) -> (i32, i32) {
    %c0_i32 = arith.constant 0 : i32
    %c0_i32_0 = arith.constant 0 : i32
    %c0_i32_1 = arith.constant 0 : i32
    return %c0_i32, %c0_i32_0 : i32, i32
  }
  func.func @transform_7(%arg0: i32) -> (i32, i32) {
    %c0_i32 = arith.constant 0 : i32
    %c0_i32_0 = arith.constant 0 : i32
    %c0_i32_1 = arith.constant 0 : i32
    return %c0_i32, %c0_i32_0 : i32, i32
  }
  func.func @transform_8(%arg0: i32) -> (i32, i32) {
    %c0_i32 = arith.constant 0 : i32
    %c0_i32_0 = arith.constant 0 : i32
    %c0_i32_1 = arith.constant 0 : i32
    return %c0_i32, %c0_i32_0 : i32, i32
  }
  func.func @transform_9(%arg0: i32) -> (i32, i32) {
    %c0_i32 = arith.constant 0 : i32
    %c0_i32_0 = arith.constant 0 : i32
    %c0_i32_1 = arith.constant 0 : i32
    return %c0_i32, %c0_i32_0 : i32, i32
  }
  func.func @transform_10(%arg0: i32) -> (i32, i32, i32) {
    %c0_i32 = arith.constant 0 : i32
    %c0_i32_0 = arith.constant 0 : i32
    %c0_i32_1 = arith.constant 0 : i32
    return %arg0, %c0_i32, %c0_i32_0 : i32, i32, i32
  }
}

</mosaic_0001>

<llo_original>
// kernel: tile.13
$region0: #{tile.13}
  #allocation2 [shape = 's32[1]{0}', space=sflag, size = 0x4, scoped, tag = 'scoped memory for tile.13']
  %s0 = inlined_call_operand.hbm [shape: f32[16], index: 0, kind: input, shape index: {}]
  %s1 = inlined_call_operand.vmem [shape: f32[4,16], index: 1, kind: output, shape index: {}]
  $region1: #{tile.13} parent=0
    #allocation0 [shape = 'u8[512]{0}', space=vmem, size = 0x400, scoped, tag = 'operand span for operand 0']
    #allocation1 [shape = 's32[1]{0}', space=sflag, size = 0x4, scoped, tag = 'scoped memory for tile.13']
    %2 = vsyncpa [#allocation1], 0
    // Predicated region
    $region2: #{tile.13} parent=1 // pred_check
      _
    $region3: #{tile.13} parent=1 // pred_check_branch
      %4 = sbr.rel (0) target = $region5
    $region4: #{tile.13} parent=1 // pred_region
      %s6 = ssub.s32 16, 16
      %7 = vsyncadd [#allocation1], %s6
      %s9 = sshll.u32 [#allocation0], 4
      %s10 = int_to_ptr.vmem [resolvable:$true] %s9
      %12 = dma.hbm_to_vmem [thread:$0]  %s0, 16, %s10, [#allocation1]
    $region5: #{tile.13} parent=1 // pred_fallthru
      _
    // Predicated region
    $region6: #{tile.13} parent=1 // pred_check
      _
    $region7: #{tile.13} parent=1 // pred_check_branch
      %14 = sbr.rel (0) target = $region9
    $region8: #{tile.13} parent=1 // pred_region
      %15 = dma.done [#allocation1], 16
    $region9: #{tile.13} parent=1 // pred_fallthru
      _
    %v16 = vld [vmem:[#allocation0] ss:$0 sm:$0xff]
    %17 = vst [vmem:[%s1] sm:$0xf] %v16
    %18 = vsyncpa [#allocation1], 1

// kernel: tile.18
$region0: #{tile.18}
  #allocation2 [shape = 's32[1]{0}', space=sflag, size = 0x4, scoped, tag = 'scoped memory for tile.18']
  %s0 = inlined_call_operand.hbm [shape: f32[3], index: 0, kind: input, shape index: {}]
  %s1 = inlined_call_operand.vmem [shape: f32[16,3], index: 1, kind: output, shape index: {}]
  $region1: #{tile.18} parent=0
    #allocation0 [shape = 'u8[512]{0}', space=vmem, size = 0x400, scoped, tag = 'operand span for operand 0']
    #allocation1 [shape = 's32[1]{0}', space=sflag, size = 0x4, scoped, tag = 'scoped memory for tile.18']
    %2 = vsyncpa [#allocation1], 0
    // Predicated region
    $region2: #{tile.18} parent=1 // pred_check
      _
    $region3: #{tile.18} parent=1 // pred_check_branch
      %4 = sbr.rel (0) target = $region5
    $region4: #{tile.18} parent=1 // pred_region
      %s6 = ssub.s32 16, 16
      %7 = vsyncadd [#allocation1], %s6
      %s9 = sshll.u32 [#allocation0], 4
      %s10 = int_to_ptr.vmem [resolvable:$true] %s9
      %12 = dma.hbm_to_vmem [thread:$0]  %s0, 16, %s10, [#allocation1]
    $region5: #{tile.18} parent=1 // pred_fallthru
      _
    // Predicated region
    $region6: #{tile.18} parent=1 // pred_check
      _
    $region7: #{tile.18} parent=1 // pred_check_branch
      %14 = sbr.rel (0) target = $region9
    $region8: #{tile.18} parent=1 // pred_region
      %15 = dma.done [#allocation1], 16
    $region9: #{tile.18} parent=1 // pred_fallthru
      _
    %v16 = vld [vmem:[#allocation0] ss:$0 sm:$0xff]
    %17 = vst [vmem:[%s1] sm:$0xff] %v16
    %s18 = scalar_lea.vmem %s1, 8
    %19 = vst [vmem:[%s18] sm:$0xff] %v16
    %20 = vsyncpa [#allocation1], 1

// kernel: tile.1
$region0: #{tile.1}
  %s0 = inlined_call_operand.vmem [shape: f32[16,3], index: 0, kind: input, shape index: {}]
  %s1 = inlined_call_operand.vmem [shape: f32[48,1], index: 1, kind: output, shape index: {}]
  %v2 = vld [vmem:[%s0] sm:$0xff]
  %vm3 = vcmask 7168
  %4 = vst.msk [vmem:[%s1] ss:$3 sm:$0xff] %vm3, %v2
  %s5 = scalar_lea.vmem %s0, 8
  %v6 = vld [vmem:[%s5] sm:$0xff]
  %vm7 = vcmask 7168
  %s8 = scalar_lea.vmem %s1, 24
  %9 = vst.msk [vmem:[%s8] ss:$3 sm:$0xff] %vm7, %v6
  %v10 = vld.sshfl [vmem:[%s0] sm:$0xff pattern:$0xe3d2c1b0]
  %11 = vrot.lane.b32.xlu0 %v10, 127
  %v12 = vpop.permute.xlu0 %11
  %vm13 = vcmask 7168
  %s14 = scalar_lea.vmem %s1, 1
  %15 = vst.msk [vmem:[%s14] ss:$33 sm:$0x3] %vm13, %v12
  %s16 = scalar_lea.vmem %s1, 4294967234
  %17 = vst.msk [vmem:[%s16] ss:$33 sm:$0xc] %vm13, %v12
  %s18 = scalar_lea.vmem %s1, 4294967171
  %19 = vst.msk [vmem:[%s18] ss:$33 sm:$0x30] %vm13, %v12
  %s20 = scalar_lea.vmem %s1, 4294967108
  %21 = vst.msk [vmem:[%s20] ss:$33 sm:$0xc0] %vm13, %v12
  %s22 = scalar_lea.vmem %s0, 4
  %v23 = vld.sshfl [vmem:[%s22] sm:$0xff pattern:$0x654321b0]
  %24 = vrot.lane.b32.xlu0 %v23, 127
  %v25 = vpop.permute.xlu0 %24
  %vm26 = vcmask 7168
  %s27 = scalar_lea.vmem %s1, 13
  %28 = vst.msk [vmem:[%s27] ss:$33 sm:$0x3] %vm26, %v25
  %s29 = scalar_lea.vmem %s1, 10
  %30 = vst.msk [vmem:[%s29] ss:$3 sm:$0xfc] %vm26, %v25
  %v31 = vld.sshfl [vmem:[%s0] sm:$0xff pattern:$0x3d2c1b0a]
  %32 = vrot.lane.b32.xlu0 %v31, 126
  %v33 = vpop.permute.xlu0 %32
  %vm34 = vcmask 7168
  %s35 = scalar_lea.vmem %s1, 32
  %36 = vst.msk [vmem:[%s35] ss:$-30 sm:$0x3] %vm34, %v33
  %s37 = scalar_lea.vmem %s1, 95
  %38 = vst.msk [vmem:[%s37] ss:$-30 sm:$0xc] %vm34, %v33
  %s39 = scalar_lea.vmem %s1, 158
  %40 = vst.msk [vmem:[%s39] ss:$-30 sm:$0x30] %vm34, %v33
  %s41 = scalar_lea.vmem %s1, 221
  %42 = vst.msk [vmem:[%s41] ss:$-30 sm:$0xc0] %vm34, %v33
  %s43 = scalar_lea.vmem %s0, 4
  %v44 = vld.sshfl [vmem:[%s43] sm:$0xff pattern:$0x54321b0a]
  %45 = vrot.lane.b32.xlu0 %v44, 126
  %v46 = vpop.permute.xlu0 %45
  %vm47 = vcmask 7168
  %s48 = scalar_lea.vmem %s1, 44
  %49 = vst.msk [vmem:[%s48] ss:$-30 sm:$0x3] %vm47, %v46
  %s50 = scalar_lea.vmem %s1, 107
  %51 = vst.msk [vmem:[%s50] ss:$-30 sm:$0xc] %vm47, %v46
  %s52 = scalar_lea.vmem %s1, 8
  %53 = vst.msk [vmem:[%s52] ss:$3 sm:$0xf0] %vm47, %v46

// kernel: tile.0
$region0: #{tile.0}
  %s0 = inlined_call_operand.vmem [shape: f32[4,16], index: 0, kind: input, shape index: {}]
  %s1 = inlined_call_operand.vmem [shape: f32[64,1], index: 1, kind: output, shape index: {}]
  $region1: #{tile.0} parent=0
    #allocation0 [shape = 'u8[4096]{0}', space=vmem, size = 0x1000, scoped, tag = 'scoped mem for input reshape']
    %s3 = sshllo.u32 0, 4
    %v4 = vld [vmem:[%s0] sm:%s3]
    %5 = vst [vmem:[#allocation0] sm:%s3] %v4
    %v6 = vld [vmem:[#allocation0] sm:$0xf]
    %vm7 = vcmask 7168
    %8 = vst.msk [vmem:[%s1] ss:$16 sm:$0x3] %vm7, %v6
    %9 = vst.msk [vmem:[%s1] ss:$16 sm:$0xc] %vm7, %v6
    %v10 = vld [vmem:[#allocation0] sm:$0xf]
    %11 = vrot.lane.b32.xlu0 %v10, 127
    %v12 = vpop.permute.xlu0 %11
    %vm13 = vcmask 7168
    %s14 = scalar_lea.vmem %s1, 1
    %15 = vst.msk [vmem:[%s14] ss:$16 sm:$0x3] %vm13, %v12
    %s16 = scalar_lea.vmem %s1, 1
    %17 = vst.msk [vmem:[%s16] ss:$16 sm:$0xc] %vm13, %v12
    %v18 = vld [vmem:[#allocation0] sm:$0xf]
    %19 = vrot.lane.b32.xlu0 %v18, 126
    %v20 = vpop.permute.xlu0 %19
    %vm21 = vcmask 7168
    %s22 = scalar_lea.vmem %s1, 2
    %23 = vst.msk [vmem:[%s22] ss:$16 sm:$0x3] %vm21, %v20
    %s24 = scalar_lea.vmem %s1, 2
    %25 = vst.msk [vmem:[%s24] ss:$16 sm:$0xc] %vm21, %v20
    %v26 = vld [vmem:[#allocation0] sm:$0xf]
    %27 = vrot.lane.b32.xlu0 %v26, 125
    %v28 = vpop.permute.xlu0 %27
    %vm29 = vcmask 7168
    %s30 = scalar_lea.vmem %s1, 3
    %31 = vst.msk [vmem:[%s30] ss:$16 sm:$0x3] %vm29, %v28
    %s32 = scalar_lea.vmem %s1, 3
    %33 = vst.msk [vmem:[%s32] ss:$16 sm:$0xc] %vm29, %v28
    %v34 = vld [vmem:[#allocation0] sm:$0xf]
    %35 = vrot.lane.b32.xlu0 %v34, 124
    %v36 = vpop.permute.xlu0 %35
    %vm37 = vcmask 7168
    %s38 = scalar_lea.vmem %s1, 4
    %39 = vst.msk [vmem:[%s38] ss:$16 sm:$0x3] %vm37, %v36
    %s40 = scalar_lea.vmem %s1, 4
    %41 = vst.msk [vmem:[%s40] ss:$16 sm:$0xc] %vm37, %v36
    %v42 = vld [vmem:[#allocation0] sm:$0xf]
    %43 = vrot.lane.b32.xlu0 %v42, 123
    %v44 = vpop.permute.xlu0 %43
    %vm45 = vcmask 7168
    %s46 = scalar_lea.vmem %s1, 5
    %47 = vst.msk [vmem:[%s46] ss:$16 sm:$0x3] %vm45, %v44
    %s48 = scalar_lea.vmem %s1, 5
    %49 = vst.msk [vmem:[%s48] ss:$16 sm:$0xc] %vm45, %v44
    %v50 = vld [vmem:[#allocation0] sm:$0xf]
    %51 = vrot.lane.b32.xlu0 %v50, 122
    %v52 = vpop.permute.xlu0 %51
    %vm53 = vcmask 7168
    %s54 = scalar_lea.vmem %s1, 6
    %55 = vst.msk [vmem:[%s54] ss:$16 sm:$0x3] %vm53, %v52
    %s56 = scalar_lea.vmem %s1, 6
    %57 = vst.msk [vmem:[%s56] ss:$16 sm:$0xc] %vm53, %v52
    %v58 = vld [vmem:[#allocation0] sm:$0xf]
    %59 = vrot.lane.b32.xlu0 %v58, 121
    %v60 = vpop.permute.xlu0 %59
    %vm61 = vcmask 7168
    %s62 = scalar_lea.vmem %s1, 7
    %63 = vst.msk [vmem:[%s62] ss:$16 sm:$0x3] %vm61, %v60
    %s64 = scalar_lea.vmem %s1, 7
    %65 = vst.msk [vmem:[%s64] ss:$16 sm:$0xc] %vm61, %v60
    %v66 = vld [vmem:[#allocation0] sm:$0xf]
    %67 = vrot.lane.b32.xlu0 %v66, 120
    %v68 = vpop.permute.xlu0 %67
    %vm69 = vcmask 7168
    %s70 = scalar_lea.vmem %s1, 8
    %71 = vst.msk [vmem:[%s70] ss:$16 sm:$0x3] %vm69, %v68
    %s72 = scalar_lea.vmem %s1, 8
    %73 = vst.msk [vmem:[%s72] ss:$16 sm:$0xc] %vm69, %v68
    %v74 = vld [vmem:[#allocation0] sm:$0xf]
    %75 = vrot.lane.b32.xlu0 %v74, 119
    %v76 = vpop.permute.xlu0 %75
    %vm77 = vcmask 7168
    %s78 = scalar_lea.vmem %s1, 9
    %79 = vst.msk [vmem:[%s78] ss:$16 sm:$0x3] %vm77, %v76
    %s80 = scalar_lea.vmem %s1, 9
    %81 = vst.msk [vmem:[%s80] ss:$16 sm:$0xc] %vm77, %v76
    %v82 = vld [vmem:[#allocation0] sm:$0xf]
    %83 = vrot.lane.b32.xlu0 %v82, 118
    %v84 = vpop.permute.xlu0 %83
    %vm85 = vcmask 7168
    %s86 = scalar_lea.vmem %s1, 10
    %87 = vst.msk [vmem:[%s86] ss:$16 sm:$0x3] %vm85, %v84
    %s88 = scalar_lea.vmem %s1, 10
    %89 = vst.msk [vmem:[%s88] ss:$16 sm:$0xc] %vm85, %v84
    %v90 = vld [vmem:[#allocation0] sm:$0xf]
    %91 = vrot.lane.b32.xlu0 %v90, 117
    %v92 = vpop.permute.xlu0 %91
    %vm93 = vcmask 7168
    %s94 = scalar_lea.vmem %s1, 11
    %95 = vst.msk [vmem:[%s94] ss:$16 sm:$0x3] %vm93, %v92
    %s96 = scalar_lea.vmem %s1, 11
    %97 = vst.msk [vmem:[%s96] ss:$16 sm:$0xc] %vm93, %v92
    %v98 = vld [vmem:[#allocation0] sm:$0xf]
    %99 = vrot.lane.b32.xlu0 %v98, 116
    %v100 = vpop.permute.xlu0 %99
    %vm101 = vcmask 7168
    %s102 = scalar_lea.vmem %s1, 12
    %103 = vst.msk [vmem:[%s102] ss:$16 sm:$0x3] %vm101, %v100
    %s104 = scalar_lea.vmem %s1, 12
    %105 = vst.msk [vmem:[%s104] ss:$16 sm:$0xc] %vm101, %v100
    %v106 = vld [vmem:[#allocation0] sm:$0xf]
    %107 = vrot.lane.b32.xlu0 %v106, 115
    %v108 = vpop.permute.xlu0 %107
    %vm109 = vcmask 7168
    %s110 = scalar_lea.vmem %s1, 13
    %111 = vst.msk [vmem:[%s110] ss:$16 sm:$0x3] %vm109, %v108
    %s112 = scalar_lea.vmem %s1, 13
    %113 = vst.msk [vmem:[%s112] ss:$16 sm:$0xc] %vm109, %v108
    %v114 = vld [vmem:[#allocation0] sm:$0xf]
    %115 = vrot.lane.b32.xlu0 %v114, 114
    %v116 = vpop.permute.xlu0 %115
    %vm117 = vcmask 7168
    %s118 = scalar_lea.vmem %s1, 14
    %119 = vst.msk [vmem:[%s118] ss:$16 sm:$0x3] %vm117, %v116
    %s120 = scalar_lea.vmem %s1, 14
    %121 = vst.msk [vmem:[%s120] ss:$16 sm:$0xc] %vm117, %v116
    %v122 = vld [vmem:[#allocation0] sm:$0xf]
    %123 = vrot.lane.b32.xlu0 %v122, 113
    %v124 = vpop.permute.xlu0 %123
    %vm125 = vcmask 7168
    %s126 = scalar_lea.vmem %s1, 15
    %127 = vst.msk [vmem:[%s126] ss:$16 sm:$0x3] %vm125, %v124
    %s128 = scalar_lea.vmem %s1, 15
    %129 = vst.msk [vmem:[%s128] ss:$16 sm:$0xc] %vm125, %v124

// kernel: decoder_forward.1
$region0: #{decoder_forward.1}
  #allocation0 [shape = 'u32[]', space=smem, size = 0x4, offset = 0x4, fixed_abs, tag = 'smem constant byte address 0x4 - core index']
  #allocation1 [shape = 'u32[144,128]{1,0:T(1,128)}', space=vmem, size = 0x12000, scoped, tag = 'internal scratch']
  %s0 = inlined_call_operand.vmem [shape: f32[2,16,256], index: 0, kind: input, shape index: {}]
  %s1 = inlined_call_operand.vmem [shape: f32[9,256], index: 1, kind: input, shape index: {}]
  %s2 = inlined_call_operand.vmem [shape: bf16[32,144], index: 2, kind: input, shape index: {}]
  %s3 = inlined_call_operand.vmem [shape: f32[32,1], index: 3, kind: input, shape index: {}]
  %s4 = inlined_call_operand.vmem [shape: bf16[2,16,288], index: 4, kind: input, shape index: {}]
  %s5 = inlined_call_operand.vmem [shape: bf16[2,32,16], index: 5, kind: input, shape index: {}]
  %s6 = inlined_call_operand.vmem [shape: bf16[64,288], index: 6, kind: input, shape index: {}]
  %s7 = inlined_call_operand.vmem [shape: f32[64,1], index: 7, kind: input, shape index: {}]
  %s8 = inlined_call_operand.vmem [shape: bf16[48,256], index: 8, kind: input, shape index: {}]
  %s9 = inlined_call_operand.vmem [shape: f32[48,1], index: 9, kind: input, shape index: {}]
  %s10 = inlined_call_operand.vmem [shape: f32[2,48,256], index: 10, kind: output, shape index: {}]
  %s11 = sld [smem:[#allocation0]]
  $region73: #{decoder_forward.1} parent=0
    _
  %s13 = ssub.s32 1, %s11
  %s14 = scalar_select 0, %s13, %s11
  loop: start=0, step=1, limit=4
  $region2: #{decoder_forward.1} parent=0 // loop_pre_header
    _
  $region3: #{decoder_forward.1} parent=0 // loop_header
    %s16 = sphi 0, %s20
    %p17 = scmp.ge.s32.totalorder %s16, 4
    %s26 = sphi 0, %s28
    %s29 = sphi 0, %s26
    %s30 = sphi 0, %s29
    %s46 = sphi 0, %s30
    %s50 = sphi 0, %s50
    %s52 = sphi 0, %s50
    %s53 = sphi 0, %s52
    %s67 = sphi 0, %s53
    %s71 = sphi 0, %s71
    %s73 = sphi 0, %s71
    %s74 = sphi 0, %s73
    %s88 = sphi 0, %s74
    %s92 = sphi 0, %s92
    %s94 = sphi 0, %s92
    %s95 = sphi 0, %s94
    %s109 = sphi 0, %s95
    %s113 = sphi 0, %s113
    %s115 = sphi 0, %s113
    %s116 = sphi 0, %s115
    %s130 = sphi 0, %s116
    %s134 = sphi 0, %s134
    %s136 = sphi 0, %s134
    %s137 = sphi 0, %s136
    %s151 = sphi 0, %s137
    %s155 = sphi 0, %s155
    %s157 = sphi 0, %s155
    %s158 = sphi 0, %s157
    %s172 = sphi 0, %s158
    %s176 = sphi 0, %s176
    %s178 = sphi 0, %s176
    %s179 = sphi 0, %s178
    %s193 = sphi 0, %s179
    %s197 = sphi 0, %s197
    %s199 = sphi 0, %s197
    %s200 = sphi 0, %s199
    %s214 = sphi 0, %s200
    %s218 = sphi 0, %s218
    %s220 = sphi 0, %s218
    %s221 = sphi 0, %s220
    %s235 = sphi 0, %s221
    %s241 = sphi 0, %s243
    %s244 = sphi 0, %s241
    %s245 = sphi 0, %s244
    %s261 = sphi 0, %s245
  $region4: #{decoder_forward.1} parent=0 // loop_header_branch
    %19 = sbr.rel (%p17) target = $region8
  $region5: #{decoder_forward.1} parent=0 // loop_body
    %s21 = ssub.s32 %s16, 1
    %s22 = ssub.s32 %s16, 2
    %s23 = sadd.s32 %s16, 1
    %s24 = ssub.s32 %s16, %s23
    %p25 = scmp.eq.s32.totalorder %s24, 0
    %s27 = sadd.s32 %s26, 1
    %s28 = scalar_select %p25, %s26, %s27
    %p31 = pneg %p25
    %p32 = scmp.eq.s32.totalorder %s16, 1
    %p33 = por %p31, %p32
    %p34 = scmp.ne.s32.totalorder %s26, %s29
    %p35 = scmp.eq.s32.totalorder %s16, 0
    %p36 = por %p34, %p35
    %p37 = scmp.ne.s32.totalorder %s26, %s29
    %p38 = scmp.eq.s32.totalorder %s21, 1
    %p39 = por %p37, %p38
    %p40 = scmp.ne.s32.totalorder %s29, %s30
    %p41 = scmp.eq.s32.totalorder %s21, 0
    %p42 = por %p40, %p41
    %p43 = scmp.ne.s32.totalorder %s29, %s30
    %p44 = scmp.eq.s32.totalorder %s22, 1
    %p45 = por %p43, %p44
    %p47 = scmp.ne.s32.totalorder %s30, %s46
    %p48 = scmp.eq.s32.totalorder %s22, 0
    %p49 = por %p47, %p48
    %s51 = sadd.s32 %s50, 1
    %p54 = scmp.eq.s32.totalorder %s16, 1
    %p55 = scmp.ne.s32.totalorder %s50, %s52
    %p56 = scmp.eq.s32.totalorder %s16, 0
    %p57 = por %p55, %p56
    %p58 = scmp.ne.s32.totalorder %s50, %s52
    %p59 = scmp.eq.s32.totalorder %s21, 1
    %p60 = por %p58, %p59
    %p61 = scmp.ne.s32.totalorder %s52, %s53
    %p62 = scmp.eq.s32.totalorder %s21, 0
    %p63 = por %p61, %p62
    %p64 = scmp.ne.s32.totalorder %s52, %s53
    %p65 = scmp.eq.s32.totalorder %s22, 1
    %p66 = por %p64, %p65
    %p68 = scmp.ne.s32.totalorder %s53, %s67
    %p69 = scmp.eq.s32.totalorder %s22, 0
    %p70 = por %p68, %p69
    %s72 = sadd.s32 %s71, 1
    %p75 = scmp.eq.s32.totalorder %s16, 1
    %p76 = scmp.ne.s32.totalorder %s71, %s73
    %p77 = scmp.eq.s32.totalorder %s16, 0
    %p78 = por %p76, %p77
    %p79 = scmp.ne.s32.totalorder %s71, %s73
    %p80 = scmp.eq.s32.totalorder %s21, 1
    %p81 = por %p79, %p80
    %p82 = scmp.ne.s32.totalorder %s73, %s74
    %p83 = scmp.eq.s32.totalorder %s21, 0
    %p84 = por %p82, %p83
    %p85 = scmp.ne.s32.totalorder %s73, %s74
    %p86 = scmp.eq.s32.totalorder %s22, 1
    %p87 = por %p85, %p86
    %p89 = scmp.ne.s32.totalorder %s74, %s88
    %p90 = scmp.eq.s32.totalorder %s22, 0
    %p91 = por %p89, %p90
    %s93 = sadd.s32 %s92, 1
    %p96 = scmp.eq.s32.totalorder %s16, 1
    %p97 = scmp.ne.s32.totalorder %s92, %s94
    %p98 = scmp.eq.s32.totalorder %s16, 0
    %p99 = por %p97, %p98
    %p100 = scmp.ne.s32.totalorder %s92, %s94
    %p101 = scmp.eq.s32.totalorder %s21, 1
    %p102 = por %p100, %p101
    %p103 = scmp.ne.s32.totalorder %s94, %s95
    %p104 = scmp.eq.s32.totalorder %s21, 0
    %p105 = por %p103, %p104
    %p106 = scmp.ne.s32.totalorder %s94, %s95
    %p107 = scmp.eq.s32.totalorder %s22, 1
    %p108 = por %p106, %p107
    %p110 = scmp.ne.s32.totalorder %s95, %s109
    %p111 = scmp.eq.s32.totalorder %s22, 0
    %p112 = por %p110, %p111
    %s114 = sadd.s32 %s113, 1
    %p117 = scmp.eq.s32.totalorder %s16, 1
    %p118 = scmp.ne.s32.totalorder %s113, %s115
    %p119 = scmp.eq.s32.totalorder %s16, 0
    %p120 = por %p118, %p119
    %p121 = scmp.ne.s32.totalorder %s113, %s115
    %p122 = scmp.eq.s32.totalorder %s21, 1
    %p123 = por %p121, %p122
    %p124 = scmp.ne.s32.totalorder %s115, %s116
    %p125 = scmp.eq.s32.totalorder %s21, 0
    %p126 = por %p124, %p125
    %p127 = scmp.ne.s32.totalorder %s115, %s116
    %p128 = scmp.eq.s32.totalorder %s22, 1
    %p129 = por %p127, %p128
    %p131 = scmp.ne.s32.totalorder %s116, %s130
    %p132 = scmp.eq.s32.totalorder %s22, 0
    %p133 = por %p131, %p132
    %s135 = sadd.s32 %s134, 1
    %p138 = scmp.eq.s32.totalorder %s16, 1
    %p139 = scmp.ne.s32.totalorder %s134, %s136
    %p140 = scmp.eq.s32.totalorder %s16, 0
    %p141 = por %p139, %p140
    %p142 = scmp.ne.s32.totalorder %s134, %s136
    %p143 = scmp.eq.s32.totalorder %s21, 1
    %p144 = por %p142, %p143
    %p145 = scmp.ne.s32.totalorder %s136, %s137
    %p146 = scmp.eq.s32.totalorder %s21, 0
    %p147 = por %p145, %p146
    %p148 = scmp.ne.s32.totalorder %s136, %s137
    %p149 = scmp.eq.s32.totalorder %s22, 1
    %p150 = por %p148, %p149
    %p152 = scmp.ne.s32.totalorder %s137, %s151
    %p153 = scmp.eq.s32.totalorder %s22, 0
    %p154 = por %p152, %p153
    %s156 = sadd.s32 %s155, 1
    %p159 = scmp.eq.s32.totalorder %s16, 1
    %p160 = scmp.ne.s32.totalorder %s155, %s157
    %p161 = scmp.eq.s32.totalorder %s16, 0
    %p162 = por %p160, %p161
    %p163 = scmp.ne.s32.totalorder %s155, %s157
    %p164 = scmp.eq.s32.totalorder %s21, 1
    %p165 = por %p163, %p164
    %p166 = scmp.ne.s32.totalorder %s157, %s158
    %p167 = scmp.eq.s32.totalorder %s21, 0
    %p168 = por %p166, %p167
    %p169 = scmp.ne.s32.totalorder %s157, %s158
    %p170 = scmp.eq.s32.totalorder %s22, 1
    %p171 = por %p169, %p170
    %p173 = scmp.ne.s32.totalorder %s158, %s172
    %p174 = scmp.eq.s32.totalorder %s22, 0
    %p175 = por %p173, %p174
    %s177 = sadd.s32 %s176, 1
    %p180 = scmp.eq.s32.totalorder %s16, 1
    %p181 = scmp.ne.s32.totalorder %s176, %s178
    %p182 = scmp.eq.s32.totalorder %s16, 0
    %p183 = por %p181, %p182
    %p184 = scmp.ne.s32.totalorder %s176, %s178
    %p185 = scmp.eq.s32.totalorder %s21, 1
    %p186 = por %p184, %p185
    %p187 = scmp.ne.s32.totalorder %s178, %s179
    %p188 = scmp.eq.s32.totalorder %s21, 0
    %p189 = por %p187, %p188
    %p190 = scmp.ne.s32.totalorder %s178, %s179
    %p191 = scmp.eq.s32.totalorder %s22, 1
    %p192 = por %p190, %p191
    %p194 = scmp.ne.s32.totalorder %s179, %s193
    %p195 = scmp.eq.s32.totalorder %s22, 0
    %p196 = por %p194, %p195
    %s198 = sadd.s32 %s197, 1
    %p201 = scmp.eq.s32.totalorder %s16, 1
    %p202 = scmp.ne.s32.totalorder %s197, %s199
    %p203 = scmp.eq.s32.totalorder %s16, 0
    %p204 = por %p202, %p203
    %p205 = scmp.ne.s32.totalorder %s197, %s199
    %p206 = scmp.eq.s32.totalorder %s21, 1
    %p207 = por %p205, %p206
    %p208 = scmp.ne.s32.totalorder %s199, %s200
    %p209 = scmp.eq.s32.totalorder %s21, 0
    %p210 = por %p208, %p209
    %p211 = scmp.ne.s32.totalorder %s199, %s200
    %p212 = scmp.eq.s32.totalorder %s22, 1
    %p213 = por %p211, %p212
    %p215 = scmp.ne.s32.totalorder %s200, %s214
    %p216 = scmp.eq.s32.totalorder %s22, 0
    %p217 = por %p215, %p216
    %s219 = sadd.s32 %s218, 1
    %p222 = scmp.eq.s32.totalorder %s16, 1
    %p223 = scmp.ne.s32.totalorder %s218, %s220
    %p224 = scmp.eq.s32.totalorder %s16, 0
    %p225 = por %p223, %p224
    %p226 = scmp.ne.s32.totalorder %s218, %s220
    %p227 = scmp.eq.s32.totalorder %s21, 1
    %p228 = por %p226, %p227
    %p229 = scmp.ne.s32.totalorder %s220, %s221
    %p230 = scmp.eq.s32.totalorder %s21, 0
    %p231 = por %p229, %p230
    %p232 = scmp.ne.s32.totalorder %s220, %s221
    %p233 = scmp.eq.s32.totalorder %s22, 1
    %p234 = por %p232, %p233
    %p236 = scmp.ne.s32.totalorder %s221, %s235
    %p237 = scmp.eq.s32.totalorder %s22, 0
    %p238 = por %p236, %p237
    %s239 = ssub.s32 %s16, %s23
    %p240 = scmp.eq.s32.totalorder %s239, 0
    %s242 = sadd.s32 %s241, 1
    %s243 = scalar_select %p240, %s241, %s242
    %p246 = pneg %p240
    %p247 = scmp.eq.s32.totalorder %s16, 1
    %p248 = por %p246, %p247
    %p249 = scmp.ne.s32.totalorder %s241, %s244
    %p250 = scmp.eq.s32.totalorder %s16, 0
    %p251 = por %p249, %p250
    %p252 = scmp.ne.s32.totalorder %s241, %s244
    %p253 = scmp.eq.s32.totalorder %s21, 1
    %p254 = por %p252, %p253
    %p255 = scmp.ne.s32.totalorder %s244, %s245
    %p256 = scmp.eq.s32.totalorder %s21, 0
    %p257 = por %p255, %p256
    %p258 = scmp.ne.s32.totalorder %s244, %s245
    %p259 = scmp.eq.s32.totalorder %s22, 1
    %p260 = por %p258, %p259
    %p262 = scmp.ne.s32.totalorder %s245, %s261
    %p263 = scmp.eq.s32.totalorder %s22, 0
    %p264 = por %p262, %p263
    %p265 = scmp.le.s32.totalorder 1, %s16
    %p266 = scmp.lt.s32.totalorder %s16, 3
    %p267 = pnand %p265, %p266
    %p268 = pneg %p267
    // Predicated region
    $region9: #{decoder_forward.1} parent=5 // pred_check
      _
    $region10: #{decoder_forward.1} parent=5 // pred_check_branch
      %270 = sbr.rel (%p267) target = $region12
    $region11: #{decoder_forward.1} parent=5 // pred_region
      %s271 = ssub.s32 %s16, 1
      // Predicated region
      $region13: #{decoder_forward.1} parent=11 // pred_check
        %p272 = pneg %p63
      $region14: #{decoder_forward.1} parent=11 // pred_check_branch
        %274 = sbr.rel (%p272) target = $region16
      $region15: #{decoder_forward.1} parent=11 // pred_region
        _
      $region16: #{decoder_forward.1} parent=11 // pred_fallthru
        _
      // Predicated region
      $region17: #{decoder_forward.1} parent=11 // pred_check
        %p275 = pneg %p84
      $region18: #{decoder_forward.1} parent=11 // pred_check_branch
        %277 = sbr.rel (%p275) target = $region20
      $region19: #{decoder_forward.1} parent=11 // pred_region
        _
      $region20: #{decoder_forward.1} parent=11 // pred_fallthru
        _
      // Predicated region
      $region21: #{decoder_forward.1} parent=11 // pred_check
        %p278 = pneg %p105
      $region22: #{decoder_forward.1} parent=11 // pred_check_branch
        %280 = sbr.rel (%p278) target = $region24
      $region23: #{decoder_forward.1} parent=11 // pred_region
        _
      $region24: #{decoder_forward.1} parent=11 // pred_fallthru
        _
      // Predicated region
      $region25: #{decoder_forward.1} parent=11 // pred_check
        %p281 = pneg %p126
      $region26: #{decoder_forward.1} parent=11 // pred_check_branch
        %283 = sbr.rel (%p281) target = $region28
      $region27: #{decoder_forward.1} parent=11 // pred_region
        _
      $region28: #{decoder_forward.1} parent=11 // pred_fallthru
        _
      // Predicated region
      $region29: #{decoder_forward.1} parent=11 // pred_check
        %p284 = pneg %p147
      $region30: #{decoder_forward.1} parent=11 // pred_check_branch
        %286 = sbr.rel (%p284) target = $region32
      $region31: #{decoder_forward.1} parent=11 // pred_region
        _
      $region32: #{decoder_forward.1} parent=11 // pred_fallthru
        _
      // Predicated region
      $region33: #{decoder_forward.1} parent=11 // pred_check
        %p287 = pneg %p168
      $region34: #{decoder_forward.1} parent=11 // pred_check_branch
        %289 = sbr.rel (%p287) target = $region36
      $region35: #{decoder_forward.1} parent=11 // pred_region
        _
      $region36: #{decoder_forward.1} parent=11 // pred_fallthru
        _
      // Predicated region
      $region37: #{decoder_forward.1} parent=11 // pred_check
        %p290 = pneg %p189
      $region38: #{decoder_forward.1} parent=11 // pred_check_branch
        %292 = sbr.rel (%p290) target = $region40
      $region39: #{decoder_forward.1} parent=11 // pred_region
        _
      $region40: #{decoder_forward.1} parent=11 // pred_fallthru
        _
      // Predicated region
      $region41: #{decoder_forward.1} parent=11 // pred_check
        %p293 = pneg %p210
      $region42: #{decoder_forward.1} parent=11 // pred_check_branch
        %295 = sbr.rel (%p293) target = $region44
      $region43: #{decoder_forward.1} parent=11 // pred_region
        _
      $region44: #{decoder_forward.1} parent=11 // pred_fallthru
        _
      // Predicated region
      $region45: #{decoder_forward.1} parent=11 // pred_check
        %p296 = pneg %p231
      $region46: #{decoder_forward.1} parent=11 // pred_check_branch
        %298 = sbr.rel (%p296) target = $region48
      $region47: #{decoder_forward.1} parent=11 // pred_region
        _
      $region48: #{decoder_forward.1} parent=11 // pred_fallthru
        _
    $region12: #{decoder_forward.1} parent=5 // pred_fallthru
      _
    %p299 = scmp.lt.s32.totalorder %s16, 2
    // Predicated region
    $region49: #{decoder_forward.1} parent=5 // pred_check
      %p300 = pneg %p299
    $region50: #{decoder_forward.1} parent=5 // pred_check_branch
      %302 = sbr.rel (%p300) target = $region52
    $region51: #{decoder_forward.1} parent=5 // pred_region
      // Predicated region
      $region53: #{decoder_forward.1} parent=51 // pred_check
        %p303 = pneg %p36
      $region54: #{decoder_forward.1} parent=51 // pred_check_branch
        %305 = sbr.rel (%p303) target = $region56
      $region55: #{decoder_forward.1} parent=51 // pred_region
        %p306 = scmp.lt.s32.totalorder %s16, 1
        %s307 = scalar_select %p306, %s16, 1
        %s308 = smul.addr %s307, 4
        %s309 = smul.addr %s308, 8
        %s310 = scalar_lea.vmem %s0, %s309
      $region56: #{decoder_forward.1} parent=51 // pred_fallthru
        _
    $region52: #{decoder_forward.1} parent=5 // pred_fallthru
      _
    %p311 = scmp.le.s32.totalorder 1, %s16
    %p312 = scmp.lt.s32.totalorder %s16, 3
    %p313 = pnand %p311, %p312
    %p314 = pneg %p313
    // Predicated region
    $region57: #{decoder_forward.1} parent=5 // pred_check
      _
    $region58: #{decoder_forward.1} parent=5 // pred_check_branch
      %316 = sbr.rel (%p313) target = $region60
    $region59: #{decoder_forward.1} parent=5 // pred_region
      %s317 = ssub.s32 %s16, 1
      %p318 = scmp.lt.s32.totalorder %s21, 1
      %s319 = scalar_select %p318, %s21, 1
      %s320 = smul.addr %s319, 4
      %s321 = smul.addr %s320, 8
      %s322 = scalar_lea.vmem %s0, %s321
      %p323 = pneg %p42
      %p324 = pneg %p39
      %p325 = pneg %p63
      %p326 = pneg %p60
      %p327 = pneg %p84
      %p328 = pneg %p81
      %p329 = pneg %p105
      %p330 = pneg %p102
      %p331 = pneg %p126
      %p332 = pneg %p123
      %p333 = pneg %p147
      %p334 = pneg %p144
      %p335 = pneg %p168
      %p336 = pneg %p165
      %p337 = pneg %p189
      %p338 = pneg %p186
      %p339 = pneg %p210
      %p340 = pneg %p207
      %p341 = pneg %p231
      %p342 = pneg %p228
      %p343 = pneg %p257
      %p344 = pneg %p254
      %p345 = scmp.lt.s32.totalorder %s21, 1
      %s346 = scalar_select %p345, %s21, 1
      %s347 = smul.addr %s346, 12
      %s348 = smul.addr %s347, 8
      %s349 = scalar_lea.vmem %s10, %s348
      %p350 = scmp.lt.s32.totalorder %s21, 1
      %s351 = scalar_select %p350, %s21, 1
      %s352 = smul.addr %s351, 4
      %s353 = smul.addr %s352, 8
      %s354 = scalar_lea.vmem %s0, %s353
      %p355 = scmp.lt.s32.totalorder %s21, 1
      %s356 = scalar_select %p355, %s21, 1
      %s357 = smul.addr %s356, 12
      %s358 = smul.addr %s357, 8
      %s359 = scalar_lea.vmem %s10, %s358
      %v361 = vld [vmem:[%s1] sm:$0xff]
      %v362 = vld [vmem:[%s1 + $0x8] sm:$0xff]
      %v363 = vld [vmem:[%s1 + $0x10] sm:$0x1]
      %v364 = vld [vmem:[%s1 + $0x18] sm:$0x1]
      %v365 = vld [vmem:[%s354] sm:$0xff]
      %v366 = vld [vmem:[%s354 + $0x8] sm:$0xff]
      %v367 = vld [vmem:[%s354 + $0x10] sm:$0xff]
      %v368 = vld [vmem:[%s354 + $0x18] sm:$0xff]
      %v369 = vld [vmem:[%s2] sm:$0xff]
      %v370 = vld [vmem:[%s2 + $0x8] sm:$0xff]
      %v371 = vld [vmem:[%s2 + $0x10] sm:$0xff]
      %v372 = vld [vmem:[%s2 + $0x18] sm:$0xff]
      %373 = vrot.lane.b32.xlu0 %v365, 17
      %v374 = vpop.permute.xlu0 %373
      %375 = vrot.lane.b32.xlu0 %v367, 17
      %v376 = vpop.permute.xlu0 %375
      %377 = vrot.lane.b32.xlu0 %v366, 17
      %v378 = vpop.permute.xlu0 %377
      %379 = vrot.lane.b32.xlu0 %v368, 17
      %v380 = vpop.permute.xlu0 %379
      %v381 = vlaneseq
      %v382 = vand.u32 %v381, 127
      %vm383 = vcmp.lt.s32.totalorder %v382, 17
      %v384 = vsel %vm383, %v374, %v378
      %v385 = vsel %vm383, %v376, %v380
      %v386 = vsel %vm383, %v378, %v374
      %v387 = vsel %vm383, %v380, %v376
      %v388 = vlaneseq
      %v389 = vshrl.u32 %v388, 7
      %v390 = vsub.s32 0, %v389
      %v391 = vrot.slane %v361, %v390
      %v392 = vlaneseq
      %v393 = vshrl.u32 %v392, 7
      %v394 = vsub.s32 0, %v393
      %v395 = vrot.slane %v362, %v394
      %v396 = vmul.f32 %v386, %v391
      %v397 = vmul.f32 %v384, %v395
      %v398 = vmul.f32 %v387, %v391
      %v399 = vmul.f32 %v385, %v395
      %v400 = vpack.c.bf16 %v398, %v396
      %v401 = vpack.c.bf16 %v399, %v397
      %402 = vrot.lane.b32.xlu0 %v365, 16
      %v403 = vpop.permute.xlu0 %402
      %404 = vrot.lane.b32.xlu0 %v367, 16
      %v405 = vpop.permute.xlu0 %404
      %406 = vrot.lane.b32.xlu0 %v366, 16
      %v407 = vpop.permute.xlu0 %406
      %408 = vrot.lane.b32.xlu0 %v368, 16
      %v409 = vpop.permute.xlu0 %408
      %vm410 = vcmp.lt.s32.totalorder %v382, 16
      %v411 = vsel %vm410, %v403, %v407
      %v412 = vsel %vm410, %v405, %v409
      %v413 = vsel %vm410, %v407, %v403
      %v414 = vsel %vm410, %v409, %v405
      %v415 = vlaneseq
      %v416 = vshrl.u32 %v415, 7
      %v417 = vsub.s32 1, %v416
      %v418 = vrot.slane %v361, %v417
      %v419 = vlaneseq
      %v420 = vshrl.u32 %v419, 7
      %v421 = vsub.s32 1, %v420
      %v422 = vrot.slane %v362, %v421
      %v423 = vmul.f32 %v413, %v418
      %v424 = vmul.f32 %v411, %v422
      %v425 = vmul.f32 %v414, %v418
      %v426 = vmul.f32 %v412, %v422
      %v427 = vpack.c.bf16 %v425, %v423
      %v428 = vpack.c.bf16 %v426, %v424
      %429 = vrot.lane.b32.xlu0 %v365, 15
      %v430 = vpop.permute.xlu0 %429
      %431 = vrot.lane.b32.xlu0 %v367, 15
      %v432 = vpop.permute.xlu0 %431
      %433 = vrot.lane.b32.xlu0 %v366, 15
      %v434 = vpop.permute.xlu0 %433
      %435 = vrot.lane.b32.xlu0 %v368, 15
      %v436 = vpop.permute.xlu0 %435
      %vm437 = vcmp.lt.s32.totalorder %v382, 15
      %v438 = vsel %vm437, %v430, %v434
      %v439 = vsel %vm437, %v432, %v436
      %v440 = vsel %vm437, %v434, %v430
      %v441 = vsel %vm437, %v436, %v432
      %v442 = vlaneseq
      %v443 = vshrl.u32 %v442, 7
      %v444 = vsub.s32 2, %v443
      %v445 = vrot.slane %v361, %v444
      %v446 = vlaneseq
      %v447 = vshrl.u32 %v446, 7
      %v448 = vsub.s32 2, %v447
      %v449 = vrot.slane %v362, %v448
      %v450 = vmul.f32 %v440, %v445
      %v451 = vmul.f32 %v438, %v449
      %v452 = vmul.f32 %v441, %v445
      %v453 = vmul.f32 %v439, %v449
      %v454 = vpack.c.bf16 %v452, %v450
      %v455 = vpack.c.bf16 %v453, %v451
      %456 = vrot.lane.b32.xlu0 %v365, 1
      %v457 = vpop.permute.xlu0 %456
      %458 = vrot.lane.b32.xlu0 %v367, 1
      %v459 = vpop.permute.xlu0 %458
      %460 = vrot.lane.b32.xlu0 %v366, 1
      %v461 = vpop.permute.xlu0 %460
      %462 = vrot.lane.b32.xlu0 %v368, 1
      %v463 = vpop.permute.xlu0 %462
      %vm464 = vcmp.lt.s32.totalorder %v382, 1
      %v465 = vsel %vm464, %v457, %v461
      %v466 = vsel %vm464, %v459, %v463
      %v467 = vsel %vm464, %v461, %v457
      %v468 = vsel %vm464, %v463, %v459
      %v469 = vlaneseq
      %v470 = vshrl.u32 %v469, 7
      %v471 = vsub.s32 3, %v470
      %v472 = vrot.slane %v361, %v471
      %v473 = vlaneseq
      %v474 = vshrl.u32 %v473, 7
      %v475 = vsub.s32 3, %v474
      %v476 = vrot.slane %v362, %v475
      %v477 = vmul.f32 %v467, %v472
      %v478 = vmul.f32 %v465, %v476
      %v479 = vmul.f32 %v468, %v472
      %v480 = vmul.f32 %v466, %v476
      %v481 = vpack.c.bf16 %v479, %v477
      %v482 = vpack.c.bf16 %v480, %v478
      %v483 = vlaneseq
      %v484 = vshrl.u32 %v483, 7
      %v485 = vsub.s32 4, %v484
      %v486 = vrot.slane %v361, %v485
      %v487 = vlaneseq
      %v488 = vshrl.u32 %v487, 7
      %v489 = vsub.s32 4, %v488
      %v490 = vrot.slane %v362, %v489
      %v491 = vmul.f32 %v365, %v486
      %v492 = vmul.f32 %v366, %v490
      %v493 = vmul.f32 %v367, %v486
      %v494 = vmul.f32 %v368, %v490
      %v495 = vpack.c.bf16 %v493, %v491
      %v496 = vpack.c.bf16 %v494, %v492
      %497 = vrot.lane.b32.xlu0 %v365, 127
      %v498 = vpop.permute.xlu0 %497
      %499 = vrot.lane.b32.xlu0 %v367, 127
      %v500 = vpop.permute.xlu0 %499
      %501 = vrot.lane.b32.xlu0 %v366, 127
      %v502 = vpop.permute.xlu0 %501
      %503 = vrot.lane.b32.xlu0 %v368, 127
      %v504 = vpop.permute.xlu0 %503
      %vm505 = vcmp.lt.s32.totalorder %v382, 127
      %v506 = vsel %vm505, %v498, %v502
      %v507 = vsel %vm505, %v500, %v504
      %v508 = vsel %vm505, %v502, %v498
      %v509 = vsel %vm505, %v504, %v500
      %v510 = vlaneseq
      %v511 = vshrl.u32 %v510, 7
      %v512 = vsub.s32 5, %v511
      %v513 = vrot.slane %v361, %v512
      %v514 = vlaneseq
      %v515 = vshrl.u32 %v514, 7
      %v516 = vsub.s32 5, %v515
      %v517 = vrot.slane %v362, %v516
      %v518 = vmul.f32 %v506, %v513
      %v519 = vmul.f32 %v508, %v517
      %v520 = vmul.f32 %v507, %v513
      %v521 = vmul.f32 %v509, %v517
      %v522 = vpack.c.bf16 %v520, %v518
      %v523 = vpack.c.bf16 %v521, %v519
      %524 = vrot.lane.b32.xlu0 %v365, 113
      %v525 = vpop.permute.xlu0 %524
      %526 = vrot.lane.b32.xlu0 %v367, 113
      %v527 = vpop.permute.xlu0 %526
      %528 = vrot.lane.b32.xlu0 %v366, 113
      %v529 = vpop.permute.xlu0 %528
      %530 = vrot.lane.b32.xlu0 %v368, 113
      %v531 = vpop.permute.xlu0 %530
      %vm532 = vcmp.lt.s32.totalorder %v382, 113
      %v533 = vsel %vm532, %v525, %v529
      %v534 = vsel %vm532, %v527, %v531
      %v535 = vsel %vm532, %v529, %v525
      %v536 = vsel %vm532, %v531, %v527
      %v537 = vlaneseq
      %v538 = vshrl.u32 %v537, 7
      %v539 = vsub.s32 6, %v538
      %v540 = vrot.slane %v361, %v539
      %v541 = vlaneseq
      %v542 = vshrl.u32 %v541, 7
      %v543 = vsub.s32 6, %v542
      %v544 = vrot.slane %v362, %v543
      %v545 = vmul.f32 %v533, %v540
      %v546 = vmul.f32 %v535, %v544
      %v547 = vmul.f32 %v534, %v540
      %v548 = vmul.f32 %v536, %v544
      %v549 = vpack.c.bf16 %v547, %v545
      %v550 = vpack.c.bf16 %v548, %v546
      %551 = vrot.lane.b32.xlu0 %v365, 112
      %v552 = vpop.permute.xlu0 %551
      %553 = vrot.lane.b32.xlu0 %v367, 112
      %v554 = vpop.permute.xlu0 %553
      %555 = vrot.lane.b32.xlu0 %v366, 112
      %v556 = vpop.permute.xlu0 %555
      %557 = vrot.lane.b32.xlu0 %v368, 112
      %v558 = vpop.permute.xlu0 %557
      %vm559 = vcmp.lt.s32.totalorder %v382, 112
      %v560 = vsel %vm559, %v552, %v556
      %v561 = vsel %vm559, %v554, %v558
      %v562 = vsel %vm559, %v556, %v552
      %v563 = vsel %vm559, %v558, %v554
      %v564 = vlaneseq
      %v565 = vshrl.u32 %v564, 7
      %v566 = vsub.s32 7, %v565
      %v567 = vrot.slane %v361, %v566
      %v568 = vlaneseq
      %v569 = vshrl.u32 %v568, 7
      %v570 = vsub.s32 7, %v569
      %v571 = vrot.slane %v362, %v570
      %v572 = vmul.f32 %v560, %v567
      %v573 = vmul.f32 %v562, %v571
      %v574 = vmul.f32 %v561, %v567
      %v575 = vmul.f32 %v563, %v571
      %v576 = vpack.c.bf16 %v574, %v572
      %v577 = vpack.c.bf16 %v575, %v573
      %578 = vrot.lane.b32.xlu0 %v365, 111
      %v579 = vpop.permute.xlu0 %578
      %580 = vrot.lane.b32.xlu0 %v367, 111
      %v581 = vpop.permute.xlu0 %580
      %582 = vrot.lane.b32.xlu0 %v366, 111
      %v583 = vpop.permute.xlu0 %582
      %584 = vrot.lane.b32.xlu0 %v368, 111
      %v585 = vpop.permute.xlu0 %584
      %vm586 = vcmp.lt.s32.totalorder %v382, 111
      %v587 = vsel %vm586, %v579, %v583
      %v588 = vsel %vm586, %v581, %v585
      %v589 = vsel %vm586, %v583, %v579
      %v590 = vsel %vm586, %v585, %v581
      %v591 = vlaneseq
      %v592 = vshrl.u32 %v591, 7
      %v593 = vsub.s32 0, %v592
      %v594 = vrot.slane %v363, %v593
      %v595 = vlaneseq
      %v596 = vshrl.u32 %v595, 7
      %v597 = vsub.s32 0, %v596
      %v598 = vrot.slane %v364, %v597
      %v599 = vmul.f32 %v587, %v594
      %v600 = vmul.f32 %v589, %v598
      %v601 = vmul.f32 %v588, %v594
      %v602 = vmul.f32 %v590, %v598
      %v603 = vpack.c.bf16 %v601, %v599
      %v604 = vpack.c.bf16 %v602, %v600
      %v605 = vld [vmem:[%s3] sm:$0xff]
      %v606 = vld [vmem:[%s3 + $0x8] sm:$0xff]
      %v607 = vld [vmem:[%s3 + $0x10] sm:$0xff]
      %v608 = vld [vmem:[%s3 + $0x18] sm:$0xff]
      %610 = vset.pattern.permute.xlu0 0
      %611 = vperm.xlu0 %610, %v605
      %v612 = vpop.permute.xlu0 %611
      %615 = vset.pattern.permute.xlu0 0
      %616 = vperm.xlu0 %615, %v606
      %v617 = vpop.permute.xlu0 %616
      %620 = vset.pattern.permute.xlu0 0
      %621 = vperm.xlu0 %620, %v607
      %v622 = vpop.permute.xlu0 %621
      %625 = vset.pattern.permute.xlu0 0
      %626 = vperm.xlu0 %625, %v608
      %v627 = vpop.permute.xlu0 %626
      %v633 = vunpack.c.l.b16 %v369
      %v634 = vunpack.c.h.b16 %v369
      %v635 = vunpack.c.l.b16 %v370
      %v636 = vunpack.c.h.b16 %v370
      %v637 = vunpack.c.l.b16 %v371
      %v638 = vunpack.c.h.b16 %v371
      %v639 = vunpack.c.l.b16 %v372
      %v640 = vunpack.c.h.b16 %v372
      %v641 = vpack.c.b16 %v635, %v633
      %v642 = vpack.c.b16 %v636, %v634
      %v643 = vpack.c.b16 %v639, %v637
      %v644 = vpack.c.b16 %v640, %v638
      %vm647 = vcmask 130048
      %v649 = vsel %vm647, %v642, 0
      %v652 = vsel %vm647, %v644, 0
      %654 = vmatprep.subr.bf16.mxu0 %v401
      %655 = vmatpush1.bf16.msra.mxu0 %v400
      %656 = vmatprep.subr.bf16.mxu0 %v428
      %657 = vmatpush1.bf16.msra.mxu0 %v427
      %658 = vmatprep.subr.bf16.mxu0 %v455
      %659 = vmatpush1.bf16.msra.mxu0 %v454
      %660 = vmatprep.subr.bf16.mxu0 %v482
      %661 = vmatpush1.bf16.msra.mxu0 %v481
      %662 = vmatprep.subr.bf16.mxu0 %v496
      %663 = vmatpush1.bf16.msra.mxu0 %v495
      %664 = vmatprep.subr.bf16.mxu0 %v523
      %665 = vmatpush1.bf16.msra.mxu0 %v522
      %666 = vmatprep.subr.bf16.mxu0 %v550
      %667 = vmatpush1.bf16.msra.mxu0 %v549
      %668 = vmatprep.subr.bf16.mxu0 %v577
      %669 = vmatpush1.bf16.msra.mxu0 %v576
      %670 = vmatprep.subr.bf16.mxu0 %v604
      %671 = vmatpush1.bf16.msra.mxu0 %v603
      %672 = vmatprep.subr.bf16.mxu0 0
      %673 = vmatpush1.bf16.msra.mxu0 0
      %674 = vmatprep.subr.bf16.mxu0 0
      %675 = vmatpush1.bf16.msra.mxu0 0
      %676 = vmatprep.subr.bf16.mxu0 0
      %677 = vmatpush1.bf16.msra.mxu0 0
      %678 = vmatprep.subr.bf16.mxu0 0
      %679 = vmatpush1.bf16.msra.mxu0 0
      %680 = vmatprep.subr.bf16.mxu0 0
      %681 = vmatpush1.bf16.msra.mxu0 0
      %682 = vmatprep.subr.bf16.mxu0 0
      %683 = vmatpush1.bf16.msra.mxu0 0
      %684 = vmatprep.subr.bf16.mxu0 0
      %685 = vmatpush1.bf16.msra.mxu0 0
      %686 = vmatprep.mubr.bf16.mxu0 %v649
      %687 = vmatmul.mubr.bf16.gmra.mrb[0].mxu0 %v641
      %v688 = vpop.f32.mrb[0].mxu0
      %v689 = vadd.f32 %v612, %v688
      %v690 = vpop.f32.mrb[0].mxu0
      %v691 = vadd.f32 %v612, %v690
      %v692 = vpop.f32.mrb[0].mxu0
      %v693 = vadd.f32 %v617, %v692
      %v694 = vpop.f32.mrb[0].mxu0
      %v695 = vadd.f32 %v617, %v694
      %696 = vmatprep.mubr.bf16.mxu0 %v652
      %697 = vmatmul.mubr.bf16.gmra.mrb[0].mxu0 %v643
      %v698 = vpop.f32.mrb[0].mxu0
      %v699 = vadd.f32 %v622, %v698
      %v700 = vpop.f32.mrb[0].mxu0
      %v701 = vadd.f32 %v622, %v700
      %v702 = vpop.f32.mrb[0].mxu0
      %v703 = vadd.f32 %v627, %v702
      %v704 = vpop.f32.mrb[0].mxu0
      %v705 = vadd.f32 %v627, %v704
      %706 = vdwg.mxu0
      %v707 = vld [vmem:[%s4] sm:$0xff]
      %v708 = vld [vmem:[%s4 + $0x8] sm:$0xf]
      %v709 = vld [vmem:[%s4 + $0xc] sm:$0xff]
      %v710 = vld [vmem:[%s4 + $0x14] sm:$0xf]
      %v711 = vmax.f32 %v689, 0.0
      %v712 = vmax.f32 %v691, 0.0
      %v713 = vmax.f32 %v693, 0.0
      %v714 = vmax.f32 %v695, 0.0
      %v715 = vmax.f32 %v699, 0.0
      %v716 = vmax.f32 %v701, 0.0
      %v717 = vmax.f32 %v703, 0.0
      %v718 = vmax.f32 %v705, 0.0
      %719 = vrot.lane.b32.xlu0 %v711, 17
      %v720 = vpop.permute.xlu0 %719
      %721 = vrot.lane.b32.xlu0 %v713, 17
      %v722 = vpop.permute.xlu0 %721
      %723 = vrot.lane.b32.xlu0 %v715, 17
      %v724 = vpop.permute.xlu0 %723
      %725 = vrot.lane.b32.xlu0 %v717, 17
      %v726 = vpop.permute.xlu0 %725
      %727 = vrot.lane.b32.xlu0 %v712, 17
      %v728 = vpop.permute.xlu0 %727
      %729 = vrot.lane.b32.xlu0 %v714, 17
      %v730 = vpop.permute.xlu0 %729
      %731 = vrot.lane.b32.xlu0 %v716, 17
      %v732 = vpop.permute.xlu0 %731
      %733 = vrot.lane.b32.xlu0 %v718, 17
      %v734 = vpop.permute.xlu0 %733
      %v735 = vsel %vm383, %v720, %v728
      %v736 = vsel %vm383, %v722, %v730
      %v737 = vsel %vm383, %v724, %v732
      %v738 = vsel %vm383, %v726, %v734
      %v739 = vsel %vm383, %v728, %v720
      %v740 = vsel %vm383, %v730, %v722
      %v741 = vsel %vm383, %v732, %v724
      %v742 = vsel %vm383, %v734, %v726
      %v743 = vmul.f32 %v739, %v391
      %v744 = vmul.f32 %v735, %v395
      %v745 = vmul.f32 %v740, %v391
      %v746 = vmul.f32 %v736, %v395
      %v747 = vmul.f32 %v741, %v391
      %v748 = vmul.f32 %v737, %v395
      %v749 = vmul.f32 %v742, %v391
      %v750 = vmul.f32 %v738, %v395
      %v751 = vpack.c.bf16 %v745, %v743
      %v752 = vpack.c.bf16 %v746, %v744
      %v753 = vpack.c.bf16 %v749, %v747
      %v754 = vpack.c.bf16 %v750, %v748
      %755 = vrot.lane.b32.xlu0 %v711, 16
      %v756 = vpop.permute.xlu0 %755
      %757 = vrot.lane.b32.xlu0 %v713, 16
      %v758 = vpop.permute.xlu0 %757
      %759 = vrot.lane.b32.xlu0 %v715, 16
      %v760 = vpop.permute.xlu0 %759
      %761 = vrot.lane.b32.xlu0 %v717, 16
      %v762 = vpop.permute.xlu0 %761
      %763 = vrot.lane.b32.xlu0 %v712, 16
      %v764 = vpop.permute.xlu0 %763
      %765 = vrot.lane.b32.xlu0 %v714, 16
      %v766 = vpop.permute.xlu0 %765
      %767 = vrot.lane.b32.xlu0 %v716, 16
      %v768 = vpop.permute.xlu0 %767
      %769 = vrot.lane.b32.xlu0 %v718, 16
      %v770 = vpop.permute.xlu0 %769
      %v771 = vsel %vm410, %v756, %v764
      %v772 = vsel %vm410, %v758, %v766
      %v773 = vsel %vm410, %v760, %v768
      %v774 = vsel %vm410, %v762, %v770
      %v775 = vsel %vm410, %v764, %v756
      %v776 = vsel %vm410, %v766, %v758
      %v777 = vsel %vm410, %v768, %v760
      %v778 = vsel %vm410, %v770, %v762
      %v779 = vmul.f32 %v775, %v418
      %v780 = vmul.f32 %v771, %v422
      %v781 = vmul.f32 %v776, %v418
      %v782 = vmul.f32 %v772, %v422
      %v783 = vmul.f32 %v777, %v418
      %v784 = vmul.f32 %v773, %v422
      %v785 = vmul.f32 %v778, %v418
      %v786 = vmul.f32 %v774, %v422
      %v787 = vpack.c.bf16 %v781, %v779
      %v788 = vpack.c.bf16 %v782, %v780
      %v789 = vpack.c.bf16 %v785, %v783
      %v790 = vpack.c.bf16 %v786, %v784
      %791 = vrot.lane.b32.xlu0 %v711, 15
      %v792 = vpop.permute.xlu0 %791
      %793 = vrot.lane.b32.xlu0 %v713, 15
      %v794 = vpop.permute.xlu0 %793
      %795 = vrot.lane.b32.xlu0 %v715, 15
      %v796 = vpop.permute.xlu0 %795
      %797 = vrot.lane.b32.xlu0 %v717, 15
      %v798 = vpop.permute.xlu0 %797
      %799 = vrot.lane.b32.xlu0 %v712, 15
      %v800 = vpop.permute.xlu0 %799
      %801 = vrot.lane.b32.xlu0 %v714, 15
      %v802 = vpop.permute.xlu0 %801
      %803 = vrot.lane.b32.xlu0 %v716, 15
      %v804 = vpop.permute.xlu0 %803
      %805 = vrot.lane.b32.xlu0 %v718, 15
      %v806 = vpop.permute.xlu0 %805
      %v807 = vsel %vm437, %v792, %v800
      %v808 = vsel %vm437, %v794, %v802
      %v809 = vsel %vm437, %v796, %v804
      %v810 = vsel %vm437, %v798, %v806
      %v811 = vsel %vm437, %v800, %v792
      %v812 = vsel %vm437, %v802, %v794
      %v813 = vsel %vm437, %v804, %v796
      %v814 = vsel %vm437, %v806, %v798
      %v815 = vmul.f32 %v811, %v445
      %v816 = vmul.f32 %v807, %v449
      %v817 = vmul.f32 %v812, %v445
      %v818 = vmul.f32 %v808, %v449
      %v819 = vmul.f32 %v813, %v445
      %v820 = vmul.f32 %v809, %v449
      %v821 = vmul.f32 %v814, %v445
      %v822 = vmul.f32 %v810, %v449
      %v823 = vpack.c.bf16 %v817, %v815
      %v824 = vpack.c.bf16 %v818, %v816
      %v825 = vpack.c.bf16 %v821, %v819
      %v826 = vpack.c.bf16 %v822, %v820
      %827 = vrot.lane.b32.xlu0 %v711, 1
      %v828 = vpop.permute.xlu0 %827
      %829 = vrot.lane.b32.xlu0 %v713, 1
      %v830 = vpop.permute.xlu0 %829
      %831 = vrot.lane.b32.xlu0 %v715, 1
      %v832 = vpop.permute.xlu0 %831
      %833 = vrot.lane.b32.xlu0 %v717, 1
      %v834 = vpop.permute.xlu0 %833
      %835 = vrot.lane.b32.xlu0 %v712, 1
      %v836 = vpop.permute.xlu0 %835
      %837 = vrot.lane.b32.xlu0 %v714, 1
      %v838 = vpop.permute.xlu0 %837
      %839 = vrot.lane.b32.xlu0 %v716, 1
      %v840 = vpop.permute.xlu0 %839
      %841 = vrot.lane.b32.xlu0 %v718, 1
      %v842 = vpop.permute.xlu0 %841
      %v843 = vsel %vm464, %v828, %v836
      %v844 = vsel %vm464, %v830, %v838
      %v845 = vsel %vm464, %v832, %v840
      %v846 = vsel %vm464, %v834, %v842
      %v847 = vsel %vm464, %v836, %v828
      %v848 = vsel %vm464, %v838, %v830
      %v849 = vsel %vm464, %v840, %v832
      %v850 = vsel %vm464, %v842, %v834
      %v851 = vmul.f32 %v847, %v472
      %v852 = vmul.f32 %v843, %v476
      %v853 = vmul.f32 %v848, %v472
      %v854 = vmul.f32 %v844, %v476
      %v855 = vmul.f32 %v849, %v472
      %v856 = vmul.f32 %v845, %v476
      %v857 = vmul.f32 %v850, %v472
      %v858 = vmul.f32 %v846, %v476
      %v859 = vpack.c.bf16 %v853, %v851
      %v860 = vpack.c.bf16 %v854, %v852
      %v861 = vpack.c.bf16 %v857, %v855
      %v862 = vpack.c.bf16 %v858, %v856
      %v863 = vmul.f32 %v711, %v486
      %v864 = vmul.f32 %v712, %v490
      %v865 = vmul.f32 %v713, %v486
      %v866 = vmul.f32 %v714, %v490
      %v867 = vmul.f32 %v715, %v486
      %v868 = vmul.f32 %v716, %v490
      %v869 = vmul.f32 %v717, %v486
      %v870 = vmul.f32 %v718, %v490
      %v871 = vpack.c.bf16 %v865, %v863
      %v872 = vpack.c.bf16 %v866, %v864
      %v873 = vpack.c.bf16 %v869, %v867
      %v874 = vpack.c.bf16 %v870, %v868
      %875 = vrot.lane.b32.xlu0 %v711, 127
      %v876 = vpop.permute.xlu0 %875
      %877 = vrot.lane.b32.xlu0 %v713, 127
      %v878 = vpop.permute.xlu0 %877
      %879 = vrot.lane.b32.xlu0 %v715, 127
      %v880 = vpop.permute.xlu0 %879
      %881 = vrot.lane.b32.xlu0 %v717, 127
      %v882 = vpop.permute.xlu0 %881
      %883 = vrot.lane.b32.xlu0 %v712, 127
      %v884 = vpop.permute.xlu0 %883
      %885 = vrot.lane.b32.xlu0 %v714, 127
      %v886 = vpop.permute.xlu0 %885
      %887 = vrot.lane.b32.xlu0 %v716, 127
      %v888 = vpop.permute.xlu0 %887
      %889 = vrot.lane.b32.xlu0 %v718, 127
      %v890 = vpop.permute.xlu0 %889
      %v891 = vsel %vm505, %v876, %v884
      %v892 = vsel %vm505, %v878, %v886
      %v893 = vsel %vm505, %v880, %v888
      %v894 = vsel %vm505, %v882, %v890
      %v895 = vsel %vm505, %v884, %v876
      %v896 = vsel %vm505, %v886, %v878
      %v897 = vsel %vm505, %v888, %v880
      %v898 = vsel %vm505, %v890, %v882
      %v899 = vmul.f32 %v891, %v513
      %v900 = vmul.f32 %v895, %v517
      %v901 = vmul.f32 %v892, %v513
      %v902 = vmul.f32 %v896, %v517
      %v903 = vmul.f32 %v893, %v513
      %v904 = vmul.f32 %v897, %v517
      %v905 = vmul.f32 %v894, %v513
      %v906 = vmul.f32 %v898, %v517
      %v907 = vpack.c.bf16 %v901, %v899
      %v908 = vpack.c.bf16 %v902, %v900
      %v909 = vpack.c.bf16 %v905, %v903
      %v910 = vpack.c.bf16 %v906, %v904
      %911 = vrot.lane.b32.xlu0 %v711, 113
      %v912 = vpop.permute.xlu0 %911
      %913 = vrot.lane.b32.xlu0 %v713, 113
      %v914 = vpop.permute.xlu0 %913
      %915 = vrot.lane.b32.xlu0 %v715, 113
      %v916 = vpop.permute.xlu0 %915
      %917 = vrot.lane.b32.xlu0 %v717, 113
      %v918 = vpop.permute.xlu0 %917
      %919 = vrot.lane.b32.xlu0 %v712, 113
      %v920 = vpop.permute.xlu0 %919
      %921 = vrot.lane.b32.xlu0 %v714, 113
      %v922 = vpop.permute.xlu0 %921
      %923 = vrot.lane.b32.xlu0 %v716, 113
      %v924 = vpop.permute.xlu0 %923
      %925 = vrot.lane.b32.xlu0 %v718, 113
      %v926 = vpop.permute.xlu0 %925
      %v927 = vsel %vm532, %v912, %v920
      %v928 = vsel %vm532, %v914, %v922
      %v929 = vsel %vm532, %v916, %v924
      %v930 = vsel %vm532, %v918, %v926
      %v931 = vsel %vm532, %v920, %v912
      %v932 = vsel %vm532, %v922, %v914
      %v933 = vsel %vm532, %v924, %v916
      %v934 = vsel %vm532, %v926, %v918
      %v935 = vmul.f32 %v927, %v540
      %v936 = vmul.f32 %v931, %v544
      %v937 = vmul.f32 %v928, %v540
      %v938 = vmul.f32 %v932, %v544
      %v939 = vmul.f32 %v929, %v540
      %v940 = vmul.f32 %v933, %v544
      %v941 = vmul.f32 %v930, %v540
      %v942 = vmul.f32 %v934, %v544
      %v943 = vpack.c.bf16 %v937, %v935
      %v944 = vpack.c.bf16 %v938, %v936
      %v945 = vpack.c.bf16 %v941, %v939
      %v946 = vpack.c.bf16 %v942, %v940
      %947 = vrot.lane.b32.xlu0 %v711, 112
      %v948 = vpop.permute.xlu0 %947
      %949 = vrot.lane.b32.xlu0 %v713, 112
      %v950 = vpop.permute.xlu0 %949
      %951 = vrot.lane.b32.xlu0 %v715, 112
      %v952 = vpop.permute.xlu0 %951
      %953 = vrot.lane.b32.xlu0 %v717, 112
      %v954 = vpop.permute.xlu0 %953
      %955 = vrot.lane.b32.xlu0 %v712, 112
      %v956 = vpop.permute.xlu0 %955
      %957 = vrot.lane.b32.xlu0 %v714, 112
      %v958 = vpop.permute.xlu0 %957
      %959 = vrot.lane.b32.xlu0 %v716, 112
      %v960 = vpop.permute.xlu0 %959
      %961 = vrot.lane.b32.xlu0 %v718, 112
      %v962 = vpop.permute.xlu0 %961
      %v963 = vsel %vm559, %v948, %v956
      %v964 = vsel %vm559, %v950, %v958
      %v965 = vsel %vm559, %v952, %v960
      %v966 = vsel %vm559, %v954, %v962
      %v967 = vsel %vm559, %v956, %v948
      %v968 = vsel %vm559, %v958, %v950
      %v969 = vsel %vm559, %v960, %v952
      %v970 = vsel %vm559, %v962, %v954
      %v971 = vmul.f32 %v963, %v567
      %v972 = vmul.f32 %v967, %v571
      %v973 = vmul.f32 %v964, %v567
      %v974 = vmul.f32 %v968, %v571
      %v975 = vmul.f32 %v965, %v567
      %v976 = vmul.f32 %v969, %v571
      %v977 = vmul.f32 %v966, %v567
      %v978 = vmul.f32 %v970, %v571
      %v979 = vpack.c.bf16 %v973, %v971
      %v980 = vpack.c.bf16 %v974, %v972
      %v981 = vpack.c.bf16 %v977, %v975
      %v982 = vpack.c.bf16 %v978, %v976
      %983 = vrot.lane.b32.xlu0 %v711, 111
      %v984 = vpop.permute.xlu0 %983
      %985 = vrot.lane.b32.xlu0 %v713, 111
      %v986 = vpop.permute.xlu0 %985
      %987 = vrot.lane.b32.xlu0 %v715, 111
      %v988 = vpop.permute.xlu0 %987
      %989 = vrot.lane.b32.xlu0 %v717, 111
      %v990 = vpop.permute.xlu0 %989
      %991 = vrot.lane.b32.xlu0 %v712, 111
      %v992 = vpop.permute.xlu0 %991
      %993 = vrot.lane.b32.xlu0 %v714, 111
      %v994 = vpop.permute.xlu0 %993
      %995 = vrot.lane.b32.xlu0 %v716, 111
      %v996 = vpop.permute.xlu0 %995
      %997 = vrot.lane.b32.xlu0 %v718, 111
      %v998 = vpop.permute.xlu0 %997
      %v999 = vsel %vm586, %v984, %v992
      %v1000 = vsel %vm586, %v986, %v994
      %v1001 = vsel %vm586, %v988, %v996
      %v1002 = vsel %vm586, %v990, %v998
      %v1003 = vsel %vm586, %v992, %v984
      %v1004 = vsel %vm586, %v994, %v986
      %v1005 = vsel %vm586, %v996, %v988
      %v1006 = vsel %vm586, %v998, %v990
      %v1007 = vmul.f32 %v999, %v594
      %v1008 = vmul.f32 %v1003, %v598
      %v1009 = vmul.f32 %v1000, %v594
      %v1010 = vmul.f32 %v1004, %v598
      %v1011 = vmul.f32 %v1001, %v594
      %v1012 = vmul.f32 %v1005, %v598
      %v1013 = vmul.f32 %v1002, %v594
      %v1014 = vmul.f32 %v1006, %v598
      %v1015 = vpack.c.bf16 %v1009, %v1007
      %v1016 = vpack.c.bf16 %v1010, %v1008
      %v1017 = vpack.c.bf16 %v1013, %v1011
      %v1018 = vpack.c.bf16 %v1014, %v1012
      %v1023 = vunpack.c.l.b16 %v707
      %v1024 = vunpack.c.h.b16 %v707
      %v1025 = vunpack.c.l.b16 %v708
      %v1026 = vunpack.c.l.b16 %v709
      %v1027 = vunpack.c.h.b16 %v709
      %v1028 = vunpack.c.l.b16 %v710
      %v1029 = vpack.c.b16 %v1026, %v1023
      %v1030 = vpack.c.b16 %v1027, %v1024
      %v1031 = vpack.c.b16 %v1028, %v1025
      %vm1034 = vcmask 261120
      %v1036 = vsel %vm1034, %v1031, 0
      %1038 = vmatprep.subr.bf16.mxu0 %v752
      %1039 = vmatpush1.bf16.msra.mxu0 %v751
      %1040 = vmatprep.subr.bf16.mxu0 %v754
      %1041 = vmatpush1.bf16.msra.mxu0 %v753
      %1042 = vmatprep.subr.bf16.mxu0 %v788
      %1043 = vmatpush1.bf16.msra.mxu0 %v787
      %1044 = vmatprep.subr.bf16.mxu0 %v790
      %1045 = vmatpush1.bf16.msra.mxu0 %v789
      %1046 = vmatprep.subr.bf16.mxu0 %v824
      %1047 = vmatpush1.bf16.msra.mxu0 %v823
      %1048 = vmatprep.subr.bf16.mxu0 %v826
      %1049 = vmatpush1.bf16.msra.mxu0 %v825
      %1050 = vmatprep.subr.bf16.mxu0 %v860
      %1051 = vmatpush1.bf16.msra.mxu0 %v859
      %1052 = vmatprep.subr.bf16.mxu0 %v862
      %1053 = vmatpush1.bf16.msra.mxu0 %v861
      %1054 = vmatprep.subr.bf16.mxu0 %v872
      %1055 = vmatpush1.bf16.msra.mxu0 %v871
      %1056 = vmatprep.subr.bf16.mxu0 %v874
      %1057 = vmatpush1.bf16.msra.mxu0 %v873
      %1058 = vmatprep.subr.bf16.mxu0 %v908
      %1059 = vmatpush1.bf16.msra.mxu0 %v907
      %1060 = vmatprep.subr.bf16.mxu0 %v910
      %1061 = vmatpush1.bf16.msra.mxu0 %v909
      %1062 = vmatprep.subr.bf16.mxu0 %v944
      %1063 = vmatpush1.bf16.msra.mxu0 %v943
      %1064 = vmatprep.subr.bf16.mxu0 %v946
      %1065 = vmatpush1.bf16.msra.mxu0 %v945
      %1066 = vmatprep.subr.bf16.mxu0 %v980
      %1067 = vmatpush1.bf16.msra.mxu0 %v979
      %1068 = vmatprep.subr.bf16.mxu0 %v982
      %1069 = vmatpush1.bf16.msra.mxu0 %v981
      %1070 = vmatprep.mubr.bf16.mxu0 %v1030
      %1071 = vmatmul.mubr.bf16.gmra.mrb[0].mxu0 %v1029
      %v1072 = vpop.f32.mrb[0].mxu0
      %v1073 = vadd.f32 0.0, %v1072
      %v1074 = vpop.f32.mrb[0].mxu0
      %v1075 = vadd.f32 0.0, %v1074
      %v1076 = vpop.f32.mrb[0].mxu0
      %v1077 = vadd.f32 0.0, %v1076
      %v1078 = vpop.f32.mrb[0].mxu0
      %v1079 = vadd.f32 0.0, %v1078
      %1080 = vdwg.mxu0
      %1081 = vmatprep.subr.bf16.mxu0 %v1016
      %1082 = vmatpush1.bf16.msra.mxu0 %v1015
      %1083 = vmatprep.subr.bf16.mxu0 %v1018
      %1084 = vmatpush1.bf16.msra.mxu0 %v1017
      %1085 = vmatprep.subr.bf16.mxu0 0
      %1086 = vmatpush1.bf16.msra.mxu0 0
      %1087 = vmatprep.subr.bf16.mxu0 0
      %1088 = vmatpush1.bf16.msra.mxu0 0
      %1089 = vmatprep.subr.bf16.mxu0 0
      %1090 = vmatpush1.bf16.msra.mxu0 0
      %1091 = vmatprep.subr.bf16.mxu0 0
      %1092 = vmatpush1.bf16.msra.mxu0 0
      %1093 = vmatprep.subr.bf16.mxu0 0
      %1094 = vmatpush1.bf16.msra.mxu0 0
      %1095 = vmatprep.subr.bf16.mxu0 0
      %1096 = vmatpush1.bf16.msra.mxu0 0
      %1097 = vmatprep.subr.bf16.mxu0 0
      %1098 = vmatpush1.bf16.msra.mxu0 0
      %1099 = vmatprep.subr.bf16.mxu0 0
      %1100 = vmatpush1.bf16.msra.mxu0 0
      %1101 = vmatprep.subr.bf16.mxu0 0
      %1102 = vmatpush1.bf16.msra.mxu0 0
      %1103 = vmatprep.subr.bf16.mxu0 0
      %1104 = vmatpush1.bf16.msra.mxu0 0
      %1105 = vmatprep.subr.bf16.mxu0 0
      %1106 = vmatpush1.bf16.msra.mxu0 0
      %1107 = vmatprep.subr.bf16.mxu0 0
      %1108 = vmatpush1.bf16.msra.mxu0 0
      %1109 = vmatprep.subr.bf16.mxu0 0
      %1110 = vmatpush1.bf16.msra.mxu0 0
      %1111 = vmatprep.subr.bf16.mxu0 0
      %1112 = vmatpush1.bf16.msra.mxu0 0
      %1113 = vmatprep.mubr.bf16.mxu0 0
      %1114 = vmatmul.mubr.bf16.gmra.mrb[0].mxu0 %v1036
      %v1115 = vpop.f32.mrb[0].mxu0
      %v1116 = vadd.f32 %v1073, %v1115
      %v1117 = vpop.f32.mrb[0].mxu0
      %v1118 = vadd.f32 %v1075, %v1117
      %v1119 = vpop.f32.mrb[0].mxu0
      %v1120 = vadd.f32 %v1077, %v1119
      %v1121 = vpop.f32.mrb[0].mxu0
      %v1122 = vadd.f32 %v1079, %v1121
      %1123 = vdwg.mxu0
      %v1124 = vmax.f32 %v1116, 0.0
      %v1125 = vmax.f32 %v1118, 0.0
      %v1126 = vmax.f32 %v1120, 0.0
      %v1127 = vmax.f32 %v1122, 0.0
      %v1128 = vld [vmem:[%s5] sm:$0xf]
      %v1129 = vld [vmem:[%s5 + $0x4] sm:$0xf]
      %v1130 = vld [vmem:[%s5 + $0x8] sm:$0xf]
      %v1131 = vld [vmem:[%s5 + $0xc] sm:$0xf]
      %v1132 = vpack.c.bf16 %v1126, %v1124
      %v1133 = vpack.c.bf16 %v1127, %v1125
      %v1138 = vunpack.c.l.b16 %v1128
      %v1139 = vunpack.c.l.b16 %v1129
      %v1140 = vunpack.c.l.b16 %v1130
      %v1141 = vunpack.c.l.b16 %v1131
      %v1142 = vpack.c.b16 %v1139, %v1138
      %v1143 = vpack.c.b16 %v1141, %v1140
      %v1145 = vsel %vm647, %v1142, 0
      %v1148 = vsel %vm647, %v1143, 0
      %1150 = vmatprep.subr.bf16.mxu0 %v1133
      %1151 = vmatpush1.bf16.msra.mxu0 %v1132
      %1152 = vmatprep.subr.bf16.mxu0 0
      %1153 = vmatpush1.bf16.msra.mxu0 0
      %1154 = vmatprep.subr.bf16.mxu0 0
      %1155 = vmatpush1.bf16.msra.mxu0 0
      %1156 = vmatprep.subr.bf16.mxu0 0
      %1157 = vmatpush1.bf16.msra.mxu0 0
      %1158 = vmatprep.subr.bf16.mxu0 0
      %1159 = vmatpush1.bf16.msra.mxu0 0
      %1160 = vmatprep.subr.bf16.mxu0 0
      %1161 = vmatpush1.bf16.msra.mxu0 0
      %1162 = vmatprep.subr.bf16.mxu0 0
      %1163 = vmatpush1.bf16.msra.mxu0 0
      %1164 = vmatprep.subr.bf16.mxu0 0
      %1165 = vmatpush1.bf16.msra.mxu0 0
      %1166 = vmatprep.subr.bf16.mxu0 0
      %1167 = vmatpush1.bf16.msra.mxu0 0
      %1168 = vmatprep.subr.bf16.mxu0 0
      %1169 = vmatpush1.bf16.msra.mxu0 0
      %1170 = vmatprep.subr.bf16.mxu0 0
      %1171 = vmatpush1.bf16.msra.mxu0 0
      %1172 = vmatprep.subr.bf16.mxu0 0
      %1173 = vmatpush1.bf16.msra.mxu0 0
      %1174 = vmatprep.subr.bf16.mxu0 0
      %1175 = vmatpush1.bf16.msra.mxu0 0
      %1176 = vmatprep.subr.bf16.mxu0 0
      %1177 = vmatpush1.bf16.msra.mxu0 0
      %1178 = vmatprep.subr.bf16.mxu0 0
      %1179 = vmatpush1.bf16.msra.mxu0 0
      %1180 = vmatprep.subr.bf16.mxu0 0
      %1181 = vmatpush1.bf16.msra.mxu0 0
      %1182 = vmatprep.mubr.bf16.mxu0 0
      %1183 = vmatmul.mubr.bf16.gmra.mrb[0].mxu0 %v1145
      %v1184 = vpop.f32.mrb[0].mxu0
      %v1185 = vadd.f32 0.0, %v1184
      %v1186 = vpop.f32.mrb[0].mxu0
      %v1187 = vadd.f32 0.0, %v1186
      %v1188 = vpop.f32.mrb[0].mxu0
      %v1189 = vadd.f32 0.0, %v1188
      %v1190 = vpop.f32.mrb[0].mxu0
      %v1191 = vadd.f32 0.0, %v1190
      %1192 = vmatprep.mubr.bf16.mxu0 0
      %1193 = vmatmul.mubr.bf16.gmra.mrb[0].mxu0 %v1148
      %v1194 = vpop.f32.mrb[0].mxu0
      %v1195 = vadd.f32 0.0, %v1194
      %v1196 = vpop.f32.mrb[0].mxu0
      %v1197 = vadd.f32 0.0, %v1196
      %v1198 = vpop.f32.mrb[0].mxu0
      %v1199 = vadd.f32 0.0, %v1198
      %v1200 = vpop.f32.mrb[0].mxu0
      %v1201 = vadd.f32 0.0, %v1200
      %1202 = vdwg.mxu0
      %v1203 = vadd.f32 %v689, %v1185
      %v1204 = vadd.f32 %v691, %v1187
      %v1205 = vadd.f32 %v693, %v1189
      %v1206 = vadd.f32 %v695, %v1191
      %v1207 = vadd.f32 %v699, %v1195
      %v1208 = vadd.f32 %v701, %v1197
      %v1209 = vadd.f32 %v703, %v1199
      %v1210 = vadd.f32 %v705, %v1201
      %s1211 = scalar_lea.vmem %s4, 24
      %v1212 = vld [vmem:[%s1211] sm:$0xff]
      %v1213 = vld [vmem:[%s1211 + $0x8] sm:$0xf]
      %v1214 = vld [vmem:[%s1211 + $0xc] sm:$0xff]
      %v1215 = vld [vmem:[%s1211 + $0x14] sm:$0xf]
      %v1216 = vmax.f32 %v1203, 0.0
      %v1217 = vmax.f32 %v1204, 0.0
      %v1218 = vmax.f32 %v1205, 0.0
      %v1219 = vmax.f32 %v1206, 0.0
      %v1220 = vmax.f32 %v1207, 0.0
      %v1221 = vmax.f32 %v1208, 0.0
      %v1222 = vmax.f32 %v1209, 0.0
      %v1223 = vmax.f32 %v1210, 0.0
      %1224 = vrot.lane.b32.xlu0 %v1216, 17
      %v1225 = vpop.permute.xlu0 %1224
      %1226 = vrot.lane.b32.xlu0 %v1218, 17
      %v1227 = vpop.permute.xlu0 %1226
      %1228 = vrot.lane.b32.xlu0 %v1220, 17
      %v1229 = vpop.permute.xlu0 %1228
      %1230 = vrot.lane.b32.xlu0 %v1222, 17
      %v1231 = vpop.permute.xlu0 %1230
      %1232 = vrot.lane.b32.xlu0 %v1217, 17
      %v1233 = vpop.permute.xlu0 %1232
      %1234 = vrot.lane.b32.xlu0 %v1219, 17
      %v1235 = vpop.permute.xlu0 %1234
      %1236 = vrot.lane.b32.xlu0 %v1221, 17
      %v1237 = vpop.permute.xlu0 %1236
      %1238 = vrot.lane.b32.xlu0 %v1223, 17
      %v1239 = vpop.permute.xlu0 %1238
      %v1240 = vsel %vm383, %v1225, %v1233
      %v1241 = vsel %vm383, %v1227, %v1235
      %v1242 = vsel %vm383, %v1229, %v1237
      %v1243 = vsel %vm383, %v1231, %v1239
      %v1244 = vsel %vm383, %v1233, %v1225
      %v1245 = vsel %vm383, %v1235, %v1227
      %v1246 = vsel %vm383, %v1237, %v1229
      %v1247 = vsel %vm383, %v1239, %v1231
      %v1248 = vmul.f32 %v1244, %v391
      %v1249 = vmul.f32 %v1240, %v395
      %v1250 = vmul.f32 %v1245, %v391
      %v1251 = vmul.f32 %v1241, %v395
      %v1252 = vmul.f32 %v1246, %v391
      %v1253 = vmul.f32 %v1242, %v395
      %v1254 = vmul.f32 %v1247, %v391
      %v1255 = vmul.f32 %v1243, %v395
      %v1256 = vpack.c.bf16 %v1250, %v1248
      %v1257 = vpack.c.bf16 %v1251, %v1249
      %v1258 = vpack.c.bf16 %v1254, %v1252
      %v1259 = vpack.c.bf16 %v1255, %v1253
      %1260 = vrot.lane.b32.xlu0 %v1216, 16
      %v1261 = vpop.permute.xlu0 %1260
      %1262 = vrot.lane.b32.xlu0 %v1218, 16
      %v1263 = vpop.permute.xlu0 %1262
      %1264 = vrot.lane.b32.xlu0 %v1220, 16
      %v1265 = vpop.permute.xlu0 %1264
      %1266 = vrot.lane.b32.xlu0 %v1222, 16
      %v1267 = vpop.permute.xlu0 %1266
      %1268 = vrot.lane.b32.xlu0 %v1217, 16
      %v1269 = vpop.permute.xlu0 %1268
      %1270 = vrot.lane.b32.xlu0 %v1219, 16
      %v1271 = vpop.permute.xlu0 %1270
      %1272 = vrot.lane.b32.xlu0 %v1221, 16
      %v1273 = vpop.permute.xlu0 %1272
      %1274 = vrot.lane.b32.xlu0 %v1223, 16
      %v1275 = vpop.permute.xlu0 %1274
      %v1276 = vsel %vm410, %v1261, %v1269
      %v1277 = vsel %vm410, %v1263, %v1271
      %v1278 = vsel %vm410, %v1265, %v1273
      %v1279 = vsel %vm410, %v1267, %v1275
      %v1280 = vsel %vm410, %v1269, %v1261
      %v1281 = vsel %vm410, %v1271, %v1263
      %v1282 = vsel %vm410, %v1273, %v1265
      %v1283 = vsel %vm410, %v1275, %v1267
      %v1284 = vmul.f32 %v1280, %v418
      %v1285 = vmul.f32 %v1276, %v422
      %v1286 = vmul.f32 %v1281, %v418
      %v1287 = vmul.f32 %v1277, %v422
      %v1288 = vmul.f32 %v1282, %v418
      %v1289 = vmul.f32 %v1278, %v422
      %v1290 = vmul.f32 %v1283, %v418
      %v1291 = vmul.f32 %v1279, %v422
      %v1292 = vpack.c.bf16 %v1286, %v1284
      %v1293 = vpack.c.bf16 %v1287, %v1285
      %v1294 = vpack.c.bf16 %v1290, %v1288
      %v1295 = vpack.c.bf16 %v1291, %v1289
      %1296 = vrot.lane.b32.xlu0 %v1216, 15
      %v1297 = vpop.permute.xlu0 %1296
      %1298 = vrot.lane.b32.xlu0 %v1218, 15
      %v1299 = vpop.permute.xlu0 %1298
      %1300 = vrot.lane.b32.xlu0 %v1220, 15
      %v1301 = vpop.permute.xlu0 %1300
      %1302 = vrot.lane.b32.xlu0 %v1222, 15
      %v1303 = vpop.permute.xlu0 %1302
      %1304 = vrot.lane.b32.xlu0 %v1217, 15
      %v1305 = vpop.permute.xlu0 %1304
      %1306 = vrot.lane.b32.xlu0 %v1219, 15
      %v1307 = vpop.permute.xlu0 %1306
      %1308 = vrot.lane.b32.xlu0 %v1221, 15
      %v1309 = vpop.permute.xlu0 %1308
      %1310 = vrot.lane.b32.xlu0 %v1223, 15
      %v1311 = vpop.permute.xlu0 %1310
      %v1312 = vsel %vm437, %v1297, %v1305
      %v1313 = vsel %vm437, %v1299, %v1307
      %v1314 = vsel %vm437, %v1301, %v1309
      %v1315 = vsel %vm437, %v1303, %v1311
      %v1316 = vsel %vm437, %v1305, %v1297
      %v1317 = vsel %vm437, %v1307, %v1299
      %v1318 = vsel %vm437, %v1309, %v1301
      %v1319 = vsel %vm437, %v1311, %v1303
      %v1320 = vmul.f32 %v1316, %v445
      %v1321 = vmul.f32 %v1312, %v449
      %v1322 = vmul.f32 %v1317, %v445
      %v1323 = vmul.f32 %v1313, %v449
      %v1324 = vmul.f32 %v1318, %v445
      %v1325 = vmul.f32 %v1314, %v449
      %v1326 = vmul.f32 %v1319, %v445
      %v1327 = vmul.f32 %v1315, %v449
      %v1328 = vpack.c.bf16 %v1322, %v1320
      %v1329 = vpack.c.bf16 %v1323, %v1321
      %v1330 = vpack.c.bf16 %v1326, %v1324
      %v1331 = vpack.c.bf16 %v1327, %v1325
      %1332 = vrot.lane.b32.xlu0 %v1216, 1
      %v1333 = vpop.permute.xlu0 %1332
      %1334 = vrot.lane.b32.xlu0 %v1218, 1
      %v1335 = vpop.permute.xlu0 %1334
      %1336 = vrot.lane.b32.xlu0 %v1220, 1
      %v1337 = vpop.permute.xlu0 %1336
      %1338 = vrot.lane.b32.xlu0 %v1222, 1
      %v1339 = vpop.permute.xlu0 %1338
      %1340 = vrot.lane.b32.xlu0 %v1217, 1
      %v1341 = vpop.permute.xlu0 %1340
      %1342 = vrot.lane.b32.xlu0 %v1219, 1
      %v1343 = vpop.permute.xlu0 %1342
      %1344 = vrot.lane.b32.xlu0 %v1221, 1
      %v1345 = vpop.permute.xlu0 %1344
      %1346 = vrot.lane.b32.xlu0 %v1223, 1
      %v1347 = vpop.permute.xlu0 %1346
      %v1348 = vsel %vm464, %v1333, %v1341
      %v1349 = vsel %vm464, %v1335, %v1343
      %v1350 = vsel %vm464, %v1337, %v1345
      %v1351 = vsel %vm464, %v1339, %v1347
      %v1352 = vsel %vm464, %v1341, %v1333
      %v1353 = vsel %vm464, %v1343, %v1335
      %v1354 = vsel %vm464, %v1345, %v1337
      %v1355 = vsel %vm464, %v1347, %v1339
      %v1356 = vmul.f32 %v1352, %v472
      %v1357 = vmul.f32 %v1348, %v476
      %v1358 = vmul.f32 %v1353, %v472
      %v1359 = vmul.f32 %v1349, %v476
      %v1360 = vmul.f32 %v1354, %v472
      %v1361 = vmul.f32 %v1350, %v476
      %v1362 = vmul.f32 %v1355, %v472
      %v1363 = vmul.f32 %v1351, %v476
      %v1364 = vpack.c.bf16 %v1358, %v1356
      %v1365 = vpack.c.bf16 %v1359, %v1357
      %v1366 = vpack.c.bf16 %v1362, %v1360
      %v1367 = vpack.c.bf16 %v1363, %v1361
      %v1368 = vmul.f32 %v1216, %v486
      %v1369 = vmul.f32 %v1217, %v490
      %v1370 = vmul.f32 %v1218, %v486
      %v1371 = vmul.f32 %v1219, %v490
      %v1372 = vmul.f32 %v1220, %v486
      %v1373 = vmul.f32 %v1221, %v490
      %v1374 = vmul.f32 %v1222, %v486
      %v1375 = vmul.f32 %v1223, %v490
      %v1376 = vpack.c.bf16 %v1370, %v1368
      %v1377 = vpack.c.bf16 %v1371, %v1369
      %v1378 = vpack.c.bf16 %v1374, %v1372
      %v1379 = vpack.c.bf16 %v1375, %v1373
      %1380 = vrot.lane.b32.xlu0 %v1216, 127
      %v1381 = vpop.permute.xlu0 %1380
      %1382 = vrot.lane.b32.xlu0 %v1218, 127
      %v1383 = vpop.permute.xlu0 %1382
      %1384 = vrot.lane.b32.xlu0 %v1220, 127
      %v1385 = vpop.permute.xlu0 %1384
      %1386 = vrot.lane.b32.xlu0 %v1222, 127
      %v1387 = vpop.permute.xlu0 %1386
      %1388 = vrot.lane.b32.xlu0 %v1217, 127
      %v1389 = vpop.permute.xlu0 %1388
      %1390 = vrot.lane.b32.xlu0 %v1219, 127
      %v1391 = vpop.permute.xlu0 %1390
      %1392 = vrot.lane.b32.xlu0 %v1221, 127
      %v1393 = vpop.permute.xlu0 %1392
      %1394 = vrot.lane.b32.xlu0 %v1223, 127
      %v1395 = vpop.permute.xlu0 %1394
      %v1396 = vsel %vm505, %v1381, %v1389
      %v1397 = vsel %vm505, %v1383, %v1391
      %v1398 = vsel %vm505, %v1385, %v1393
      %v1399 = vsel %vm505, %v1387, %v1395
      %v1400 = vsel %vm505, %v1389, %v1381
      %v1401 = vsel %vm505, %v1391, %v1383
      %v1402 = vsel %vm505, %v1393, %v1385
      %v1403 = vsel %vm505, %v1395, %v1387
      %v1404 = vmul.f32 %v1396, %v513
      %v1405 = vmul.f32 %v1400, %v517
      %v1406 = vmul.f32 %v1397, %v513
      %v1407 = vmul.f32 %v1401, %v517
      %v1408 = vmul.f32 %v1398, %v513
      %v1409 = vmul.f32 %v1402, %v517
      %v1410 = vmul.f32 %v1399, %v513
      %v1411 = vmul.f32 %v1403, %v517
      %v1412 = vpack.c.bf16 %v1406, %v1404
      %v1413 = vpack.c.bf16 %v1407, %v1405
      %v1414 = vpack.c.bf16 %v1410, %v1408
      %v1415 = vpack.c.bf16 %v1411, %v1409
      %1416 = vrot.lane.b32.xlu0 %v1216, 113
      %v1417 = vpop.permute.xlu0 %1416
      %1418 = vrot.lane.b32.xlu0 %v1218, 113
      %v1419 = vpop.permute.xlu0 %1418
      %1420 = vrot.lane.b32.xlu0 %v1220, 113
      %v1421 = vpop.permute.xlu0 %1420
      %1422 = vrot.lane.b32.xlu0 %v1222, 113
      %v1423 = vpop.permute.xlu0 %1422
      %1424 = vrot.lane.b32.xlu0 %v1217, 113
      %v1425 = vpop.permute.xlu0 %1424
      %1426 = vrot.lane.b32.xlu0 %v1219, 113
      %v1427 = vpop.permute.xlu0 %1426
      %1428 = vrot.lane.b32.xlu0 %v1221, 113
      %v1429 = vpop.permute.xlu0 %1428
      %1430 = vrot.lane.b32.xlu0 %v1223, 113
      %v1431 = vpop.permute.xlu0 %1430
      %v1432 = vsel %vm532, %v1417, %v1425
      %v1433 = vsel %vm532, %v1419, %v1427
      %v1434 = vsel %vm532, %v1421, %v1429
      %v1435 = vsel %vm532, %v1423, %v1431
      %v1436 = vsel %vm532, %v1425, %v1417
      %v1437 = vsel %vm532, %v1427, %v1419
      %v1438 = vsel %vm532, %v1429, %v1421
      %v1439 = vsel %vm532, %v1431, %v1423
      %v1440 = vmul.f32 %v1432, %v540
      %v1441 = vmul.f32 %v1436, %v544
      %v1442 = vmul.f32 %v1433, %v540
      %v1443 = vmul.f32 %v1437, %v544
      %v1444 = vmul.f32 %v1434, %v540
      %v1445 = vmul.f32 %v1438, %v544
      %v1446 = vmul.f32 %v1435, %v540
      %v1447 = vmul.f32 %v1439, %v544
      %v1448 = vpack.c.bf16 %v1442, %v1440
      %v1449 = vpack.c.bf16 %v1443, %v1441
      %v1450 = vpack.c.bf16 %v1446, %v1444
      %v1451 = vpack.c.bf16 %v1447, %v1445
      %1452 = vrot.lane.b32.xlu0 %v1216, 112
      %v1453 = vpop.permute.xlu0 %1452
      %1454 = vrot.lane.b32.xlu0 %v1218, 112
      %v1455 = vpop.permute.xlu0 %1454
      %1456 = vrot.lane.b32.xlu0 %v1220, 112
      %v1457 = vpop.permute.xlu0 %1456
      %1458 = vrot.lane.b32.xlu0 %v1222, 112
      %v1459 = vpop.permute.xlu0 %1458
      %1460 = vrot.lane.b32.xlu0 %v1217, 112
      %v1461 = vpop.permute.xlu0 %1460
      %1462 = vrot.lane.b32.xlu0 %v1219, 112
      %v1463 = vpop.permute.xlu0 %1462
      %1464 = vrot.lane.b32.xlu0 %v1221, 112
      %v1465 = vpop.permute.xlu0 %1464
      %1466 = vrot.lane.b32.xlu0 %v1223, 112
      %v1467 = vpop.permute.xlu0 %1466
      %v1468 = vsel %vm559, %v1453, %v1461
      %v1469 = vsel %vm559, %v1455, %v1463
      %v1470 = vsel %vm559, %v1457, %v1465
      %v1471 = vsel %vm559, %v1459, %v1467
      %v1472 = vsel %vm559, %v1461, %v1453
      %v1473 = vsel %vm559, %v1463, %v1455
      %v1474 = vsel %vm559, %v1465, %v1457
      %v1475 = vsel %vm559, %v1467, %v1459
      %v1476 = vmul.f32 %v1468, %v567
      %v1477 = vmul.f32 %v1472, %v571
      %v1478 = vmul.f32 %v1469, %v567
      %v1479 = vmul.f32 %v1473, %v571
      %v1480 = vmul.f32 %v1470, %v567
      %v1481 = vmul.f32 %v1474, %v571
      %v1482 = vmul.f32 %v1471, %v567
      %v1483 = vmul.f32 %v1475, %v571
      %v1484 = vpack.c.bf16 %v1478, %v1476
      %v1485 = vpack.c.bf16 %v1479, %v1477
      %v1486 = vpack.c.bf16 %v1482, %v1480
      %v1487 = vpack.c.bf16 %v1483, %v1481
      %1488 = vrot.lane.b32.xlu0 %v1216, 111
      %v1489 = vpop.permute.xlu0 %1488
      %1490 = vrot.lane.b32.xlu0 %v1218, 111
      %v1491 = vpop.permute.xlu0 %1490
      %1492 = vrot.lane.b32.xlu0 %v1220, 111
      %v1493 = vpop.permute.xlu0 %1492
      %1494 = vrot.lane.b32.xlu0 %v1222, 111
      %v1495 = vpop.permute.xlu0 %1494
      %1496 = vrot.lane.b32.xlu0 %v1217, 111
      %v1497 = vpop.permute.xlu0 %1496
      %1498 = vrot.lane.b32.xlu0 %v1219, 111
      %v1499 = vpop.permute.xlu0 %1498
      %1500 = vrot.lane.b32.xlu0 %v1221, 111
      %v1501 = vpop.permute.xlu0 %1500
      %1502 = vrot.lane.b32.xlu0 %v1223, 111
      %v1503 = vpop.permute.xlu0 %1502
      %v1504 = vsel %vm586, %v1489, %v1497
      %v1505 = vsel %vm586, %v1491, %v1499
      %v1506 = vsel %vm586, %v1493, %v1501
      %v1507 = vsel %vm586, %v1495, %v1503
      %v1508 = vsel %vm586, %v1497, %v1489
      %v1509 = vsel %vm586, %v1499, %v1491
      %v1510 = vsel %vm586, %v1501, %v1493
      %v1511 = vsel %vm586, %v1503, %v1495
      %v1512 = vmul.f32 %v1504, %v594
      %v1513 = vmul.f32 %v1508, %v598
      %v1514 = vmul.f32 %v1505, %v594
      %v1515 = vmul.f32 %v1509, %v598
      %v1516 = vmul.f32 %v1506, %v594
      %v1517 = vmul.f32 %v1510, %v598
      %v1518 = vmul.f32 %v1507, %v594
      %v1519 = vmul.f32 %v1511, %v598
      %v1520 = vpack.c.bf16 %v1514, %v1512
      %v1521 = vpack.c.bf16 %v1515, %v1513
      %v1522 = vpack.c.bf16 %v1518, %v1516
      %v1523 = vpack.c.bf16 %v1519, %v1517
      %v1528 = vunpack.c.l.b16 %v1212
      %v1529 = vunpack.c.h.b16 %v1212
      %v1530 = vunpack.c.l.b16 %v1213
      %v1531 = vunpack.c.l.b16 %v1214
      %v1532 = vunpack.c.h.b16 %v1214
      %v1533 = vunpack.c.l.b16 %v1215
      %v1534 = vpack.c.b16 %v1531, %v1528
      %v1535 = vpack.c.b16 %v1532, %v1529
      %v1536 = vpack.c.b16 %v1533, %v1530
      %v1540 = vsel %vm1034, %v1536, 0
      %1542 = vmatprep.subr.bf16.mxu0 %v1257
      %1543 = vmatpush1.bf16.msra.mxu0 %v1256
      %1544 = vmatprep.subr.bf16.mxu0 %v1259
      %1545 = vmatpush1.bf16.msra.mxu0 %v1258
      %1546 = vmatprep.subr.bf16.mxu0 %v1293
      %1547 = vmatpush1.bf16.msra.mxu0 %v1292
      %1548 = vmatprep.subr.bf16.mxu0 %v1295
      %1549 = vmatpush1.bf16.msra.mxu0 %v1294
      %1550 = vmatprep.subr.bf16.mxu0 %v1329
      %1551 = vmatpush1.bf16.msra.mxu0 %v1328
      %1552 = vmatprep.subr.bf16.mxu0 %v1331
      %1553 = vmatpush1.bf16.msra.mxu0 %v1330
      %1554 = vmatprep.subr.bf16.mxu0 %v1365
      %1555 = vmatpush1.bf16.msra.mxu0 %v1364
      %1556 = vmatprep.subr.bf16.mxu0 %v1367
      %1557 = vmatpush1.bf16.msra.mxu0 %v1366
      %1558 = vmatprep.subr.bf16.mxu0 %v1377
      %1559 = vmatpush1.bf16.msra.mxu0 %v1376
      %1560 = vmatprep.subr.bf16.mxu0 %v1379
      %1561 = vmatpush1.bf16.msra.mxu0 %v1378
      %1562 = vmatprep.subr.bf16.mxu0 %v1413
      %1563 = vmatpush1.bf16.msra.mxu0 %v1412
      %1564 = vmatprep.subr.bf16.mxu0 %v1415
      %1565 = vmatpush1.bf16.msra.mxu0 %v1414
      %1566 = vmatprep.subr.bf16.mxu0 %v1449
      %1567 = vmatpush1.bf16.msra.mxu0 %v1448
      %1568 = vmatprep.subr.bf16.mxu0 %v1451
      %1569 = vmatpush1.bf16.msra.mxu0 %v1450
      %1570 = vmatprep.subr.bf16.mxu0 %v1485
      %1571 = vmatpush1.bf16.msra.mxu0 %v1484
      %1572 = vmatprep.subr.bf16.mxu0 %v1487
      %1573 = vmatpush1.bf16.msra.mxu0 %v1486
      %1574 = vmatprep.mubr.bf16.mxu0 %v1535
      %1575 = vmatmul.mubr.bf16.gmra.mrb[0].mxu0 %v1534
      %v1576 = vpop.f32.mrb[0].mxu0
      %v1577 = vadd.f32 0.0, %v1576
      %v1578 = vpop.f32.mrb[0].mxu0
      %v1579 = vadd.f32 0.0, %v1578
      %v1580 = vpop.f32.mrb[0].mxu0
      %v1581 = vadd.f32 0.0, %v1580
      %v1582 = vpop.f32.mrb[0].mxu0
      %v1583 = vadd.f32 0.0, %v1582
      %1584 = vdwg.mxu0
      %1585 = vmatprep.subr.bf16.mxu0 %v1521
      %1586 = vmatpush1.bf16.msra.mxu0 %v1520
      %1587 = vmatprep.subr.bf16.mxu0 %v1523
      %1588 = vmatpush1.bf16.msra.mxu0 %v1522
      %1589 = vmatprep.subr.bf16.mxu0 0
      %1590 = vmatpush1.bf16.msra.mxu0 0
      %1591 = vmatprep.subr.bf16.mxu0 0
      %1592 = vmatpush1.bf16.msra.mxu0 0
      %1593 = vmatprep.subr.bf16.mxu0 0
      %1594 = vmatpush1.bf16.msra.mxu0 0
      %1595 = vmatprep.subr.bf16.mxu0 0
      %1596 = vmatpush1.bf16.msra.mxu0 0
      %1597 = vmatprep.subr.bf16.mxu0 0
      %1598 = vmatpush1.bf16.msra.mxu0 0
      %1599 = vmatprep.subr.bf16.mxu0 0
      %1600 = vmatpush1.bf16.msra.mxu0 0
      %1601 = vmatprep.subr.bf16.mxu0 0
      %1602 = vmatpush1.bf16.msra.mxu0 0
      %1603 = vmatprep.subr.bf16.mxu0 0
      %1604 = vmatpush1.bf16.msra.mxu0 0
      %1605 = vmatprep.subr.bf16.mxu0 0
      %1606 = vmatpush1.bf16.msra.mxu0 0
      %1607 = vmatprep.subr.bf16.mxu0 0
      %1608 = vmatpush1.bf16.msra.mxu0 0
      %1609 = vmatprep.subr.bf16.mxu0 0
      %1610 = vmatpush1.bf16.msra.mxu0 0
      %1611 = vmatprep.subr.bf16.mxu0 0
      %1612 = vmatpush1.bf16.msra.mxu0 0
      %1613 = vmatprep.subr.bf16.mxu0 0
      %1614 = vmatpush1.bf16.msra.mxu0 0
      %1615 = vmatprep.subr.bf16.mxu0 0
      %1616 = vmatpush1.bf16.msra.mxu0 0
      %1617 = vmatprep.mubr.bf16.mxu0 0
      %1618 = vmatmul.mubr.bf16.gmra.mrb[0].mxu0 %v1540
      %v1619 = vpop.f32.mrb[0].mxu0
      %v1620 = vadd.f32 %v1577, %v1619
      %v1621 = vpop.f32.mrb[0].mxu0
      %v1622 = vadd.f32 %v1579, %v1621
      %v1623 = vpop.f32.mrb[0].mxu0
      %v1624 = vadd.f32 %v1581, %v1623
      %v1625 = vpop.f32.mrb[0].mxu0
      %v1626 = vadd.f32 %v1583, %v1625
      %1627 = vdwg.mxu0
      %v1628 = vmax.f32 %v1620, 0.0
      %v1629 = vmax.f32 %v1622, 0.0
      %v1630 = vmax.f32 %v1624, 0.0
      %v1631 = vmax.f32 %v1626, 0.0
      %s1632 = scalar_lea.vmem %s5, 16
      %v1633 = vld [vmem:[%s1632] sm:$0xf]
      %v1634 = vld [vmem:[%s1632 + $0x4] sm:$0xf]
      %v1635 = vld [vmem:[%s1632 + $0x8] sm:$0xf]
      %v1636 = vld [vmem:[%s1632 + $0xc] sm:$0xf]
      %v1637 = vpack.c.bf16 %v1630, %v1628
      %v1638 = vpack.c.bf16 %v1631, %v1629
      %v1643 = vunpack.c.l.b16 %v1633
      %v1644 = vunpack.c.l.b16 %v1634
      %v1645 = vunpack.c.l.b16 %v1635
      %v1646 = vunpack.c.l.b16 %v1636
      %v1647 = vpack.c.b16 %v1644, %v1643
      %v1648 = vpack.c.b16 %v1646, %v1645
      %v1650 = vsel %vm647, %v1647, 0
      %v1653 = vsel %vm647, %v1648, 0
      %1655 = vmatprep.subr.bf16.mxu0 %v1638
      %1656 = vmatpush1.bf16.msra.mxu0 %v1637
      %1657 = vmatprep.subr.bf16.mxu0 0
      %1658 = vmatpush1.bf16.msra.mxu0 0
      %1659 = vmatprep.subr.bf16.mxu0 0
      %1660 = vmatpush1.bf16.msra.mxu0 0
      %1661 = vmatprep.subr.bf16.mxu0 0
      %1662 = vmatpush1.bf16.msra.mxu0 0
      %1663 = vmatprep.subr.bf16.mxu0 0
      %1664 = vmatpush1.bf16.msra.mxu0 0
      %1665 = vmatprep.subr.bf16.mxu0 0
      %1666 = vmatpush1.bf16.msra.mxu0 0
      %1667 = vmatprep.subr.bf16.mxu0 0
      %1668 = vmatpush1.bf16.msra.mxu0 0
      %1669 = vmatprep.subr.bf16.mxu0 0
      %1670 = vmatpush1.bf16.msra.mxu0 0
      %1671 = vmatprep.subr.bf16.mxu0 0
      %1672 = vmatpush1.bf16.msra.mxu0 0
      %1673 = vmatprep.subr.bf16.mxu0 0
      %1674 = vmatpush1.bf16.msra.mxu0 0
      %1675 = vmatprep.subr.bf16.mxu0 0
      %1676 = vmatpush1.bf16.msra.mxu0 0
      %1677 = vmatprep.subr.bf16.mxu0 0
      %1678 = vmatpush1.bf16.msra.mxu0 0
      %1679 = vmatprep.subr.bf16.mxu0 0
      %1680 = vmatpush1.bf16.msra.mxu0 0
      %1681 = vmatprep.subr.bf16.mxu0 0
      %1682 = vmatpush1.bf16.msra.mxu0 0
      %1683 = vmatprep.subr.bf16.mxu0 0
      %1684 = vmatpush1.bf16.msra.mxu0 0
      %1685 = vmatprep.subr.bf16.mxu0 0
      %1686 = vmatpush1.bf16.msra.mxu0 0
      %1687 = vmatprep.mubr.bf16.mxu0 0
      %1688 = vmatmul.mubr.bf16.gmra.mrb[0].mxu0 %v1650
      %v1689 = vpop.f32.mrb[0].mxu0
      %v1690 = vadd.f32 0.0, %v1689
      %v1691 = vpop.f32.mrb[0].mxu0
      %v1692 = vadd.f32 0.0, %v1691
      %v1693 = vpop.f32.mrb[0].mxu0
      %v1694 = vadd.f32 0.0, %v1693
      %v1695 = vpop.f32.mrb[0].mxu0
      %v1696 = vadd.f32 0.0, %v1695
      %1697 = vmatprep.mubr.bf16.mxu0 0
      %1698 = vmatmul.mubr.bf16.gmra.mrb[0].mxu0 %v1653
      %v1699 = vpop.f32.mrb[0].mxu0
      %v1700 = vadd.f32 0.0, %v1699
      %v1701 = vpop.f32.mrb[0].mxu0
      %v1702 = vadd.f32 0.0, %v1701
      %v1703 = vpop.f32.mrb[0].mxu0
      %v1704 = vadd.f32 0.0, %v1703
      %v1705 = vpop.f32.mrb[0].mxu0
      %v1706 = vadd.f32 0.0, %v1705
      %1707 = vdwg.mxu0
      %v1708 = vadd.f32 %v1203, %v1690
      %v1709 = vadd.f32 %v1204, %v1692
      %v1710 = vadd.f32 %v1205, %v1694
      %v1711 = vadd.f32 %v1206, %v1696
      %v1712 = vadd.f32 %v1207, %v1700
      %v1713 = vadd.f32 %v1208, %v1702
      %v1714 = vadd.f32 %v1209, %v1704
      %v1715 = vadd.f32 %v1210, %v1706
      %v1716 = vmax.f32 %v1708, 0.0
      %v1717 = vmax.f32 %v1709, 0.0
      %v1718 = vmax.f32 %v1710, 0.0
      %v1719 = vmax.f32 %v1711, 0.0
      %v1720 = vmax.f32 %v1712, 0.0
      %v1721 = vmax.f32 %v1713, 0.0
      %v1722 = vmax.f32 %v1714, 0.0
      %v1723 = vmax.f32 %v1715, 0.0
      %v1724 = vld [vmem:[%s6] sm:$0xff]
      %v1725 = vld [vmem:[%s6 + $0x8] sm:$0xf]
      %v1726 = vld [vmem:[%s6 + $0xc] sm:$0xff]
      %v1727 = vld [vmem:[%s6 + $0x14] sm:$0xf]
      %v1728 = vld [vmem:[%s6 + $0x18] sm:$0xff]
      %v1729 = vld [vmem:[%s6 + $0x20] sm:$0xf]
      %v1730 = vld [vmem:[%s6 + $0x24] sm:$0xff]
      %v1731 = vld [vmem:[%s6 + $0x2c] sm:$0xf]
      %v1732 = vld [vmem:[%s6 + $0x30] sm:$0xff]
      %v1733 = vld [vmem:[%s6 + $0x38] sm:$0xf]
      %v1734 = vld [vmem:[%s6 + $0x3c] sm:$0xff]
      %v1735 = vld [vmem:[%s6 + $0x44] sm:$0xf]
      %v1736 = vld [vmem:[%s6 + $0x48] sm:$0xff]
      %v1737 = vld [vmem:[%s6 + $0x50] sm:$0xf]
      %v1738 = vld [vmem:[%s6 + $0x54] sm:$0xff]
      %v1739 = vld [vmem:[%s6 + $0x5c] sm:$0xf]
      %1740 = vrot.lane.b32.xlu0 %v1716, 17
      %v1741 = vpop.permute.xlu0 %1740
      %1742 = vrot.lane.b32.xlu0 %v1718, 17
      %v1743 = vpop.permute.xlu0 %1742
      %1744 = vrot.lane.b32.xlu0 %v1720, 17
      %v1745 = vpop.permute.xlu0 %1744
      %1746 = vrot.lane.b32.xlu0 %v1722, 17
      %v1747 = vpop.permute.xlu0 %1746
      %1748 = vrot.lane.b32.xlu0 %v1717, 17
      %v1749 = vpop.permute.xlu0 %1748
      %1750 = vrot.lane.b32.xlu0 %v1719, 17
      %v1751 = vpop.permute.xlu0 %1750
      %1752 = vrot.lane.b32.xlu0 %v1721, 17
      %v1753 = vpop.permute.xlu0 %1752
      %1754 = vrot.lane.b32.xlu0 %v1723, 17
      %v1755 = vpop.permute.xlu0 %1754
      %v1756 = vsel %vm383, %v1741, %v1749
      %v1757 = vsel %vm383, %v1743, %v1751
      %v1758 = vsel %vm383, %v1745, %v1753
      %v1759 = vsel %vm383, %v1747, %v1755
      %v1760 = vsel %vm383, %v1749, %v1741
      %v1761 = vsel %vm383, %v1751, %v1743
      %v1762 = vsel %vm383, %v1753, %v1745
      %v1763 = vsel %vm383, %v1755, %v1747
      %v1764 = vmul.f32 %v1760, %v391
      %v1765 = vmul.f32 %v1756, %v395
      %v1766 = vmul.f32 %v1761, %v391
      %v1767 = vmul.f32 %v1757, %v395
      %v1768 = vmul.f32 %v1762, %v391
      %v1769 = vmul.f32 %v1758, %v395
      %v1770 = vmul.f32 %v1763, %v391
      %v1771 = vmul.f32 %v1759, %v395
      %v1772 = vpack.c.bf16 %v1766, %v1764
      %v1773 = vpack.c.bf16 %v1767, %v1765
      %v1774 = vpack.c.bf16 %v1770, %v1768
      %v1775 = vpack.c.bf16 %v1771, %v1769
      %1776 = vrot.lane.b32.xlu0 %v1716, 16
      %v1777 = vpop.permute.xlu0 %1776
      %1778 = vrot.lane.b32.xlu0 %v1718, 16
      %v1779 = vpop.permute.xlu0 %1778
      %1780 = vrot.lane.b32.xlu0 %v1720, 16
      %v1781 = vpop.permute.xlu0 %1780
      %1782 = vrot.lane.b32.xlu0 %v1722, 16
      %v1783 = vpop.permute.xlu0 %1782
      %1784 = vrot.lane.b32.xlu0 %v1717, 16
      %v1785 = vpop.permute.xlu0 %1784
      %1786 = vrot.lane.b32.xlu0 %v1719, 16
      %v1787 = vpop.permute.xlu0 %1786
      %1788 = vrot.lane.b32.xlu0 %v1721, 16
      %v1789 = vpop.permute.xlu0 %1788
      %1790 = vrot.lane.b32.xlu0 %v1723, 16
      %v1791 = vpop.permute.xlu0 %1790
      %v1792 = vsel %vm410, %v1777, %v1785
      %v1793 = vsel %vm410, %v1779, %v1787
      %v1794 = vsel %vm410, %v1781, %v1789
      %v1795 = vsel %vm410, %v1783, %v1791
      %v1796 = vsel %vm410, %v1785, %v1777
      %v1797 = vsel %vm410, %v1787, %v1779
      %v1798 = vsel %vm410, %v1789, %v1781
      %v1799 = vsel %vm410, %v1791, %v1783
      %v1800 = vmul.f32 %v1796, %v418
      %v1801 = vmul.f32 %v1792, %v422
      %v1802 = vmul.f32 %v1797, %v418
      %v1803 = vmul.f32 %v1793, %v422
      %v1804 = vmul.f32 %v1798, %v418
      %v1805 = vmul.f32 %v1794, %v422
      %v1806 = vmul.f32 %v1799, %v418
      %v1807 = vmul.f32 %v1795, %v422
      %v1808 = vpack.c.bf16 %v1802, %v1800
      %v1809 = vpack.c.bf16 %v1803, %v1801
      %v1810 = vpack.c.bf16 %v1806, %v1804
      %v1811 = vpack.c.bf16 %v1807, %v1805
      %1812 = vrot.lane.b32.xlu0 %v1716, 15
      %v1813 = vpop.permute.xlu0 %1812
      %1814 = vrot.lane.b32.xlu0 %v1718, 15
      %v1815 = vpop.permute.xlu0 %1814
      %1816 = vrot.lane.b32.xlu0 %v1720, 15
      %v1817 = vpop.permute.xlu0 %1816
      %1818 = vrot.lane.b32.xlu0 %v1722, 15
      %v1819 = vpop.permute.xlu0 %1818
      %1820 = vrot.lane.b32.xlu0 %v1717, 15
      %v1821 = vpop.permute.xlu0 %1820
      %1822 = vrot.lane.b32.xlu0 %v1719, 15
      %v1823 = vpop.permute.xlu0 %1822
      %1824 = vrot.lane.b32.xlu0 %v1721, 15
      %v1825 = vpop.permute.xlu0 %1824
      %1826 = vrot.lane.b32.xlu0 %v1723, 15
      %v1827 = vpop.permute.xlu0 %1826
      %v1828 = vsel %vm437, %v1813, %v1821
      %v1829 = vsel %vm437, %v1815, %v1823
      %v1830 = vsel %vm437, %v1817, %v1825
      %v1831 = vsel %vm437, %v1819, %v1827
      %v1832 = vsel %vm437, %v1821, %v1813
      %v1833 = vsel %vm437, %v1823, %v1815
      %v1834 = vsel %vm437, %v1825, %v1817
      %v1835 = vsel %vm437, %v1827, %v1819
      %v1836 = vmul.f32 %v1832, %v445
      %v1837 = vmul.f32 %v1828, %v449
      %v1838 = vmul.f32 %v1833, %v445
      %v1839 = vmul.f32 %v1829, %v449
      %v1840 = vmul.f32 %v1834, %v445
      %v1841 = vmul.f32 %v1830, %v449
      %v1842 = vmul.f32 %v1835, %v445
      %v1843 = vmul.f32 %v1831, %v449
      %v1844 = vpack.c.bf16 %v1838, %v1836
      %v1845 = vpack.c.bf16 %v1839, %v1837
      %v1846 = vpack.c.bf16 %v1842, %v1840
      %v1847 = vpack.c.bf16 %v1843, %v1841
      %1848 = vrot.lane.b32.xlu0 %v1716, 1
      %v1849 = vpop.permute.xlu0 %1848
      %1850 = vrot.lane.b32.xlu0 %v1718, 1
      %v1851 = vpop.permute.xlu0 %1850
      %1852 = vrot.lane.b32.xlu0 %v1720, 1
      %v1853 = vpop.permute.xlu0 %1852
      %1854 = vrot.lane.b32.xlu0 %v1722, 1
      %v1855 = vpop.permute.xlu0 %1854
      %1856 = vrot.lane.b32.xlu0 %v1717, 1
      %v1857 = vpop.permute.xlu0 %1856
      %1858 = vrot.lane.b32.xlu0 %v1719, 1
      %v1859 = vpop.permute.xlu0 %1858
      %1860 = vrot.lane.b32.xlu0 %v1721, 1
      %v1861 = vpop.permute.xlu0 %1860
      %1862 = vrot.lane.b32.xlu0 %v1723, 1
      %v1863 = vpop.permute.xlu0 %1862
      %v1864 = vsel %vm464, %v1849, %v1857
      %v1865 = vsel %vm464, %v1851, %v1859
      %v1866 = vsel %vm464, %v1853, %v1861
      %v1867 = vsel %vm464, %v1855, %v1863
      %v1868 = vsel %vm464, %v1857, %v1849
      %v1869 = vsel %vm464, %v1859, %v1851
      %v1870 = vsel %vm464, %v1861, %v1853
      %v1871 = vsel %vm464, %v1863, %v1855
      %v1872 = vmul.f32 %v1868, %v472
      %v1873 = vmul.f32 %v1864, %v476
      %v1874 = vmul.f32 %v1869, %v472
      %v1875 = vmul.f32 %v1865, %v476
      %v1876 = vmul.f32 %v1870, %v472
      %v1877 = vmul.f32 %v1866, %v476
      %v1878 = vmul.f32 %v1871, %v472
      %v1879 = vmul.f32 %v1867, %v476
      %v1880 = vpack.c.bf16 %v1874, %v1872
      %v1881 = vpack.c.bf16 %v1875, %v1873
      %v1882 = vpack.c.bf16 %v1878, %v1876
      %v1883 = vpack.c.bf16 %v1879, %v1877
      %v1884 = vmul.f32 %v1716, %v486
      %v1885 = vmul.f32 %v1717, %v490
      %v1886 = vmul.f32 %v1718, %v486
      %v1887 = vmul.f32 %v1719, %v490
      %v1888 = vmul.f32 %v1720, %v486
      %v1889 = vmul.f32 %v1721, %v490
      %v1890 = vmul.f32 %v1722, %v486
      %v1891 = vmul.f32 %v1723, %v490
      %v1892 = vpack.c.bf16 %v1886, %v1884
      %v1893 = vpack.c.bf16 %v1887, %v1885
      %v1894 = vpack.c.bf16 %v1890, %v1888
      %v1895 = vpack.c.bf16 %v1891, %v1889
      %1896 = vrot.lane.b32.xlu0 %v1716, 127
      %v1897 = vpop.permute.xlu0 %1896
      %1898 = vrot.lane.b32.xlu0 %v1718, 127
      %v1899 = vpop.permute.xlu0 %1898
      %1900 = vrot.lane.b32.xlu0 %v1720, 127
      %v1901 = vpop.permute.xlu0 %1900
      %1902 = vrot.lane.b32.xlu0 %v1722, 127
      %v1903 = vpop.permute.xlu0 %1902
      %1904 = vrot.lane.b32.xlu0 %v1717, 127
      %v1905 = vpop.permute.xlu0 %1904
      %1906 = vrot.lane.b32.xlu0 %v1719, 127
      %v1907 = vpop.permute.xlu0 %1906
      %1908 = vrot.lane.b32.xlu0 %v1721, 127
      %v1909 = vpop.permute.xlu0 %1908
      %1910 = vrot.lane.b32.xlu0 %v1723, 127
      %v1911 = vpop.permute.xlu0 %1910
      %v1912 = vsel %vm505, %v1897, %v1905
      %v1913 = vsel %vm505, %v1899, %v1907
      %v1914 = vsel %vm505, %v1901, %v1909
      %v1915 = vsel %vm505, %v1903, %v1911
      %v1916 = vsel %vm505, %v1905, %v1897
      %v1917 = vsel %vm505, %v1907, %v1899
      %v1918 = vsel %vm505, %v1909, %v1901
      %v1919 = vsel %vm505, %v1911, %v1903
      %v1920 = vmul.f32 %v1912, %v513
      %v1921 = vmul.f32 %v1916, %v517
      %v1922 = vmul.f32 %v1913, %v513
      %v1923 = vmul.f32 %v1917, %v517
      %v1924 = vmul.f32 %v1914, %v513
      %v1925 = vmul.f32 %v1918, %v517
      %v1926 = vmul.f32 %v1915, %v513
      %v1927 = vmul.f32 %v1919, %v517
      %v1928 = vpack.c.bf16 %v1922, %v1920
      %v1929 = vpack.c.bf16 %v1923, %v1921
      %v1930 = vpack.c.bf16 %v1926, %v1924
      %v1931 = vpack.c.bf16 %v1927, %v1925
      %1932 = vrot.lane.b32.xlu0 %v1716, 113
      %v1933 = vpop.permute.xlu0 %1932
      %1934 = vrot.lane.b32.xlu0 %v1718, 113
      %v1935 = vpop.permute.xlu0 %1934
      %1936 = vrot.lane.b32.xlu0 %v1720, 113
      %v1937 = vpop.permute.xlu0 %1936
      %1938 = vrot.lane.b32.xlu0 %v1722, 113
      %v1939 = vpop.permute.xlu0 %1938
      %1940 = vrot.lane.b32.xlu0 %v1717, 113
      %v1941 = vpop.permute.xlu0 %1940
      %1942 = vrot.lane.b32.xlu0 %v1719, 113
      %v1943 = vpop.permute.xlu0 %1942
      %1944 = vrot.lane.b32.xlu0 %v1721, 113
      %v1945 = vpop.permute.xlu0 %1944
      %1946 = vrot.lane.b32.xlu0 %v1723, 113
      %v1947 = vpop.permute.xlu0 %1946
      %v1948 = vsel %vm532, %v1933, %v1941
      %v1949 = vsel %vm532, %v1935, %v1943
      %v1950 = vsel %vm532, %v1937, %v1945
      %v1951 = vsel %vm532, %v1939, %v1947
      %v1952 = vsel %vm532, %v1941, %v1933
      %v1953 = vsel %vm532, %v1943, %v1935
      %v1954 = vsel %vm532, %v1945, %v1937
      %v1955 = vsel %vm532, %v1947, %v1939
      %v1956 = vmul.f32 %v1948, %v540
      %v1957 = vmul.f32 %v1952, %v544
      %v1958 = vmul.f32 %v1949, %v540
      %v1959 = vmul.f32 %v1953, %v544
      %v1960 = vmul.f32 %v1950, %v540
      %v1961 = vmul.f32 %v1954, %v544
      %v1962 = vmul.f32 %v1951, %v540
      %v1963 = vmul.f32 %v1955, %v544
      %v1964 = vpack.c.bf16 %v1958, %v1956
      %v1965 = vpack.c.bf16 %v1959, %v1957
      %v1966 = vpack.c.bf16 %v1962, %v1960
      %v1967 = vpack.c.bf16 %v1963, %v1961
      %1968 = vrot.lane.b32.xlu0 %v1716, 112
      %v1969 = vpop.permute.xlu0 %1968
      %1970 = vrot.lane.b32.xlu0 %v1718, 112
      %v1971 = vpop.permute.xlu0 %1970
      %1972 = vrot.lane.b32.xlu0 %v1720, 112
      %v1973 = vpop.permute.xlu0 %1972
      %1974 = vrot.lane.b32.xlu0 %v1722, 112
      %v1975 = vpop.permute.xlu0 %1974
      %1976 = vrot.lane.b32.xlu0 %v1717, 112
      %v1977 = vpop.permute.xlu0 %1976
      %1978 = vrot.lane.b32.xlu0 %v1719, 112
      %v1979 = vpop.permute.xlu0 %1978
      %1980 = vrot.lane.b32.xlu0 %v1721, 112
      %v1981 = vpop.permute.xlu0 %1980
      %1982 = vrot.lane.b32.xlu0 %v1723, 112
      %v1983 = vpop.permute.xlu0 %1982
      %v1984 = vsel %vm559, %v1969, %v1977
      %v1985 = vsel %vm559, %v1971, %v1979
      %v1986 = vsel %vm559, %v1973, %v1981
      %v1987 = vsel %vm559, %v1975, %v1983
      %v1988 = vsel %vm559, %v1977, %v1969
      %v1989 = vsel %vm559, %v1979, %v1971
      %v1990 = vsel %vm559, %v1981, %v1973
      %v1991 = vsel %vm559, %v1983, %v1975
      %v1992 = vmul.f32 %v1984, %v567
      %v1993 = vmul.f32 %v1988, %v571
      %v1994 = vmul.f32 %v1985, %v567
      %v1995 = vmul.f32 %v1989, %v571
      %v1996 = vmul.f32 %v1986, %v567
      %v1997 = vmul.f32 %v1990, %v571
      %v1998 = vmul.f32 %v1987, %v567
      %v1999 = vmul.f32 %v1991, %v571
      %v2000 = vpack.c.bf16 %v1994, %v1992
      %v2001 = vpack.c.bf16 %v1995, %v1993
      %v2002 = vpack.c.bf16 %v1998, %v1996
      %v2003 = vpack.c.bf16 %v1999, %v1997
      %2004 = vrot.lane.b32.xlu0 %v1716, 111
      %v2005 = vpop.permute.xlu0 %2004
      %2006 = vrot.lane.b32.xlu0 %v1718, 111
      %v2007 = vpop.permute.xlu0 %2006
      %2008 = vrot.lane.b32.xlu0 %v1720, 111
      %v2009 = vpop.permute.xlu0 %2008
      %2010 = vrot.lane.b32.xlu0 %v1722, 111
      %v2011 = vpop.permute.xlu0 %2010
      %2012 = vrot.lane.b32.xlu0 %v1717, 111
      %v2013 = vpop.permute.xlu0 %2012
      %2014 = vrot.lane.b32.xlu0 %v1719, 111
      %v2015 = vpop.permute.xlu0 %2014
      %2016 = vrot.lane.b32.xlu0 %v1721, 111
      %v2017 = vpop.permute.xlu0 %2016
      %2018 = vrot.lane.b32.xlu0 %v1723, 111
      %v2019 = vpop.permute.xlu0 %2018
      %v2020 = vsel %vm586, %v2005, %v2013
      %v2021 = vsel %vm586, %v2007, %v2015
      %v2022 = vsel %vm586, %v2009, %v2017
      %v2023 = vsel %vm586, %v2011, %v2019
      %v2024 = vsel %vm586, %v2013, %v2005
      %v2025 = vsel %vm586, %v2015, %v2007
      %v2026 = vsel %vm586, %v2017, %v2009
      %v2027 = vsel %vm586, %v2019, %v2011
      %v2028 = vmul.f32 %v2020, %v594
      %v2029 = vmul.f32 %v2024, %v598
      %v2030 = vmul.f32 %v2021, %v594
      %v2031 = vmul.f32 %v2025, %v598
      %v2032 = vmul.f32 %v2022, %v594
      %v2033 = vmul.f32 %v2026, %v598
      %v2034 = vmul.f32 %v2023, %v594
      %v2035 = vmul.f32 %v2027, %v598
      %v2036 = vpack.c.bf16 %v2030, %v2028
      %v2037 = vpack.c.bf16 %v2031, %v2029
      %v2038 = vpack.c.bf16 %v2034, %v2032
      %v2039 = vpack.c.bf16 %v2035, %v2033
      %v2040 = vld [vmem:[%s7] sm:$0xff]
      %v2041 = vld [vmem:[%s7 + $0x8] sm:$0xff]
      %v2042 = vld [vmem:[%s7 + $0x10] sm:$0xff]
      %v2043 = vld [vmem:[%s7 + $0x18] sm:$0xff]
      %v2044 = vld [vmem:[%s7 + $0x20] sm:$0xff]
      %v2045 = vld [vmem:[%s7 + $0x28] sm:$0xff]
      %v2046 = vld [vmem:[%s7 + $0x30] sm:$0xff]
      %v2047 = vld [vmem:[%s7 + $0x38] sm:$0xff]
      %2049 = vset.pattern.permute.xlu0 0
      %2050 = vperm.xlu0 %2049, %v2040
      %v2051 = vpop.permute.xlu0 %2050
      %2054 = vset.pattern.permute.xlu0 0
      %2055 = vperm.xlu0 %2054, %v2041
      %v2056 = vpop.permute.xlu0 %2055
      %2059 = vset.pattern.permute.xlu0 0
      %2060 = vperm.xlu0 %2059, %v2042
      %v2061 = vpop.permute.xlu0 %2060
      %2064 = vset.pattern.permute.xlu0 0
      %2065 = vperm.xlu0 %2064, %v2043
      %v2066 = vpop.permute.xlu0 %2065
      %2069 = vset.pattern.permute.xlu0 0
      %2070 = vperm.xlu0 %2069, %v2044
      %v2071 = vpop.permute.xlu0 %2070
      %2074 = vset.pattern.permute.xlu0 0
      %2075 = vperm.xlu0 %2074, %v2045
      %v2076 = vpop.permute.xlu0 %2075
      %2079 = vset.pattern.permute.xlu0 0
      %2080 = vperm.xlu0 %2079, %v2046
      %v2081 = vpop.permute.xlu0 %2080
      %2084 = vset.pattern.permute.xlu0 0
      %2085 = vperm.xlu0 %2084, %v2047
      %v2086 = vpop.permute.xlu0 %2085
      %v2104 = vunpack.c.l.b16 %v1724
      %v2105 = vunpack.c.h.b16 %v1724
      %v2106 = vunpack.c.l.b16 %v1725
      %v2107 = vunpack.c.l.b16 %v1726
      %v2108 = vunpack.c.h.b16 %v1726
      %v2109 = vunpack.c.l.b16 %v1727
      %v2110 = vunpack.c.l.b16 %v1728
      %v2111 = vunpack.c.h.b16 %v1728
      %v2112 = vunpack.c.l.b16 %v1729
      %v2113 = vunpack.c.l.b16 %v1730
      %v2114 = vunpack.c.h.b16 %v1730
      %v2115 = vunpack.c.l.b16 %v1731
      %v2116 = vunpack.c.l.b16 %v1732
      %v2117 = vunpack.c.h.b16 %v1732
      %v2118 = vunpack.c.l.b16 %v1733
      %v2119 = vunpack.c.l.b16 %v1734
      %v2120 = vunpack.c.h.b16 %v1734
      %v2121 = vunpack.c.l.b16 %v1735
      %v2122 = vunpack.c.l.b16 %v1736
      %v2123 = vunpack.c.h.b16 %v1736
      %v2124 = vunpack.c.l.b16 %v1737
      %v2125 = vunpack.c.l.b16 %v1738
      %v2126 = vunpack.c.h.b16 %v1738
      %v2127 = vunpack.c.l.b16 %v1739
      %v2128 = vpack.c.b16 %v2107, %v2104
      %v2129 = vpack.c.b16 %v2108, %v2105
      %v2130 = vpack.c.b16 %v2109, %v2106
      %v2131 = vpack.c.b16 %v2113, %v2110
      %v2132 = vpack.c.b16 %v2114, %v2111
      %v2133 = vpack.c.b16 %v2115, %v2112
      %v2134 = vpack.c.b16 %v2119, %v2116
      %v2135 = vpack.c.b16 %v2120, %v2117
      %v2136 = vpack.c.b16 %v2121, %v2118
      %v2137 = vpack.c.b16 %v2125, %v2122
      %v2138 = vpack.c.b16 %v2126, %v2123
      %v2139 = vpack.c.b16 %v2127, %v2124
      %v2149 = vsel %vm1034, %v2130, 0
      %v2152 = vsel %vm1034, %v2133, 0
      %v2155 = vsel %vm1034, %v2136, 0
      %v2158 = vsel %vm1034, %v2139, 0
      %2160 = vmatprep.subr.bf16.mxu0 %v1773
      %2161 = vmatpush1.bf16.msra.mxu0 %v1772
      %2162 = vmatprep.subr.bf16.mxu0 %v1775
      %2163 = vmatpush1.bf16.msra.mxu0 %v1774
      %2164 = vmatprep.subr.bf16.mxu0 %v1809
      %2165 = vmatpush1.bf16.msra.mxu0 %v1808
      %2166 = vmatprep.subr.bf16.mxu0 %v1811
      %2167 = vmatpush1.bf16.msra.mxu0 %v1810
      %2168 = vmatprep.subr.bf16.mxu0 %v1845
      %2169 = vmatpush1.bf16.msra.mxu0 %v1844
      %2170 = vmatprep.subr.bf16.mxu0 %v1847
      %2171 = vmatpush1.bf16.msra.mxu0 %v1846
      %2172 = vmatprep.subr.bf16.mxu0 %v1881
      %2173 = vmatpush1.bf16.msra.mxu0 %v1880
      %2174 = vmatprep.subr.bf16.mxu0 %v1883
      %2175 = vmatpush1.bf16.msra.mxu0 %v1882
      %2176 = vmatprep.subr.bf16.mxu0 %v1893
      %2177 = vmatpush1.bf16.msra.mxu0 %v1892
      %2178 = vmatprep.subr.bf16.mxu0 %v1895
      %2179 = vmatpush1.bf16.msra.mxu0 %v1894
      %2180 = vmatprep.subr.bf16.mxu0 %v1929
      %2181 = vmatpush1.bf16.msra.mxu0 %v1928
      %2182 = vmatprep.subr.bf16.mxu0 %v1931
      %2183 = vmatpush1.bf16.msra.mxu0 %v1930
      %2184 = vmatprep.subr.bf16.mxu0 %v1965
      %2185 = vmatpush1.bf16.msra.mxu0 %v1964
      %2186 = vmatprep.subr.bf16.mxu0 %v1967
      %2187 = vmatpush1.bf16.msra.mxu0 %v1966
      %2188 = vmatprep.subr.bf16.mxu0 %v2001
      %2189 = vmatpush1.bf16.msra.mxu0 %v2000
      %2190 = vmatprep.subr.bf16.mxu0 %v2003
      %2191 = vmatpush1.bf16.msra.mxu0 %v2002
      %2192 = vmatprep.mubr.bf16.mxu0 %v2129
      %2193 = vmatmul.mubr.bf16.gmra.mrb[0].mxu0 %v2128
      %v2194 = vpop.f32.mrb[0].mxu0
      %v2195 = vadd.f32 %v2051, %v2194
      %v2196 = vpop.f32.mrb[0].mxu0
      %v2197 = vadd.f32 %v2051, %v2196
      %v2198 = vpop.f32.mrb[0].mxu0
      %v2199 = vadd.f32 %v2056, %v2198
      %v2200 = vpop.f32.mrb[0].mxu0
      %v2201 = vadd.f32 %v2056, %v2200
      %2202 = vmatprep.mubr.bf16.mxu0 %v2132
      %2203 = vmatmul.mubr.bf16.gmra.mrb[0].mxu0 %v2131
      %v2204 = vpop.f32.mrb[0].mxu0
      %v2205 = vadd.f32 %v2061, %v2204
      %v2206 = vpop.f32.mrb[0].mxu0
      %v2207 = vadd.f32 %v2061, %v2206
      %v2208 = vpop.f32.mrb[0].mxu0
      %v2209 = vadd.f32 %v2066, %v2208
      %v2210 = vpop.f32.mrb[0].mxu0
      %v2211 = vadd.f32 %v2066, %v2210
      %2212 = vmatprep.mubr.bf16.mxu0 %v2135
      %2213 = vmatmul.mubr.bf16.gmra.mrb[0].mxu0 %v2134
      %v2214 = vpop.f32.mrb[0].mxu0
      %v2215 = vadd.f32 %v2071, %v2214
      %v2216 = vpop.f32.mrb[0].mxu0
      %v2217 = vadd.f32 %v2071, %v2216
      %v2218 = vpop.f32.mrb[0].mxu0
      %v2219 = vadd.f32 %v2076, %v2218
      %v2220 = vpop.f32.mrb[0].mxu0
      %v2221 = vadd.f32 %v2076, %v2220
      %2222 = vmatprep.mubr.bf16.mxu0 %v2138
      %2223 = vmatmul.mubr.bf16.gmra.mrb[0].mxu0 %v2137
      %v2224 = vpop.f32.mrb[0].mxu0
      %v2225 = vadd.f32 %v2081, %v2224
      %v2226 = vpop.f32.mrb[0].mxu0
      %v2227 = vadd.f32 %v2081, %v2226
      %v2228 = vpop.f32.mrb[0].mxu0
      %v2229 = vadd.f32 %v2086, %v2228
      %v2230 = vpop.f32.mrb[0].mxu0
      %v2231 = vadd.f32 %v2086, %v2230
      %2232 = vdwg.mxu0
      %2233 = vmatprep.subr.bf16.mxu0 %v2037
      %2234 = vmatpush1.bf16.msra.mxu0 %v2036
      %2235 = vmatprep.subr.bf16.mxu0 %v2039
      %2236 = vmatpush1.bf16.msra.mxu0 %v2038
      %2237 = vmatprep.subr.bf16.mxu0 0
      %2238 = vmatpush1.bf16.msra.mxu0 0
      %2239 = vmatprep.subr.bf16.mxu0 0
      %2240 = vmatpush1.bf16.msra.mxu0 0
      %2241 = vmatprep.subr.bf16.mxu0 0
      %2242 = vmatpush1.bf16.msra.mxu0 0
      %2243 = vmatprep.subr.bf16.mxu0 0
      %2244 = vmatpush1.bf16.msra.mxu0 0
      %2245 = vmatprep.subr.bf16.mxu0 0
      %2246 = vmatpush1.bf16.msra.mxu0 0
      %2247 = vmatprep.subr.bf16.mxu0 0
      %2248 = vmatpush1.bf16.msra.mxu0 0
      %2249 = vmatprep.subr.bf16.mxu0 0
      %2250 = vmatpush1.bf16.msra.mxu0 0
      %2251 = vmatprep.subr.bf16.mxu0 0
      %2252 = vmatpush1.bf16.msra.mxu0 0
      %2253 = vmatprep.subr.bf16.mxu0 0
      %2254 = vmatpush1.bf16.msra.mxu0 0
      %2255 = vmatprep.subr.bf16.mxu0 0
      %2256 = vmatpush1.bf16.msra.mxu0 0
      %2257 = vmatprep.subr.bf16.mxu0 0
      %2258 = vmatpush1.bf16.msra.mxu0 0
      %2259 = vmatprep.subr.bf16.mxu0 0
      %2260 = vmatpush1.bf16.msra.mxu0 0
      %2261 = vmatprep.subr.bf16.mxu0 0
      %2262 = vmatpush1.bf16.msra.mxu0 0
      %2263 = vmatprep.subr.bf16.mxu0 0
      %2264 = vmatpush1.bf16.msra.mxu0 0
      %2265 = vmatprep.mubr.bf16.mxu0 0
      %2266 = vmatmul.mubr.bf16.gmra.mrb[0].mxu0 %v2149
      %v2267 = vpop.f32.mrb[0].mxu0
      %v2268 = vadd.f32 %v2195, %v2267
      %v2269 = vpop.f32.mrb[0].mxu0
      %v2270 = vadd.f32 %v2197, %v2269
      %v2271 = vpop.f32.mrb[0].mxu0
      %v2272 = vadd.f32 %v2199, %v2271
      %v2273 = vpop.f32.mrb[0].mxu0
      %v2274 = vadd.f32 %v2201, %v2273
      %2275 = vmatprep.mubr.bf16.mxu0 0
      %2276 = vmatmul.mubr.bf16.gmra.mrb[0].mxu0 %v2152
      %v2277 = vpop.f32.mrb[0].mxu0
      %v2278 = vadd.f32 %v2205, %v2277
      %v2279 = vpop.f32.mrb[0].mxu0
      %v2280 = vadd.f32 %v2207, %v2279
      %v2281 = vpop.f32.mrb[0].mxu0
      %v2282 = vadd.f32 %v2209, %v2281
      %v2283 = vpop.f32.mrb[0].mxu0
      %v2284 = vadd.f32 %v2211, %v2283
      %2285 = vmatprep.mubr.bf16.mxu0 0
      %2286 = vmatmul.mubr.bf16.gmra.mrb[0].mxu0 %v2155
      %v2287 = vpop.f32.mrb[0].mxu0
      %v2288 = vadd.f32 %v2215, %v2287
      %v2289 = vpop.f32.mrb[0].mxu0
      %v2290 = vadd.f32 %v2217, %v2289
      %v2291 = vpop.f32.mrb[0].mxu0
      %v2292 = vadd.f32 %v2219, %v2291
      %v2293 = vpop.f32.mrb[0].mxu0
      %v2294 = vadd.f32 %v2221, %v2293
      %2295 = vmatprep.mubr.bf16.mxu0 0
      %2296 = vmatmul.mubr.bf16.gmra.mrb[0].mxu0 %v2158
      %v2297 = vpop.f32.mrb[0].mxu0
      %v2298 = vadd.f32 %v2225, %v2297
      %v2299 = vpop.f32.mrb[0].mxu0
      %v2300 = vadd.f32 %v2227, %v2299
      %v2301 = vpop.f32.mrb[0].mxu0
      %v2302 = vadd.f32 %v2229, %v2301
      %v2303 = vpop.f32.mrb[0].mxu0
      %v2304 = vadd.f32 %v2231, %v2303
      %2305 = vdwg.mxu0
      %v2306 = vmax.f32 %v2268, 0.0
      %v2307 = vmax.f32 %v2270, 0.0
      %v2308 = vmax.f32 %v2272, 0.0
      %v2309 = vmax.f32 %v2274, 0.0
      %v2310 = vmax.f32 %v2278, 0.0
      %v2311 = vmax.f32 %v2280, 0.0
      %v2312 = vmax.f32 %v2282, 0.0
      %v2313 = vmax.f32 %v2284, 0.0
      %v2314 = vmax.f32 %v2288, 0.0
      %v2315 = vmax.f32 %v2290, 0.0
      %v2316 = vmax.f32 %v2292, 0.0
      %v2317 = vmax.f32 %v2294, 0.0
      %v2318 = vmax.f32 %v2298, 0.0
      %v2319 = vmax.f32 %v2300, 0.0
      %v2320 = vmax.f32 %v2302, 0.0
      %v2321 = vmax.f32 %v2304, 0.0
      %v2322 = vmul.f32 %v2306, %v486
      %v2323 = vmul.f32 %v2307, %v490
      %v2324 = vmul.f32 %v2308, %v486
      %v2325 = vmul.f32 %v2309, %v490
      %v2326 = vpack.c.bf16 %v2324, %v2322
      %v2327 = vpack.c.bf16 %v2325, %v2323
      %2328 = vrot.lane.b32.xlu0 %v2306, 127
      %v2329 = vpop.permute.xlu0 %2328
      %2330 = vrot.lane.b32.xlu0 %v2308, 127
      %v2331 = vpop.permute.xlu0 %2330
      %2332 = vrot.lane.b32.xlu0 %v2307, 127
      %v2333 = vpop.permute.xlu0 %2332
      %2334 = vrot.lane.b32.xlu0 %v2309, 127
      %v2335 = vpop.permute.xlu0 %2334
      %v2336 = vsel %vm505, %v2329, %v2333
      %v2337 = vsel %vm505, %v2331, %v2335
      %v2338 = vsel %vm505, %v2333, %v2329
      %v2339 = vsel %vm505, %v2335, %v2331
      %v2340 = vmul.f32 %v2336, %v513
      %v2341 = vmul.f32 %v2338, %v517
      %v2342 = vmul.f32 %v2337, %v513
      %v2343 = vmul.f32 %v2339, %v517
      %v2344 = vpack.c.bf16 %v2342, %v2340
      %v2345 = vpack.c.bf16 %v2343, %v2341
      %2346 = vrot.lane.b32.xlu0 %v2306, 112
      %v2347 = vpop.permute.xlu0 %2346
      %2348 = vrot.lane.b32.xlu0 %v2308, 112
      %v2349 = vpop.permute.xlu0 %2348
      %2350 = vrot.lane.b32.xlu0 %v2307, 112
      %v2351 = vpop.permute.xlu0 %2350
      %2352 = vrot.lane.b32.xlu0 %v2309, 112
      %v2353 = vpop.permute.xlu0 %2352
      %v2354 = vsel %vm559, %v2347, %v2351
      %v2355 = vsel %vm559, %v2349, %v2353
      %v2356 = vsel %vm559, %v2351, %v2347
      %v2357 = vsel %vm559, %v2353, %v2349
      %v2358 = vmul.f32 %v2354, %v567
      %v2359 = vmul.f32 %v2356, %v571
      %v2360 = vmul.f32 %v2355, %v567
      %v2361 = vmul.f32 %v2357, %v571
      %v2362 = vpack.c.bf16 %v2360, %v2358
      %v2363 = vpack.c.bf16 %v2361, %v2359
      %2364 = vrot.lane.b32.xlu0 %v2306, 111
      %v2365 = vpop.permute.xlu0 %2364
      %2366 = vrot.lane.b32.xlu0 %v2308, 111
      %v2367 = vpop.permute.xlu0 %2366
      %2368 = vrot.lane.b32.xlu0 %v2307, 111
      %v2369 = vpop.permute.xlu0 %2368
      %2370 = vrot.lane.b32.xlu0 %v2309, 111
      %v2371 = vpop.permute.xlu0 %2370
      %v2372 = vsel %vm586, %v2365, %v2369
      %v2373 = vsel %vm586, %v2367, %v2371
      %v2374 = vsel %vm586, %v2369, %v2365
      %v2375 = vsel %vm586, %v2371, %v2367
      %v2376 = vmul.f32 %v2372, %v594
      %v2377 = vmul.f32 %v2374, %v598
      %v2378 = vmul.f32 %v2373, %v594
      %v2379 = vmul.f32 %v2375, %v598
      %v2380 = vpack.c.bf16 %v2378, %v2376
      %v2381 = vpack.c.bf16 %v2379, %v2377
      %2382 = vrot.lane.b32.xlu0 %v2310, 1
      %v2383 = vpop.permute.xlu0 %2382
      %2384 = vrot.lane.b32.xlu0 %v2312, 1
      %v2385 = vpop.permute.xlu0 %2384
      %2386 = vrot.lane.b32.xlu0 %v2311, 1
      %v2387 = vpop.permute.xlu0 %2386
      %2388 = vrot.lane.b32.xlu0 %v2313, 1
      %v2389 = vpop.permute.xlu0 %2388
      %v2390 = vsel %vm464, %v2383, %v2387
      %v2391 = vsel %vm464, %v2385, %v2389
      %v2392 = vsel %vm464, %v2387, %v2383
      %v2393 = vsel %vm464, %v2389, %v2385
      %v2394 = vmul.f32 %v2392, %v472
      %v2395 = vmul.f32 %v2390, %v476
      %v2396 = vmul.f32 %v2393, %v472
      %v2397 = vmul.f32 %v2391, %v476
      %v2398 = vpack.c.bf16 %v2396, %v2394
      %v2399 = vpack.c.bf16 %v2397, %v2395
      %v2400 = vmul.f32 %v2310, %v486
      %v2401 = vmul.f32 %v2311, %v490
      %v2402 = vmul.f32 %v2312, %v486
      %v2403 = vmul.f32 %v2313, %v490
      %v2404 = vpack.c.bf16 %v2402, %v2400
      %v2405 = vpack.c.bf16 %v2403, %v2401
      %2406 = vrot.lane.b32.xlu0 %v2310, 113
      %v2407 = vpop.permute.xlu0 %2406
      %2408 = vrot.lane.b32.xlu0 %v2312, 113
      %v2409 = vpop.permute.xlu0 %2408
      %2410 = vrot.lane.b32.xlu0 %v2311, 113
      %v2411 = vpop.permute.xlu0 %2410
      %2412 = vrot.lane.b32.xlu0 %v2313, 113
      %v2413 = vpop.permute.xlu0 %2412
      %v2414 = vsel %vm532, %v2407, %v2411
      %v2415 = vsel %vm532, %v2409, %v2413
      %v2416 = vsel %vm532, %v2411, %v2407
      %v2417 = vsel %vm532, %v2413, %v2409
      %v2418 = vmul.f32 %v2414, %v540
      %v2419 = vmul.f32 %v2416, %v544
      %v2420 = vmul.f32 %v2415, %v540
      %v2421 = vmul.f32 %v2417, %v544
      %v2422 = vpack.c.bf16 %v2420, %v2418
      %v2423 = vpack.c.bf16 %v2421, %v2419
      %2424 = vrot.lane.b32.xlu0 %v2310, 112
      %v2425 = vpop.permute.xlu0 %2424
      %2426 = vrot.lane.b32.xlu0 %v2312, 112
      %v2427 = vpop.permute.xlu0 %2426
      %2428 = vrot.lane.b32.xlu0 %v2311, 112
      %v2429 = vpop.permute.xlu0 %2428
      %2430 = vrot.lane.b32.xlu0 %v2313, 112
      %v2431 = vpop.permute.xlu0 %2430
      %v2432 = vsel %vm559, %v2425, %v2429
      %v2433 = vsel %vm559, %v2427, %v2431
      %v2434 = vsel %vm559, %v2429, %v2425
      %v2435 = vsel %vm559, %v2431, %v2427
      %v2436 = vmul.f32 %v2432, %v567
      %v2437 = vmul.f32 %v2434, %v571
      %v2438 = vmul.f32 %v2433, %v567
      %v2439 = vmul.f32 %v2435, %v571
      %v2440 = vpack.c.bf16 %v2438, %v2436
      %v2441 = vpack.c.bf16 %v2439, %v2437
      %2442 = vrot.lane.b32.xlu0 %v2314, 16
      %v2443 = vpop.permute.xlu0 %2442
      %2444 = vrot.lane.b32.xlu0 %v2316, 16
      %v2445 = vpop.permute.xlu0 %2444
      %2446 = vrot.lane.b32.xlu0 %v2315, 16
      %v2447 = vpop.permute.xlu0 %2446
      %2448 = vrot.lane.b32.xlu0 %v2317, 16
      %v2449 = vpop.permute.xlu0 %2448
      %v2450 = vsel %vm410, %v2443, %v2447
      %v2451 = vsel %vm410, %v2445, %v2449
      %v2452 = vsel %vm410, %v2447, %v2443
      %v2453 = vsel %vm410, %v2449, %v2445
      %v2454 = vmul.f32 %v2452, %v418
      %v2455 = vmul.f32 %v2450, %v422
      %v2456 = vmul.f32 %v2453, %v418
      %v2457 = vmul.f32 %v2451, %v422
      %v2458 = vpack.c.bf16 %v2456, %v2454
      %v2459 = vpack.c.bf16 %v2457, %v2455
      %2460 = vrot.lane.b32.xlu0 %v2314, 15
      %v2461 = vpop.permute.xlu0 %2460
      %2462 = vrot.lane.b32.xlu0 %v2316, 15
      %v2463 = vpop.permute.xlu0 %2462
      %2464 = vrot.lane.b32.xlu0 %v2315, 15
      %v2465 = vpop.permute.xlu0 %2464
      %2466 = vrot.lane.b32.xlu0 %v2317, 15
      %v2467 = vpop.permute.xlu0 %2466
      %v2468 = vsel %vm437, %v2461, %v2465
      %v2469 = vsel %vm437, %v2463, %v2467
      %v2470 = vsel %vm437, %v2465, %v2461
      %v2471 = vsel %vm437, %v2467, %v2463
      %v2472 = vmul.f32 %v2470, %v445
      %v2473 = vmul.f32 %v2468, %v449
      %v2474 = vmul.f32 %v2471, %v445
      %v2475 = vmul.f32 %v2469, %v449
      %v2476 = vpack.c.bf16 %v2474, %v2472
      %v2477 = vpack.c.bf16 %v2475, %v2473
      %v2478 = vmul.f32 %v2314, %v486
      %v2479 = vmul.f32 %v2315, %v490
      %v2480 = vmul.f32 %v2316, %v486
      %v2481 = vmul.f32 %v2317, %v490
      %v2482 = vpack.c.bf16 %v2480, %v2478
      %v2483 = vpack.c.bf16 %v2481, %v2479
      %2484 = vrot.lane.b32.xlu0 %v2314, 127
      %v2485 = vpop.permute.xlu0 %2484
      %2486 = vrot.lane.b32.xlu0 %v2316, 127
      %v2487 = vpop.permute.xlu0 %2486
      %2488 = vrot.lane.b32.xlu0 %v2315, 127
      %v2489 = vpop.permute.xlu0 %2488
      %2490 = vrot.lane.b32.xlu0 %v2317, 127
      %v2491 = vpop.permute.xlu0 %2490
      %v2492 = vsel %vm505, %v2485, %v2489
      %v2493 = vsel %vm505, %v2487, %v2491
      %v2494 = vsel %vm505, %v2489, %v2485
      %v2495 = vsel %vm505, %v2491, %v2487
      %v2496 = vmul.f32 %v2492, %v513
      %v2497 = vmul.f32 %v2494, %v517
      %v2498 = vmul.f32 %v2493, %v513
      %v2499 = vmul.f32 %v2495, %v517
      %v2500 = vpack.c.bf16 %v2498, %v2496
      %v2501 = vpack.c.bf16 %v2499, %v2497
      %2502 = vrot.lane.b32.xlu0 %v2318, 17
      %v2503 = vpop.permute.xlu0 %2502
      %2504 = vrot.lane.b32.xlu0 %v2320, 17
      %v2505 = vpop.permute.xlu0 %2504
      %2506 = vrot.lane.b32.xlu0 %v2319, 17
      %v2507 = vpop.permute.xlu0 %2506
      %2508 = vrot.lane.b32.xlu0 %v2321, 17
      %v2509 = vpop.permute.xlu0 %2508
      %v2510 = vsel %vm383, %v2503, %v2507
      %v2511 = vsel %vm383, %v2505, %v2509
      %v2512 = vsel %vm383, %v2507, %v2503
      %v2513 = vsel %vm383, %v2509, %v2505
      %v2514 = vmul.f32 %v2512, %v391
      %v2515 = vmul.f32 %v2510, %v395
      %v2516 = vmul.f32 %v2513, %v391
      %v2517 = vmul.f32 %v2511, %v395
      %v2518 = vpack.c.bf16 %v2516, %v2514
      %v2519 = vpack.c.bf16 %v2517, %v2515
      %2520 = vrot.lane.b32.xlu0 %v2318, 16
      %v2521 = vpop.permute.xlu0 %2520
      %2522 = vrot.lane.b32.xlu0 %v2320, 16
      %v2523 = vpop.permute.xlu0 %2522
      %2524 = vrot.lane.b32.xlu0 %v2319, 16
      %v2525 = vpop.permute.xlu0 %2524
      %2526 = vrot.lane.b32.xlu0 %v2321, 16
      %v2527 = vpop.permute.xlu0 %2526
      %v2528 = vsel %vm410, %v2521, %v2525
      %v2529 = vsel %vm410, %v2523, %v2527
      %v2530 = vsel %vm410, %v2525, %v2521
      %v2531 = vsel %vm410, %v2527, %v2523
      %v2532 = vmul.f32 %v2530, %v418
      %v2533 = vmul.f32 %v2528, %v422
      %v2534 = vmul.f32 %v2531, %v418
      %v2535 = vmul.f32 %v2529, %v422
      %v2536 = vpack.c.bf16 %v2534, %v2532
      %v2537 = vpack.c.bf16 %v2535, %v2533
      %2538 = vrot.lane.b32.xlu0 %v2318, 1
      %v2539 = vpop.permute.xlu0 %2538
      %2540 = vrot.lane.b32.xlu0 %v2320, 1
      %v2541 = vpop.permute.xlu0 %2540
      %2542 = vrot.lane.b32.xlu0 %v2319, 1
      %v2543 = vpop.permute.xlu0 %2542
      %2544 = vrot.lane.b32.xlu0 %v2321, 1
      %v2545 = vpop.permute.xlu0 %2544
      %v2546 = vsel %vm464, %v2539, %v2543
      %v2547 = vsel %vm464, %v2541, %v2545
      %v2548 = vsel %vm464, %v2543, %v2539
      %v2549 = vsel %vm464, %v2545, %v2541
      %v2550 = vmul.f32 %v2548, %v472
      %v2551 = vmul.f32 %v2546, %v476
      %v2552 = vmul.f32 %v2549, %v472
      %v2553 = vmul.f32 %v2547, %v476
      %v2554 = vpack.c.bf16 %v2552, %v2550
      %v2555 = vpack.c.bf16 %v2553, %v2551
      %v2556 = vmul.f32 %v2318, %v486
      %v2557 = vmul.f32 %v2319, %v490
      %v2558 = vmul.f32 %v2320, %v486
      %v2559 = vmul.f32 %v2321, %v490
      %v2560 = vpack.c.bf16 %v2558, %v2556
      %v2561 = vpack.c.bf16 %v2559, %v2557
      %v2562 = vld [vmem:[%s8] sm:$0xff]
      %v2563 = vld [vmem:[%s8 + $0x8] sm:$0xff]
      %v2564 = vld [vmem:[%s8 + $0x10] sm:$0xff]
      %v2565 = vld [vmem:[%s8 + $0x18] sm:$0xff]
      %v2566 = vld [vmem:[%s8 + $0x20] sm:$0xff]
      %v2567 = vld [vmem:[%s8 + $0x28] sm:$0xff]
      %v2568 = vld [vmem:[%s9] sm:$0xff]
      %v2569 = vld [vmem:[%s9 + $0x8] sm:$0xff]
      %v2570 = vld [vmem:[%s9 + $0x10] sm:$0xff]
      %v2571 = vld [vmem:[%s9 + $0x18] sm:$0xff]
      %v2572 = vld [vmem:[%s9 + $0x20] sm:$0xff]
      %v2573 = vld [vmem:[%s9 + $0x28] sm:$0xff]
      %2575 = vset.pattern.permute.xlu0 0
      %2576 = vperm.xlu0 %2575, %v2568
      %v2577 = vpop.permute.xlu0 %2576
      %2580 = vset.pattern.permute.xlu0 0
      %2581 = vperm.xlu0 %2580, %v2569
      %v2582 = vpop.permute.xlu0 %2581
      %2585 = vset.pattern.permute.xlu0 0
      %2586 = vperm.xlu0 %2585, %v2570
      %v2587 = vpop.permute.xlu0 %2586
      %2590 = vset.pattern.permute.xlu0 0
      %2591 = vperm.xlu0 %2590, %v2571
      %v2592 = vpop.permute.xlu0 %2591
      %2595 = vset.pattern.permute.xlu0 0
      %2596 = vperm.xlu0 %2595, %v2572
      %v2597 = vpop.permute.xlu0 %2596
      %2600 = vset.pattern.permute.xlu0 0
      %2601 = vperm.xlu0 %2600, %v2573
      %v2602 = vpop.permute.xlu0 %2601
      %v2610 = vunpack.c.l.b16 %v2562
      %v2611 = vunpack.c.h.b16 %v2562
      %v2612 = vunpack.c.l.b16 %v2563
      %v2613 = vunpack.c.h.b16 %v2563
      %v2614 = vunpack.c.l.b16 %v2564
      %v2615 = vunpack.c.h.b16 %v2564
      %v2616 = vunpack.c.l.b16 %v2565
      %v2617 = vunpack.c.h.b16 %v2565
      %v2618 = vunpack.c.l.b16 %v2566
      %v2619 = vunpack.c.h.b16 %v2566
      %v2620 = vunpack.c.l.b16 %v2567
      %v2621 = vunpack.c.h.b16 %v2567
      %v2622 = vpack.c.b16 %v2612, %v2610
      %v2623 = vpack.c.b16 %v2613, %v2611
      %v2624 = vpack.c.b16 %v2616, %v2614
      %v2625 = vpack.c.b16 %v2617, %v2615
      %v2626 = vpack.c.b16 %v2620, %v2618
      %v2627 = vpack.c.b16 %v2621, %v2619
      %2634 = vmatprep.subr.bf16.mxu0 %v2327
      %2635 = vmatpush1.bf16.msra.mxu0 %v2326
      %2636 = vmatprep.subr.bf16.mxu0 %v2345
      %2637 = vmatpush1.bf16.msra.mxu0 %v2344
      %2638 = vmatprep.subr.bf16.mxu0 %v2363
      %2639 = vmatpush1.bf16.msra.mxu0 %v2362
      %2640 = vmatprep.subr.bf16.mxu0 %v2381
      %2641 = vmatpush1.bf16.msra.mxu0 %v2380
      %2642 = vmatprep.subr.bf16.mxu0 %v2399
      %2643 = vmatpush1.bf16.msra.mxu0 %v2398
      %2644 = vmatprep.subr.bf16.mxu0 %v2405
      %2645 = vmatpush1.bf16.msra.mxu0 %v2404
      %2646 = vmatprep.subr.bf16.mxu0 %v2423
      %2647 = vmatpush1.bf16.msra.mxu0 %v2422
      %2648 = vmatprep.subr.bf16.mxu0 %v2441
      %2649 = vmatpush1.bf16.msra.mxu0 %v2440
      %2650 = vmatprep.subr.bf16.mxu0 %v2459
      %2651 = vmatpush1.bf16.msra.mxu0 %v2458
      %2652 = vmatprep.subr.bf16.mxu0 %v2477
      %2653 = vmatpush1.bf16.msra.mxu0 %v2476
      %2654 = vmatprep.subr.bf16.mxu0 %v2483
      %2655 = vmatpush1.bf16.msra.mxu0 %v2482
      %2656 = vmatprep.subr.bf16.mxu0 %v2501
      %2657 = vmatpush1.bf16.msra.mxu0 %v2500
      %2658 = vmatprep.subr.bf16.mxu0 %v2519
      %2659 = vmatpush1.bf16.msra.mxu0 %v2518
      %2660 = vmatprep.subr.bf16.mxu0 %v2537
      %2661 = vmatpush1.bf16.msra.mxu0 %v2536
      %2662 = vmatprep.subr.bf16.mxu0 %v2555
      %2663 = vmatpush1.bf16.msra.mxu0 %v2554
      %2664 = vmatprep.subr.bf16.mxu0 %v2561
      %2665 = vmatpush1.bf16.msra.mxu0 %v2560
      %2666 = vmatprep.mubr.bf16.mxu0 %v2623
      %2667 = vmatmul.mubr.bf16.gmra.mrb[0].mxu0 %v2622
      %v2668 = vpop.f32.mrb[0].mxu0
      %v2669 = vadd.f32 %v2577, %v2668
      %v2670 = vpop.f32.mrb[0].mxu0
      %v2671 = vadd.f32 %v2577, %v2670
      %v2672 = vpop.f32.mrb[0].mxu0
      %v2673 = vadd.f32 %v2582, %v2672
      %v2674 = vpop.f32.mrb[0].mxu0
      %v2675 = vadd.f32 %v2582, %v2674
      %2676 = vmatprep.mubr.bf16.mxu0 %v2625
      %2677 = vmatmul.mubr.bf16.gmra.mrb[0].mxu0 %v2624
      %v2678 = vpop.f32.mrb[0].mxu0
      %v2679 = vadd.f32 %v2587, %v2678
      %v2680 = vpop.f32.mrb[0].mxu0
      %v2681 = vadd.f32 %v2587, %v2680
      %v2682 = vpop.f32.mrb[0].mxu0
      %v2683 = vadd.f32 %v2592, %v2682
      %v2684 = vpop.f32.mrb[0].mxu0
      %v2685 = vadd.f32 %v2592, %v2684
      %2686 = vmatprep.mubr.bf16.mxu0 %v2627
      %2687 = vmatmul.mubr.bf16.gmra.mrb[0].mxu0 %v2626
      %v2688 = vpop.f32.mrb[0].mxu0
      %v2689 = vadd.f32 %v2597, %v2688
      %v2690 = vpop.f32.mrb[0].mxu0
      %v2691 = vadd.f32 %v2597, %v2690
      %v2692 = vpop.f32.mrb[0].mxu0
      %v2693 = vadd.f32 %v2602, %v2692
      %v2694 = vpop.f32.mrb[0].mxu0
      %v2695 = vadd.f32 %v2602, %v2694
      %2696 = vdwg.mxu0
      %2697 = vst [vmem:[%s359] sm:$0xff] %v2669
      %2698 = vst [vmem:[%s359 + $0x8] sm:$0xff] %v2671
      %2699 = vst [vmem:[%s359 + $0x10] sm:$0xff] %v2673
      %2700 = vst [vmem:[%s359 + $0x18] sm:$0xff] %v2675
      %2701 = vst [vmem:[%s359 + $0x20] sm:$0xff] %v2679
      %2702 = vst [vmem:[%s359 + $0x28] sm:$0xff] %v2681
      %2703 = vst [vmem:[%s359 + $0x30] sm:$0xff] %v2683
      %2704 = vst [vmem:[%s359 + $0x38] sm:$0xff] %v2685
      %2705 = vst [vmem:[%s359 + $0x40] sm:$0xff] %v2689
      %2706 = vst [vmem:[%s359 + $0x48] sm:$0xff] %v2691
      %2707 = vst [vmem:[%s359 + $0x50] sm:$0xff] %v2693
      %2708 = vst [vmem:[%s359 + $0x58] sm:$0xff] %v2695
      %p2709 = scmp.lt.s32.totalorder %s21, 1
      %s2710 = scalar_select %p2709, %s21, 1
      %s2711 = smul.addr %s2710, 12
      %s2712 = smul.addr %s2711, 8
      %s2713 = scalar_lea.vmem %s10, %s2712
      // Predicated region
      $region61: #{decoder_forward.1} parent=59 // pred_check
        %p2714 = pneg %p254
      $region62: #{decoder_forward.1} parent=59 // pred_check_branch
        %2716 = sbr.rel (%p2714) target = $region64
      $region63: #{decoder_forward.1} parent=59 // pred_region
        _
      $region64: #{decoder_forward.1} parent=59 // pred_fallthru
        _
    $region60: #{decoder_forward.1} parent=5 // pred_fallthru
      _
    %p2717 = scmp.le.s32.totalorder 2, %s16
    // Predicated region
    $region65: #{decoder_forward.1} parent=5 // pred_check
      %p2718 = pneg %p2717
    $region66: #{decoder_forward.1} parent=5 // pred_check_branch
      %2720 = sbr.rel (%p2718) target = $region68
    $region67: #{decoder_forward.1} parent=5 // pred_region
      %s2721 = ssub.s32 %s16, 2
      // Predicated region
      $region69: #{decoder_forward.1} parent=67 // pred_check
        %p2722 = pneg %p260
      $region70: #{decoder_forward.1} parent=67 // pred_check_branch
        %2724 = sbr.rel (%p2722) target = $region72
      $region71: #{decoder_forward.1} parent=67 // pred_region
        %p2725 = scmp.lt.s32.totalorder %s22, 1
        %s2726 = scalar_select %p2725, %s22, 1
        %s2727 = smul.addr %s2726, 12
        %s2728 = smul.addr %s2727, 8
        %s2729 = scalar_lea.vmem %s10, %s2728
      $region72: #{decoder_forward.1} parent=67 // pred_fallthru
        _
    $region68: #{decoder_forward.1} parent=5 // pred_fallthru
      _
  $region6: #{decoder_forward.1} parent=0 // loop_footer
    %s20 = sadd.s32 1, %s16
  $region7: #{decoder_forward.1} parent=0 // loop_footer_branch
    %15 = sbr.rel target = $region3
  $region8: #{decoder_forward.1} parent=0 // loop_exit
    _

</llo_original>
